<compile_context>
chip_gen: v5e
topology: v5e:2x2
jax: 0.10.0
libtpu: 0.0.40
codegen_flags: <defaults>
</compile_context>

<pallas_src>
import functools

import jax
import jax.numpy as jnp
from jax import lax
from jax.experimental import pallas as pl
from jax.experimental.pallas import tpu as pltpu


def _round_up(x, m):
    return (x + m - 1) // m * m


def _vmem_limit_bytes():
    # Per-generation VMEM budget: leave headroom below the physical per-core
    # capacity (64 MiB/TC on v7x, 128 MiB on v5e/v6e); never exceed ~100 MiB.
    try:
        cap = int(pltpu.get_tpu_info().vmem_capacity_bytes)
    except Exception:
        cap = 64 * 1024 * 1024  # conservative fallback (v7x per-TC physical)
    return min(int(cap * 0.85), 100 * 1024 * 1024)


def _deep_rnn_kernel(num_layers, t_blk, unroll, *refs):
    if num_layers > 1:
        (x_ref,      # (T_BLK, B_BLK, Ip)  bf16 time-major input
         wih0_ref,   # (Ip, Hp)            bf16 layer-0 input weight (pre-T)
         whh_ref,    # (L, Hp, Hp)         bf16 recurrent weights (pre-T)
         wih_ref,    # (L-1, Hp, Hp)       bf16 input weights, layers >= 1
         b_ref,      # (L, 1, Hp)          f32  combined biases (b_ih + b_hh)
         fcw_ref,    # (Hp, Op)            bf16 readout weight (pre-T)
         fcb_ref,    # (1, Op)             f32  readout bias
         out_ref,    # (T_BLK, B_BLK, Op)  f32  time-major output
         h_ref,      # (L, B_BLK, Hp)      f32  carried hidden state (VMEM)
         ) = refs
    else:
        (x_ref, wih0_ref, whh_ref, b_ref, fcw_ref, fcb_ref,
         out_ref, h_ref) = refs
        wih_ref = None

    t = pl.program_id(1)

    @pl.when(t == 0)
    def _():
        h_ref[...] = jnp.zeros_like(h_ref)

    bf16 = jnp.bfloat16
    f32 = jnp.float32

    # Hoist loop-invariant small operands (1 vreg-row each) out of the time
    # loop.  Big weight tiles stay as VMEM reads inside the body so Mosaic can
    # choose between keeping them register-resident and re-loading, instead of
    # forcing vreg spills at large H / L.
    biases = [b_ref[i] for i in range(num_layers)]   # each (1, Hp) f32
    fc_bias = fcb_ref[...]                           # (1, Op) f32

    def step(tt, carry):
        x_t = x_ref[tt]                              # (B_BLK, Ip) bf16, aligned tile

        # ----- layer 0: input + recurrent dots summed into one f32 accumulator -----
        h_prev = h_ref[0]
        pre = (jnp.dot(x_t, wih0_ref[...], preferred_element_type=f32)
               + jnp.dot(h_prev.astype(bf16), whh_ref[0],
                         preferred_element_type=f32)
               + biases[0])
        h_new = jnp.tanh(pre)                        # nn.RNNCell nonlinearity
        h_ref[0] = h_new
        act = jax.nn.relu(h_new)                     # DeepRNN activation_fn

        # ----- layers 1 .. L-1 : two dots per cell, no concat temp -----
        for i in range(1, num_layers):
            h_prev = h_ref[i]
            pre = (jnp.dot(act.astype(bf16), wih_ref[i - 1],
                           preferred_element_type=f32)
                   + jnp.dot(h_prev.astype(bf16), whh_ref[i],
                             preferred_element_type=f32)
                   + biases[i])
            h_new = jnp.tanh(pre)
            h_ref[i] = h_new
            act = jax.nn.relu(h_new)

        # ----- identity readout; time-major lane-dense store (whole tile) -----
        out_ref[tt] = (jnp.dot(act.astype(bf16), fcw_ref[...],
                               preferred_element_type=f32)
                       + fc_bias).astype(out_ref.dtype)
        return carry

    lax.fori_loop(0, t_blk, step, 0, unroll=unroll)


@functools.partial(jax.jit, static_argnames=(
    "num_layers", "hidden_size", "output_size", "t_blk", "b_blk"))
def deep_rnn_forward(x_bsi, params, *, num_layers, hidden_size, output_size,
                     t_blk=32, b_blk=128):
    """x_bsi: (B, S, I) float32, batch_first=True. Returns (B, S, O) float32."""
    B, S, I = x_bsi.shape
    H, O, L = hidden_size, output_size, num_layers

    Hp = _round_up(H, 128)          # lane-dense hidden width
    Op = _round_up(O, 128)          # lane-dense output width (unmasked vst)
    Ip = _round_up(I, 128)          # lane-dense input width
    padH = Hp - H

    # Batch tile: multiple of 16 (bf16 sublane tile) and as close to 128 as the
    # batch allows (fills one MXU M-dimension).
    bp16 = _round_up(B, 16)
    b_blk = min(_round_up(b_blk, 16), bp16)
    # v7x megacore: if one >=128-row block would cover the whole padded batch,
    # split it in two so the "parallel" batch axis feeds both TensorCores;
    # each half still fills >= 64 MXU rows.
    if bp16 == b_blk and b_blk >= 128 and b_blk % 32 == 0:
        b_blk //= 2
    Bp = _round_up(B, b_blk)
    n_b = Bp // b_blk

    t_blk = min(t_blk, _round_up(S, 8))
    Sp = _round_up(S, t_blk)
    n_t = Sp // t_blk
    unroll = max(1, min(8, t_blk))

    # ---- time-major bf16 input stream (all padded rows / lanes are zero) ----
    x_tm = jnp.transpose(x_bsi, (1, 0, 2))                               # (S, B, I)
    x_tm = jnp.pad(x_tm, ((0, Sp - S), (0, Bp - B), (0, Ip - I)))
    x_tm = x_tm.astype(jnp.bfloat16)                                     # (Sp, Bp, Ip)

    # ---- weights: pre-transposed, zero-padded, bf16 (MXU-native) ----
    wih0 = jnp.pad(params["w_ih0"].T,
                   ((0, Ip - I), (0, padH))).astype(jnp.bfloat16)        # (Ip, Hp)
    whh = jnp.pad(jnp.transpose(params["w_hhs"], (0, 2, 1)),
                  ((0, 0), (0, padH), (0, padH))).astype(jnp.bfloat16)   # (L, Hp, Hp)
    b_all = jnp.pad(params["b_ih"] + params["b_hh"],
                    ((0, 0), (0, padH)))[:, None, :]                     # (L, 1, Hp)
    fcw = jnp.pad(params["fc_w"].T,
                  ((0, padH), (0, Op - O))).astype(jnp.bfloat16)         # (Hp, Op)
    fcb = jnp.pad(params["fc_b"], (0, Op - O))[None, :]                  # (1, Op)

    args = [x_tm, wih0, whh]
    in_specs = [
        pl.BlockSpec((t_blk, b_blk, Ip), lambda b, t: (t, b, 0)),
        pl.BlockSpec((Ip, Hp), lambda b, t: (0, 0)),
        pl.BlockSpec((L, Hp, Hp), lambda b, t: (0, 0, 0)),
    ]
    if L > 1:
        wih_rest = jnp.pad(jnp.transpose(params["w_ihs"][:L - 1], (0, 2, 1)),
                           ((0, 0), (0, padH), (0, padH))).astype(jnp.bfloat16)
        args.append(wih_rest)                                            # (L-1,Hp,Hp)
        in_specs.append(pl.BlockSpec((L - 1, Hp, Hp), lambda b, t: (0, 0, 0)))
    args += [b_all, fcw, fcb]
    in_specs += [
        pl.BlockSpec((L, 1, Hp), lambda b, t: (0, 0, 0)),
        pl.BlockSpec((Hp, Op), lambda b, t: (0, 0)),
        pl.BlockSpec((1, Op), lambda b, t: (0, 0)),
    ]
    # TODO(synk): once single-buffering via pipeline_mode=pl.Buffered(1) is
    # confirmed supported by the installed Pallas version, apply it to the
    # constant-index weight specs above to halve their VMEM footprint on v7x.
    # TODO(synk): for very large H, tile W_hh/W_ih along the output dimension
    # instead of keeping every layer's full (Hp, Hp) weight resident in VMEM.
    # TODO(synk): if bundle dumps show the vex/vld slot binding, drive the MXU
    # explicitly (pltpu.matmul_push_rhs/acc_lhs/pop) so each weight stays
    # staged across all t_blk timesteps of a grid step.
    # TODO(synk): for tiny-batch latency-bound deployments, interleave cells
    # along the (layer, time) wavefront to hide MXU-pop / tanh latency.

    flops = 2 * Sp * Bp * (Ip * Hp + (2 * L - 1) * Hp * Hp + Hp * Op)
    transcendentals = Sp * Bp * L * Hp
    bytes_accessed = (int(x_tm.size) * 2 + Bp * Sp * Op * 4
                      + sum(int(a.size) * a.dtype.itemsize for a in args[1:]))

    kernel = functools.partial(_deep_rnn_kernel, L, t_blk, unroll)

    out_pad = pl.pallas_call(
        kernel,
        out_shape=jax.ShapeDtypeStruct((Sp, Bp, Op), jnp.float32),
        grid_spec=pltpu.PrefetchScalarGridSpec(
            num_scalar_prefetch=0,
            grid=(n_b, n_t),                     # batch outer, time inner
            in_specs=in_specs,
            out_specs=pl.BlockSpec((t_blk, b_blk, Op), lambda b, t: (t, b, 0)),
            scratch_shapes=[pltpu.VMEM((L, b_blk, Hp), jnp.float32)],
        ),
        compiler_params=pltpu.CompilerParams(
            dimension_semantics=("parallel", "arbitrary"),  # batch ||, time carry
            vmem_limit_bytes=_vmem_limit_bytes(),
        ),
        cost_estimate=pl.CostEstimate(
            flops=int(flops),
            transcendentals=int(transcendentals),
            bytes_accessed=int(bytes_accessed)),
    )(*args)

    out = out_pad[:S, :B, :O]
    return jnp.transpose(out, (1, 0, 2))        # back to (B, S, O), batch_first


def deep_rnn_reference(x_bsi, params, *, num_layers, hidden_size, output_size):
    """Pure-JAX f32 reference mirroring the PyTorch forward exactly."""
    B, S, I = x_bsi.shape
    H, L = hidden_size, num_layers
    h = [jnp.zeros((B, H), jnp.float32) for _ in range(L)]
    outs = []
    for t in range(S):
        x_in = x_bsi[:, t, :]
        new_h = []
        for i in range(L):
            w_ih = params["w_ih0"] if i == 0 else params["w_ihs"][i - 1]
            pre = (x_in @ w_ih.T + params["b_ih"][i]
                   + h[i] @ params["w_hhs"][i].T + params["b_hh"][i])
            h_i = jnp.tanh(pre)          # nn.RNNCell
            new_h.append(h_i)
            x_in = jax.nn.relu(h_i)      # activation_fn
        h = new_h
        outs.append(x_in @ params["fc_w"].T + params["fc_b"])  # identity readout
    return jnp.stack(outs, axis=1)       # (B, S, O)


def init_params(key, input_size, hidden_size, output_size, num_layers):
    I, H, O, L = input_size, hidden_size, output_size, num_layers
    ks = jax.random.split(key, 8)
    bound = 1.0 / jnp.sqrt(H)
    u = lambda k, shape: jax.random.uniform(k, shape, jnp.float32, -bound, bound)
    return {
        "w_ih0": u(ks[0], (H, I)),
        "w_ihs": u(ks[1], (max(L - 1, 1), H, H)),
        "w_hhs": u(ks[2], (L, H, H)),
        "b_ih":  u(ks[3], (L, H)),
        "b_hh":  u(ks[4], (L, H)),
        "fc_w":  u(ks[5], (O, H)),
        "fc_b":  u(ks[6], (O,)),
    }


if __name__ == "__main__":
    # Small, forward-consistent shapes.
    B, S, I, H, O, L = 2, 8, 4, 32, 8, 2

    key = jax.random.PRNGKey(0)
    kx, kp = jax.random.split(key)
    x = jax.random.normal(kx, (B, S, I), jnp.float32)
    params = init_params(kp, I, H, O, L)

    out = deep_rnn_forward(x, params, num_layers=L, hidden_size=H, output_size=O)
    out = jax.block_until_ready(out)

    ref = deep_rnn_reference(x, params, num_layers=L, hidden_size=H, output_size=O)
    assert out.shape == (B, S, O)
    # bf16 matmul operands / streamed input (f32 accumulation) => small,
    # bounded deviation from the full-f32 reference; tanh keeps it contractive.
    assert jnp.allclose(out, ref, atol=5e-2, rtol=5e-2), "mismatch vs. reference"

    print("KERNEL_OK")
</pallas_src>

<mosaic_0001>
module attributes {stable_mosaic.version = 11 : i64} {
  func.func @_deep_rnn_kernel(%arg0: i32, %arg1: i32, %arg2: memref<8x16x128xbf16, #tpu.memory_space<vmem>>, %arg3: memref<128x128xbf16, #tpu.memory_space<vmem>>, %arg4: memref<2x128x128xbf16, #tpu.memory_space<vmem>>, %arg5: memref<1x128x128xbf16, #tpu.memory_space<vmem>>, %arg6: memref<2x1x128xf32, #tpu.memory_space<vmem>>, %arg7: memref<128x128xbf16, #tpu.memory_space<vmem>>, %arg8: memref<1x128xf32, #tpu.memory_space<vmem>>, %arg9: memref<8x16x128xf32, #tpu.memory_space<vmem>>, %arg10: memref<2x16x128xf32, #tpu.memory_space<vmem>>) attributes {dimension_semantics = [#tpu.dimension_semantics<parallel>, #tpu.dimension_semantics<arbitrary>], iteration_bounds = array<i64: 1, 1>, scalar_prefetch = 0 : i64, scratch_operands = 1 : i64, tpu.core_type = #tpu.core_type<tc>, window_params = [{transform_indices = @transform_0, window_bounds = array<i64: 8, 16, 128>}, {pipeline_mode = #tpu.pipeline_mode<synchronous>, transform_indices = @transform_1, window_bounds = array<i64: 128, 128>}, {pipeline_mode = #tpu.pipeline_mode<synchronous>, transform_indices = @transform_2, window_bounds = array<i64: 2, 128, 128>}, {pipeline_mode = #tpu.pipeline_mode<synchronous>, transform_indices = @transform_3, window_bounds = array<i64: 1, 128, 128>}, {pipeline_mode = #tpu.pipeline_mode<synchronous>, transform_indices = @transform_4, window_bounds = array<i64: 2, 1, 128>}, {pipeline_mode = #tpu.pipeline_mode<synchronous>, transform_indices = @transform_5, window_bounds = array<i64: 128, 128>}, {pipeline_mode = #tpu.pipeline_mode<synchronous>, transform_indices = @transform_6, window_bounds = array<i64: 1, 128>}, {transform_indices = @transform_7, window_bounds = array<i64: 8, 16, 128>}]} {
    %c0_i32 = arith.constant 0 : i32
    %0 = arith.cmpi eq, %arg1, %c0_i32 : i32
    %1 = arith.extui %0 : i1 to i32
    %c0_i32_0 = arith.constant 0 : i32
    %2 = arith.cmpi ne, %1, %c0_i32_0 : i32
    scf.if %2 {
      %cst_295 = arith.constant 0.000000e+00 : f32
      %392 = vector.broadcast %cst_295 : f32 to vector<2x16x128xf32>
      %c0_296 = arith.constant 0 : index
      %c0_297 = arith.constant 0 : index
      %c0_298 = arith.constant 0 : index
      %393 = vector.load %arg10[%c0_296, %c0_297, %c0_298] : memref<2x16x128xf32, #tpu.memory_space<vmem>>, vector<2x16x128xf32>
      tpu.vector_store %arg10[%c0_296, %c0_297, %c0_298], %392 {strides = array<i32>} : memref<2x16x128xf32, #tpu.memory_space<vmem>>, vector<2x16x128xf32>,
    } else {
    }
    %c0 = arith.constant 0 : index
    %c0_1 = arith.constant 0 : index
    %c0_2 = arith.constant 0 : index
    %3 = vector.load %arg6[%c0, %c0_1, %c0_2] : memref<2x1x128xf32, #tpu.memory_space<vmem>>, vector<1x1x128xf32>
    %4 = vector.shape_cast %3 : vector<1x1x128xf32> to vector<1x128xf32>
    %c1 = arith.constant 1 : index
    %c0_3 = arith.constant 0 : index
    %c0_4 = arith.constant 0 : index
    %5 = vector.load %arg6[%c1, %c0_3, %c0_4] : memref<2x1x128xf32, #tpu.memory_space<vmem>>, vector<1x1x128xf32>
    %6 = vector.shape_cast %5 : vector<1x1x128xf32> to vector<1x128xf32>
    %c0_5 = arith.constant 0 : index
    %c0_6 = arith.constant 0 : index
    %7 = vector.load %arg8[%c0_5, %c0_6] : memref<1x128xf32, #tpu.memory_space<vmem>>, vector<1x128xf32>
    %c0_i32_7 = arith.constant 0 : i32
    %8 = arith.index_cast %c0_i32_7 : i32 to index
    %c0_8 = arith.constant 0 : index
    %c0_9 = arith.constant 0 : index
    %9 = vector.load %arg2[%8, %c0_8, %c0_9] : memref<8x16x128xbf16, #tpu.memory_space<vmem>>, vector<1x16x128xbf16>
    %10 = vector.shape_cast %9 : vector<1x16x128xbf16> to vector<16x128xbf16>
    %c0_10 = arith.constant 0 : index
    %c0_11 = arith.constant 0 : index
    %c0_12 = arith.constant 0 : index
    %11 = vector.load %arg10[%c0_10, %c0_11, %c0_12] : memref<2x16x128xf32, #tpu.memory_space<vmem>>, vector<1x16x128xf32>
    %12 = vector.shape_cast %11 : vector<1x16x128xf32> to vector<16x128xf32>
    %c0_13 = arith.constant 0 : index
    %c0_14 = arith.constant 0 : index
    %13 = vector.load %arg3[%c0_13, %c0_14] : memref<128x128xbf16, #tpu.memory_space<vmem>>, vector<128x128xbf16>
    %cst = arith.constant dense<0.000000e+00> : vector<16x128xf32>
    %14 = tpu.matmul %10, %13, %cst {dimension_numbers = #tpu.dot_dimension_numbers<[1], [0], [0], [1], [0, 0, 1, 1], [], []>} : vector<16x128xbf16>, vector<128x128xbf16>, vector<16x128xf32> -> vector<16x128xf32>
    %15 = arith.truncf %12 : vector<16x128xf32> to vector<16x128xbf16>
    %c0_15 = arith.constant 0 : index
    %c0_16 = arith.constant 0 : index
    %c0_17 = arith.constant 0 : index
    %16 = vector.load %arg4[%c0_15, %c0_16, %c0_17] : memref<2x128x128xbf16, #tpu.memory_space<vmem>>, vector<1x128x128xbf16>
    %17 = vector.shape_cast %16 : vector<1x128x128xbf16> to vector<128x128xbf16>
    %cst_18 = arith.constant dense<0.000000e+00> : vector<16x128xf32>
    %18 = tpu.matmul %15, %17, %cst_18 {dimension_numbers = #tpu.dot_dimension_numbers<[1], [0], [0], [1], [0, 0, 1, 1], [], []>} : vector<16x128xbf16>, vector<128x128xbf16>, vector<16x128xf32> -> vector<16x128xf32>
    %19 = arith.addf %14, %18 : vector<16x128xf32>
    %20 = vector.broadcast %4 : vector<1x128xf32> to vector<16x128xf32>
    %21 = arith.addf %19, %20 : vector<16x128xf32>
    %22 = math.tanh %21 : vector<16x128xf32>
    %c0_19 = arith.constant 0 : index
    %c0_20 = arith.constant 0 : index
    %c0_21 = arith.constant 0 : index
    %23 = vector.load %arg10[%c0_19, %c0_20, %c0_21] : memref<2x16x128xf32, #tpu.memory_space<vmem>>, vector<1x16x128xf32>
    %24 = vector.shape_cast %23 : vector<1x16x128xf32> to vector<16x128xf32>
    %25 = vector.shape_cast %22 : vector<16x128xf32> to vector<1x16x128xf32>
    tpu.vector_store %arg10[%c0_19, %c0_20, %c0_21], %25 {strides = array<i32>} : memref<2x16x128xf32, #tpu.memory_space<vmem>>, vector<1x16x128xf32>,
    %cst_22 = arith.constant 0.000000e+00 : f32
    %26 = vector.broadcast %cst_22 : f32 to vector<16x128xf32>
    %27 = arith.maximumf %22, %26 : vector<16x128xf32>
    %c1_23 = arith.constant 1 : index
    %c0_24 = arith.constant 0 : index
    %c0_25 = arith.constant 0 : index
    %28 = vector.load %arg10[%c1_23, %c0_24, %c0_25] : memref<2x16x128xf32, #tpu.memory_space<vmem>>, vector<1x16x128xf32>
    %29 = vector.shape_cast %28 : vector<1x16x128xf32> to vector<16x128xf32>
    %30 = arith.truncf %27 : vector<16x128xf32> to vector<16x128xbf16>
    %c0_26 = arith.constant 0 : index
    %c0_27 = arith.constant 0 : index
    %c0_28 = arith.constant 0 : index
    %31 = vector.load %arg5[%c0_26, %c0_27, %c0_28] : memref<1x128x128xbf16, #tpu.memory_space<vmem>>, vector<1x128x128xbf16>
    %32 = vector.shape_cast %31 : vector<1x128x128xbf16> to vector<128x128xbf16>
    %cst_29 = arith.constant dense<0.000000e+00> : vector<16x128xf32>
    %33 = tpu.matmul %30, %32, %cst_29 {dimension_numbers = #tpu.dot_dimension_numbers<[1], [0], [0], [1], [0, 0, 1, 1], [], []>} : vector<16x128xbf16>, vector<128x128xbf16>, vector<16x128xf32> -> vector<16x128xf32>
    %34 = arith.truncf %29 : vector<16x128xf32> to vector<16x128xbf16>
    %c1_30 = arith.constant 1 : index
    %c0_31 = arith.constant 0 : index
    %c0_32 = arith.constant 0 : index
    %35 = vector.load %arg4[%c1_30, %c0_31, %c0_32] : memref<2x128x128xbf16, #tpu.memory_space<vmem>>, vector<1x128x128xbf16>
    %36 = vector.shape_cast %35 : vector<1x128x128xbf16> to vector<128x128xbf16>
    %cst_33 = arith.constant dense<0.000000e+00> : vector<16x128xf32>
    %37 = tpu.matmul %34, %36, %cst_33 {dimension_numbers = #tpu.dot_dimension_numbers<[1], [0], [0], [1], [0, 0, 1, 1], [], []>} : vector<16x128xbf16>, vector<128x128xbf16>, vector<16x128xf32> -> vector<16x128xf32>
    %38 = arith.addf %33, %37 : vector<16x128xf32>
    %39 = vector.broadcast %6 : vector<1x128xf32> to vector<16x128xf32>
    %40 = arith.addf %38, %39 : vector<16x128xf32>
    %41 = math.tanh %40 : vector<16x128xf32>
    %c1_34 = arith.constant 1 : index
    %c0_35 = arith.constant 0 : index
    %c0_36 = arith.constant 0 : index
    %42 = vector.load %arg10[%c1_34, %c0_35, %c0_36] : memref<2x16x128xf32, #tpu.memory_space<vmem>>, vector<1x16x128xf32>
    %43 = vector.shape_cast %42 : vector<1x16x128xf32> to vector<16x128xf32>
    %44 = vector.shape_cast %41 : vector<16x128xf32> to vector<1x16x128xf32>
    tpu.vector_store %arg10[%c1_34, %c0_35, %c0_36], %44 {strides = array<i32>} : memref<2x16x128xf32, #tpu.memory_space<vmem>>, vector<1x16x128xf32>,
    %cst_37 = arith.constant 0.000000e+00 : f32
    %45 = vector.broadcast %cst_37 : f32 to vector<16x128xf32>
    %46 = arith.maximumf %41, %45 : vector<16x128xf32>
    %47 = arith.truncf %46 : vector<16x128xf32> to vector<16x128xbf16>
    %c0_38 = arith.constant 0 : index
    %c0_39 = arith.constant 0 : index
    %48 = vector.load %arg7[%c0_38, %c0_39] : memref<128x128xbf16, #tpu.memory_space<vmem>>, vector<128x128xbf16>
    %cst_40 = arith.constant dense<0.000000e+00> : vector<16x128xf32>
    %49 = tpu.matmul %47, %48, %cst_40 {dimension_numbers = #tpu.dot_dimension_numbers<[1], [0], [0], [1], [0, 0, 1, 1], [], []>} : vector<16x128xbf16>, vector<128x128xbf16>, vector<16x128xf32> -> vector<16x128xf32>
    %50 = vector.broadcast %7 : vector<1x128xf32> to vector<16x128xf32>
    %51 = arith.addf %49, %50 : vector<16x128xf32>
    %52 = arith.index_cast %c0_i32_7 : i32 to index
    %c0_41 = arith.constant 0 : index
    %c0_42 = arith.constant 0 : index
    %53 = vector.load %arg9[%52, %c0_41, %c0_42] : memref<8x16x128xf32, #tpu.memory_space<vmem>>, vector<1x16x128xf32>
    %54 = vector.shape_cast %53 : vector<1x16x128xf32> to vector<16x128xf32>
    %55 = vector.shape_cast %51 : vector<16x128xf32> to vector<1x16x128xf32>
    tpu.vector_store %arg9[%52, %c0_41, %c0_42], %55 {strides = array<i32>} : memref<8x16x128xf32, #tpu.memory_space<vmem>>, vector<1x16x128xf32>,
    %c1_i32 = arith.constant 1 : i32
    %56 = arith.index_cast %c1_i32 : i32 to index
    %c0_43 = arith.constant 0 : index
    %c0_44 = arith.constant 0 : index
    %57 = vector.load %arg2[%56, %c0_43, %c0_44] : memref<8x16x128xbf16, #tpu.memory_space<vmem>>, vector<1x16x128xbf16>
    %58 = vector.shape_cast %57 : vector<1x16x128xbf16> to vector<16x128xbf16>
    %c0_45 = arith.constant 0 : index
    %c0_46 = arith.constant 0 : index
    %c0_47 = arith.constant 0 : index
    %59 = vector.load %arg10[%c0_45, %c0_46, %c0_47] : memref<2x16x128xf32, #tpu.memory_space<vmem>>, vector<1x16x128xf32>
    %60 = vector.shape_cast %59 : vector<1x16x128xf32> to vector<16x128xf32>
    %c0_48 = arith.constant 0 : index
    %c0_49 = arith.constant 0 : index
    %61 = vector.load %arg3[%c0_48, %c0_49] : memref<128x128xbf16, #tpu.memory_space<vmem>>, vector<128x128xbf16>
    %cst_50 = arith.constant dense<0.000000e+00> : vector<16x128xf32>
    %62 = tpu.matmul %58, %61, %cst_50 {dimension_numbers = #tpu.dot_dimension_numbers<[1], [0], [0], [1], [0, 0, 1, 1], [], []>} : vector<16x128xbf16>, vector<128x128xbf16>, vector<16x128xf32> -> vector<16x128xf32>
    %63 = arith.truncf %60 : vector<16x128xf32> to vector<16x128xbf16>
    %c0_51 = arith.constant 0 : index
    %c0_52 = arith.constant 0 : index
    %c0_53 = arith.constant 0 : index
    %64 = vector.load %arg4[%c0_51, %c0_52, %c0_53] : memref<2x128x128xbf16, #tpu.memory_space<vmem>>, vector<1x128x128xbf16>
    %65 = vector.shape_cast %64 : vector<1x128x128xbf16> to vector<128x128xbf16>
    %cst_54 = arith.constant dense<0.000000e+00> : vector<16x128xf32>
    %66 = tpu.matmul %63, %65, %cst_54 {dimension_numbers = #tpu.dot_dimension_numbers<[1], [0], [0], [1], [0, 0, 1, 1], [], []>} : vector<16x128xbf16>, vector<128x128xbf16>, vector<16x128xf32> -> vector<16x128xf32>
    %67 = arith.addf %62, %66 : vector<16x128xf32>
    %68 = vector.broadcast %4 : vector<1x128xf32> to vector<16x128xf32>
    %69 = arith.addf %67, %68 : vector<16x128xf32>
    %70 = math.tanh %69 : vector<16x128xf32>
    %c0_55 = arith.constant 0 : index
    %c0_56 = arith.constant 0 : index
    %c0_57 = arith.constant 0 : index
    %71 = vector.load %arg10[%c0_55, %c0_56, %c0_57] : memref<2x16x128xf32, #tpu.memory_space<vmem>>, vector<1x16x128xf32>
    %72 = vector.shape_cast %71 : vector<1x16x128xf32> to vector<16x128xf32>
    %73 = vector.shape_cast %70 : vector<16x128xf32> to vector<1x16x128xf32>
    tpu.vector_store %arg10[%c0_55, %c0_56, %c0_57], %73 {strides = array<i32>} : memref<2x16x128xf32, #tpu.memory_space<vmem>>, vector<1x16x128xf32>,
    %cst_58 = arith.constant 0.000000e+00 : f32
    %74 = vector.broadcast %cst_58 : f32 to vector<16x128xf32>
    %75 = arith.maximumf %70, %74 : vector<16x128xf32>
    %c1_59 = arith.constant 1 : index
    %c0_60 = arith.constant 0 : index
    %c0_61 = arith.constant 0 : index
    %76 = vector.load %arg10[%c1_59, %c0_60, %c0_61] : memref<2x16x128xf32, #tpu.memory_space<vmem>>, vector<1x16x128xf32>
    %77 = vector.shape_cast %76 : vector<1x16x128xf32> to vector<16x128xf32>
    %78 = arith.truncf %75 : vector<16x128xf32> to vector<16x128xbf16>
    %c0_62 = arith.constant 0 : index
    %c0_63 = arith.constant 0 : index
    %c0_64 = arith.constant 0 : index
    %79 = vector.load %arg5[%c0_62, %c0_63, %c0_64] : memref<1x128x128xbf16, #tpu.memory_space<vmem>>, vector<1x128x128xbf16>
    %80 = vector.shape_cast %79 : vector<1x128x128xbf16> to vector<128x128xbf16>
    %cst_65 = arith.constant dense<0.000000e+00> : vector<16x128xf32>
    %81 = tpu.matmul %78, %80, %cst_65 {dimension_numbers = #tpu.dot_dimension_numbers<[1], [0], [0], [1], [0, 0, 1, 1], [], []>} : vector<16x128xbf16>, vector<128x128xbf16>, vector<16x128xf32> -> vector<16x128xf32>
    %82 = arith.truncf %77 : vector<16x128xf32> to vector<16x128xbf16>
    %c1_66 = arith.constant 1 : index
    %c0_67 = arith.constant 0 : index
    %c0_68 = arith.constant 0 : index
    %83 = vector.load %arg4[%c1_66, %c0_67, %c0_68] : memref<2x128x128xbf16, #tpu.memory_space<vmem>>, vector<1x128x128xbf16>
    %84 = vector.shape_cast %83 : vector<1x128x128xbf16> to vector<128x128xbf16>
    %cst_69 = arith.constant dense<0.000000e+00> : vector<16x128xf32>
    %85 = tpu.matmul %82, %84, %cst_69 {dimension_numbers = #tpu.dot_dimension_numbers<[1], [0], [0], [1], [0, 0, 1, 1], [], []>} : vector<16x128xbf16>, vector<128x128xbf16>, vector<16x128xf32> -> vector<16x128xf32>
    %86 = arith.addf %81, %85 : vector<16x128xf32>
    %87 = vector.broadcast %6 : vector<1x128xf32> to vector<16x128xf32>
    %88 = arith.addf %86, %87 : vector<16x128xf32>
    %89 = math.tanh %88 : vector<16x128xf32>
    %c1_70 = arith.constant 1 : index
    %c0_71 = arith.constant 0 : index
    %c0_72 = arith.constant 0 : index
    %90 = vector.load %arg10[%c1_70, %c0_71, %c0_72] : memref<2x16x128xf32, #tpu.memory_space<vmem>>, vector<1x16x128xf32>
    %91 = vector.shape_cast %90 : vector<1x16x128xf32> to vector<16x128xf32>
    %92 = vector.shape_cast %89 : vector<16x128xf32> to vector<1x16x128xf32>
    tpu.vector_store %arg10[%c1_70, %c0_71, %c0_72], %92 {strides = array<i32>} : memref<2x16x128xf32, #tpu.memory_space<vmem>>, vector<1x16x128xf32>,
    %cst_73 = arith.constant 0.000000e+00 : f32
    %93 = vector.broadcast %cst_73 : f32 to vector<16x128xf32>
    %94 = arith.maximumf %89, %93 : vector<16x128xf32>
    %95 = arith.truncf %94 : vector<16x128xf32> to vector<16x128xbf16>
    %c0_74 = arith.constant 0 : index
    %c0_75 = arith.constant 0 : index
    %96 = vector.load %arg7[%c0_74, %c0_75] : memref<128x128xbf16, #tpu.memory_space<vmem>>, vector<128x128xbf16>
    %cst_76 = arith.constant dense<0.000000e+00> : vector<16x128xf32>
    %97 = tpu.matmul %95, %96, %cst_76 {dimension_numbers = #tpu.dot_dimension_numbers<[1], [0], [0], [1], [0, 0, 1, 1], [], []>} : vector<16x128xbf16>, vector<128x128xbf16>, vector<16x128xf32> -> vector<16x128xf32>
    %98 = vector.broadcast %7 : vector<1x128xf32> to vector<16x128xf32>
    %99 = arith.addf %97, %98 : vector<16x128xf32>
    %100 = arith.index_cast %c1_i32 : i32 to index
    %c0_77 = arith.constant 0 : index
    %c0_78 = arith.constant 0 : index
    %101 = vector.load %arg9[%100, %c0_77, %c0_78] : memref<8x16x128xf32, #tpu.memory_space<vmem>>, vector<1x16x128xf32>
    %102 = vector.shape_cast %101 : vector<1x16x128xf32> to vector<16x128xf32>
    %103 = vector.shape_cast %99 : vector<16x128xf32> to vector<1x16x128xf32>
    tpu.vector_store %arg9[%100, %c0_77, %c0_78], %103 {strides = array<i32>} : memref<8x16x128xf32, #tpu.memory_space<vmem>>, vector<1x16x128xf32>,
    %c2_i32 = arith.constant 2 : i32
    %104 = arith.index_cast %c2_i32 : i32 to index
    %c0_79 = arith.constant 0 : index
    %c0_80 = arith.constant 0 : index
    %105 = vector.load %arg2[%104, %c0_79, %c0_80] : memref<8x16x128xbf16, #tpu.memory_space<vmem>>, vector<1x16x128xbf16>
    %106 = vector.shape_cast %105 : vector<1x16x128xbf16> to vector<16x128xbf16>
    %c0_81 = arith.constant 0 : index
    %c0_82 = arith.constant 0 : index
    %c0_83 = arith.constant 0 : index
    %107 = vector.load %arg10[%c0_81, %c0_82, %c0_83] : memref<2x16x128xf32, #tpu.memory_space<vmem>>, vector<1x16x128xf32>
    %108 = vector.shape_cast %107 : vector<1x16x128xf32> to vector<16x128xf32>
    %c0_84 = arith.constant 0 : index
    %c0_85 = arith.constant 0 : index
    %109 = vector.load %arg3[%c0_84, %c0_85] : memref<128x128xbf16, #tpu.memory_space<vmem>>, vector<128x128xbf16>
    %cst_86 = arith.constant dense<0.000000e+00> : vector<16x128xf32>
    %110 = tpu.matmul %106, %109, %cst_86 {dimension_numbers = #tpu.dot_dimension_numbers<[1], [0], [0], [1], [0, 0, 1, 1], [], []>} : vector<16x128xbf16>, vector<128x128xbf16>, vector<16x128xf32> -> vector<16x128xf32>
    %111 = arith.truncf %108 : vector<16x128xf32> to vector<16x128xbf16>
    %c0_87 = arith.constant 0 : index
    %c0_88 = arith.constant 0 : index
    %c0_89 = arith.constant 0 : index
    %112 = vector.load %arg4[%c0_87, %c0_88, %c0_89] : memref<2x128x128xbf16, #tpu.memory_space<vmem>>, vector<1x128x128xbf16>
    %113 = vector.shape_cast %112 : vector<1x128x128xbf16> to vector<128x128xbf16>
    %cst_90 = arith.constant dense<0.000000e+00> : vector<16x128xf32>
    %114 = tpu.matmul %111, %113, %cst_90 {dimension_numbers = #tpu.dot_dimension_numbers<[1], [0], [0], [1], [0, 0, 1, 1], [], []>} : vector<16x128xbf16>, vector<128x128xbf16>, vector<16x128xf32> -> vector<16x128xf32>
    %115 = arith.addf %110, %114 : vector<16x128xf32>
    %116 = vector.broadcast %4 : vector<1x128xf32> to vector<16x128xf32>
    %117 = arith.addf %115, %116 : vector<16x128xf32>
    %118 = math.tanh %117 : vector<16x128xf32>
    %c0_91 = arith.constant 0 : index
    %c0_92 = arith.constant 0 : index
    %c0_93 = arith.constant 0 : index
    %119 = vector.load %arg10[%c0_91, %c0_92, %c0_93] : memref<2x16x128xf32, #tpu.memory_space<vmem>>, vector<1x16x128xf32>
    %120 = vector.shape_cast %119 : vector<1x16x128xf32> to vector<16x128xf32>
    %121 = vector.shape_cast %118 : vector<16x128xf32> to vector<1x16x128xf32>
    tpu.vector_store %arg10[%c0_91, %c0_92, %c0_93], %121 {strides = array<i32>} : memref<2x16x128xf32, #tpu.memory_space<vmem>>, vector<1x16x128xf32>,
    %cst_94 = arith.constant 0.000000e+00 : f32
    %122 = vector.broadcast %cst_94 : f32 to vector<16x128xf32>
    %123 = arith.maximumf %118, %122 : vector<16x128xf32>
    %c1_95 = arith.constant 1 : index
    %c0_96 = arith.constant 0 : index
    %c0_97 = arith.constant 0 : index
    %124 = vector.load %arg10[%c1_95, %c0_96, %c0_97] : memref<2x16x128xf32, #tpu.memory_space<vmem>>, vector<1x16x128xf32>
    %125 = vector.shape_cast %124 : vector<1x16x128xf32> to vector<16x128xf32>
    %126 = arith.truncf %123 : vector<16x128xf32> to vector<16x128xbf16>
    %c0_98 = arith.constant 0 : index
    %c0_99 = arith.constant 0 : index
    %c0_100 = arith.constant 0 : index
    %127 = vector.load %arg5[%c0_98, %c0_99, %c0_100] : memref<1x128x128xbf16, #tpu.memory_space<vmem>>, vector<1x128x128xbf16>
    %128 = vector.shape_cast %127 : vector<1x128x128xbf16> to vector<128x128xbf16>
    %cst_101 = arith.constant dense<0.000000e+00> : vector<16x128xf32>
    %129 = tpu.matmul %126, %128, %cst_101 {dimension_numbers = #tpu.dot_dimension_numbers<[1], [0], [0], [1], [0, 0, 1, 1], [], []>} : vector<16x128xbf16>, vector<128x128xbf16>, vector<16x128xf32> -> vector<16x128xf32>
    %130 = arith.truncf %125 : vector<16x128xf32> to vector<16x128xbf16>
    %c1_102 = arith.constant 1 : index
    %c0_103 = arith.constant 0 : index
    %c0_104 = arith.constant 0 : index
    %131 = vector.load %arg4[%c1_102, %c0_103, %c0_104] : memref<2x128x128xbf16, #tpu.memory_space<vmem>>, vector<1x128x128xbf16>
    %132 = vector.shape_cast %131 : vector<1x128x128xbf16> to vector<128x128xbf16>
    %cst_105 = arith.constant dense<0.000000e+00> : vector<16x128xf32>
    %133 = tpu.matmul %130, %132, %cst_105 {dimension_numbers = #tpu.dot_dimension_numbers<[1], [0], [0], [1], [0, 0, 1, 1], [], []>} : vector<16x128xbf16>, vector<128x128xbf16>, vector<16x128xf32> -> vector<16x128xf32>
    %134 = arith.addf %129, %133 : vector<16x128xf32>
    %135 = vector.broadcast %6 : vector<1x128xf32> to vector<16x128xf32>
    %136 = arith.addf %134, %135 : vector<16x128xf32>
    %137 = math.tanh %136 : vector<16x128xf32>
    %c1_106 = arith.constant 1 : index
    %c0_107 = arith.constant 0 : index
    %c0_108 = arith.constant 0 : index
    %138 = vector.load %arg10[%c1_106, %c0_107, %c0_108] : memref<2x16x128xf32, #tpu.memory_space<vmem>>, vector<1x16x128xf32>
    %139 = vector.shape_cast %138 : vector<1x16x128xf32> to vector<16x128xf32>
    %140 = vector.shape_cast %137 : vector<16x128xf32> to vector<1x16x128xf32>
    tpu.vector_store %arg10[%c1_106, %c0_107, %c0_108], %140 {strides = array<i32>} : memref<2x16x128xf32, #tpu.memory_space<vmem>>, vector<1x16x128xf32>,
    %cst_109 = arith.constant 0.000000e+00 : f32
    %141 = vector.broadcast %cst_109 : f32 to vector<16x128xf32>
    %142 = arith.maximumf %137, %141 : vector<16x128xf32>
    %143 = arith.truncf %142 : vector<16x128xf32> to vector<16x128xbf16>
    %c0_110 = arith.constant 0 : index
    %c0_111 = arith.constant 0 : index
    %144 = vector.load %arg7[%c0_110, %c0_111] : memref<128x128xbf16, #tpu.memory_space<vmem>>, vector<128x128xbf16>
    %cst_112 = arith.constant dense<0.000000e+00> : vector<16x128xf32>
    %145 = tpu.matmul %143, %144, %cst_112 {dimension_numbers = #tpu.dot_dimension_numbers<[1], [0], [0], [1], [0, 0, 1, 1], [], []>} : vector<16x128xbf16>, vector<128x128xbf16>, vector<16x128xf32> -> vector<16x128xf32>
    %146 = vector.broadcast %7 : vector<1x128xf32> to vector<16x128xf32>
    %147 = arith.addf %145, %146 : vector<16x128xf32>
    %148 = arith.index_cast %c2_i32 : i32 to index
    %c0_113 = arith.constant 0 : index
    %c0_114 = arith.constant 0 : index
    %149 = vector.load %arg9[%148, %c0_113, %c0_114] : memref<8x16x128xf32, #tpu.memory_space<vmem>>, vector<1x16x128xf32>
    %150 = vector.shape_cast %149 : vector<1x16x128xf32> to vector<16x128xf32>
    %151 = vector.shape_cast %147 : vector<16x128xf32> to vector<1x16x128xf32>
    tpu.vector_store %arg9[%148, %c0_113, %c0_114], %151 {strides = array<i32>} : memref<8x16x128xf32, #tpu.memory_space<vmem>>, vector<1x16x128xf32>,
    %c3_i32 = arith.constant 3 : i32
    %152 = arith.index_cast %c3_i32 : i32 to index
    %c0_115 = arith.constant 0 : index
    %c0_116 = arith.constant 0 : index
    %153 = vector.load %arg2[%152, %c0_115, %c0_116] : memref<8x16x128xbf16, #tpu.memory_space<vmem>>, vector<1x16x128xbf16>
    %154 = vector.shape_cast %153 : vector<1x16x128xbf16> to vector<16x128xbf16>
    %c0_117 = arith.constant 0 : index
    %c0_118 = arith.constant 0 : index
    %c0_119 = arith.constant 0 : index
    %155 = vector.load %arg10[%c0_117, %c0_118, %c0_119] : memref<2x16x128xf32, #tpu.memory_space<vmem>>, vector<1x16x128xf32>
    %156 = vector.shape_cast %155 : vector<1x16x128xf32> to vector<16x128xf32>
    %c0_120 = arith.constant 0 : index
    %c0_121 = arith.constant 0 : index
    %157 = vector.load %arg3[%c0_120, %c0_121] : memref<128x128xbf16, #tpu.memory_space<vmem>>, vector<128x128xbf16>
    %cst_122 = arith.constant dense<0.000000e+00> : vector<16x128xf32>
    %158 = tpu.matmul %154, %157, %cst_122 {dimension_numbers = #tpu.dot_dimension_numbers<[1], [0], [0], [1], [0, 0, 1, 1], [], []>} : vector<16x128xbf16>, vector<128x128xbf16>, vector<16x128xf32> -> vector<16x128xf32>
    %159 = arith.truncf %156 : vector<16x128xf32> to vector<16x128xbf16>
    %c0_123 = arith.constant 0 : index
    %c0_124 = arith.constant 0 : index
    %c0_125 = arith.constant 0 : index
    %160 = vector.load %arg4[%c0_123, %c0_124, %c0_125] : memref<2x128x128xbf16, #tpu.memory_space<vmem>>, vector<1x128x128xbf16>
    %161 = vector.shape_cast %160 : vector<1x128x128xbf16> to vector<128x128xbf16>
    %cst_126 = arith.constant dense<0.000000e+00> : vector<16x128xf32>
    %162 = tpu.matmul %159, %161, %cst_126 {dimension_numbers = #tpu.dot_dimension_numbers<[1], [0], [0], [1], [0, 0, 1, 1], [], []>} : vector<16x128xbf16>, vector<128x128xbf16>, vector<16x128xf32> -> vector<16x128xf32>
    %163 = arith.addf %158, %162 : vector<16x128xf32>
    %164 = vector.broadcast %4 : vector<1x128xf32> to vector<16x128xf32>
    %165 = arith.addf %163, %164 : vector<16x128xf32>
    %166 = math.tanh %165 : vector<16x128xf32>
    %c0_127 = arith.constant 0 : index
    %c0_128 = arith.constant 0 : index
    %c0_129 = arith.constant 0 : index
    %167 = vector.load %arg10[%c0_127, %c0_128, %c0_129] : memref<2x16x128xf32, #tpu.memory_space<vmem>>, vector<1x16x128xf32>
    %168 = vector.shape_cast %167 : vector<1x16x128xf32> to vector<16x128xf32>
    %169 = vector.shape_cast %166 : vector<16x128xf32> to vector<1x16x128xf32>
    tpu.vector_store %arg10[%c0_127, %c0_128, %c0_129], %169 {strides = array<i32>} : memref<2x16x128xf32, #tpu.memory_space<vmem>>, vector<1x16x128xf32>,
    %cst_130 = arith.constant 0.000000e+00 : f32
    %170 = vector.broadcast %cst_130 : f32 to vector<16x128xf32>
    %171 = arith.maximumf %166, %170 : vector<16x128xf32>
    %c1_131 = arith.constant 1 : index
    %c0_132 = arith.constant 0 : index
    %c0_133 = arith.constant 0 : index
    %172 = vector.load %arg10[%c1_131, %c0_132, %c0_133] : memref<2x16x128xf32, #tpu.memory_space<vmem>>, vector<1x16x128xf32>
    %173 = vector.shape_cast %172 : vector<1x16x128xf32> to vector<16x128xf32>
    %174 = arith.truncf %171 : vector<16x128xf32> to vector<16x128xbf16>
    %c0_134 = arith.constant 0 : index
    %c0_135 = arith.constant 0 : index
    %c0_136 = arith.constant 0 : index
    %175 = vector.load %arg5[%c0_134, %c0_135, %c0_136] : memref<1x128x128xbf16, #tpu.memory_space<vmem>>, vector<1x128x128xbf16>
    %176 = vector.shape_cast %175 : vector<1x128x128xbf16> to vector<128x128xbf16>
    %cst_137 = arith.constant dense<0.000000e+00> : vector<16x128xf32>
    %177 = tpu.matmul %174, %176, %cst_137 {dimension_numbers = #tpu.dot_dimension_numbers<[1], [0], [0], [1], [0, 0, 1, 1], [], []>} : vector<16x128xbf16>, vector<128x128xbf16>, vector<16x128xf32> -> vector<16x128xf32>
    %178 = arith.truncf %173 : vector<16x128xf32> to vector<16x128xbf16>
    %c1_138 = arith.constant 1 : index
    %c0_139 = arith.constant 0 : index
    %c0_140 = arith.constant 0 : index
    %179 = vector.load %arg4[%c1_138, %c0_139, %c0_140] : memref<2x128x128xbf16, #tpu.memory_space<vmem>>, vector<1x128x128xbf16>
    %180 = vector.shape_cast %179 : vector<1x128x128xbf16> to vector<128x128xbf16>
    %cst_141 = arith.constant dense<0.000000e+00> : vector<16x128xf32>
    %181 = tpu.matmul %178, %180, %cst_141 {dimension_numbers = #tpu.dot_dimension_numbers<[1], [0], [0], [1], [0, 0, 1, 1], [], []>} : vector<16x128xbf16>, vector<128x128xbf16>, vector<16x128xf32> -> vector<16x128xf32>
    %182 = arith.addf %177, %181 : vector<16x128xf32>
    %183 = vector.broadcast %6 : vector<1x128xf32> to vector<16x128xf32>
    %184 = arith.addf %182, %183 : vector<16x128xf32>
    %185 = math.tanh %184 : vector<16x128xf32>
    %c1_142 = arith.constant 1 : index
    %c0_143 = arith.constant 0 : index
    %c0_144 = arith.constant 0 : index
    %186 = vector.load %arg10[%c1_142, %c0_143, %c0_144] : memref<2x16x128xf32, #tpu.memory_space<vmem>>, vector<1x16x128xf32>
    %187 = vector.shape_cast %186 : vector<1x16x128xf32> to vector<16x128xf32>
    %188 = vector.shape_cast %185 : vector<16x128xf32> to vector<1x16x128xf32>
    tpu.vector_store %arg10[%c1_142, %c0_143, %c0_144], %188 {strides = array<i32>} : memref<2x16x128xf32, #tpu.memory_space<vmem>>, vector<1x16x128xf32>,
    %cst_145 = arith.constant 0.000000e+00 : f32
    %189 = vector.broadcast %cst_145 : f32 to vector<16x128xf32>
    %190 = arith.maximumf %185, %189 : vector<16x128xf32>
    %191 = arith.truncf %190 : vector<16x128xf32> to vector<16x128xbf16>
    %c0_146 = arith.constant 0 : index
    %c0_147 = arith.constant 0 : index
    %192 = vector.load %arg7[%c0_146, %c0_147] : memref<128x128xbf16, #tpu.memory_space<vmem>>, vector<128x128xbf16>
    %cst_148 = arith.constant dense<0.000000e+00> : vector<16x128xf32>
    %193 = tpu.matmul %191, %192, %cst_148 {dimension_numbers = #tpu.dot_dimension_numbers<[1], [0], [0], [1], [0, 0, 1, 1], [], []>} : vector<16x128xbf16>, vector<128x128xbf16>, vector<16x128xf32> -> vector<16x128xf32>
    %194 = vector.broadcast %7 : vector<1x128xf32> to vector<16x128xf32>
    %195 = arith.addf %193, %194 : vector<16x128xf32>
    %196 = arith.index_cast %c3_i32 : i32 to index
    %c0_149 = arith.constant 0 : index
    %c0_150 = arith.constant 0 : index
    %197 = vector.load %arg9[%196, %c0_149, %c0_150] : memref<8x16x128xf32, #tpu.memory_space<vmem>>, vector<1x16x128xf32>
    %198 = vector.shape_cast %197 : vector<1x16x128xf32> to vector<16x128xf32>
    %199 = vector.shape_cast %195 : vector<16x128xf32> to vector<1x16x128xf32>
    tpu.vector_store %arg9[%196, %c0_149, %c0_150], %199 {strides = array<i32>} : memref<8x16x128xf32, #tpu.memory_space<vmem>>, vector<1x16x128xf32>,
    %c4_i32 = arith.constant 4 : i32
    %200 = arith.index_cast %c4_i32 : i32 to index
    %c0_151 = arith.constant 0 : index
    %c0_152 = arith.constant 0 : index
    %201 = vector.load %arg2[%200, %c0_151, %c0_152] : memref<8x16x128xbf16, #tpu.memory_space<vmem>>, vector<1x16x128xbf16>
    %202 = vector.shape_cast %201 : vector<1x16x128xbf16> to vector<16x128xbf16>
    %c0_153 = arith.constant 0 : index
    %c0_154 = arith.constant 0 : index
    %c0_155 = arith.constant 0 : index
    %203 = vector.load %arg10[%c0_153, %c0_154, %c0_155] : memref<2x16x128xf32, #tpu.memory_space<vmem>>, vector<1x16x128xf32>
    %204 = vector.shape_cast %203 : vector<1x16x128xf32> to vector<16x128xf32>
    %c0_156 = arith.constant 0 : index
    %c0_157 = arith.constant 0 : index
    %205 = vector.load %arg3[%c0_156, %c0_157] : memref<128x128xbf16, #tpu.memory_space<vmem>>, vector<128x128xbf16>
    %cst_158 = arith.constant dense<0.000000e+00> : vector<16x128xf32>
    %206 = tpu.matmul %202, %205, %cst_158 {dimension_numbers = #tpu.dot_dimension_numbers<[1], [0], [0], [1], [0, 0, 1, 1], [], []>} : vector<16x128xbf16>, vector<128x128xbf16>, vector<16x128xf32> -> vector<16x128xf32>
    %207 = arith.truncf %204 : vector<16x128xf32> to vector<16x128xbf16>
    %c0_159 = arith.constant 0 : index
    %c0_160 = arith.constant 0 : index
    %c0_161 = arith.constant 0 : index
    %208 = vector.load %arg4[%c0_159, %c0_160, %c0_161] : memref<2x128x128xbf16, #tpu.memory_space<vmem>>, vector<1x128x128xbf16>
    %209 = vector.shape_cast %208 : vector<1x128x128xbf16> to vector<128x128xbf16>
    %cst_162 = arith.constant dense<0.000000e+00> : vector<16x128xf32>
    %210 = tpu.matmul %207, %209, %cst_162 {dimension_numbers = #tpu.dot_dimension_numbers<[1], [0], [0], [1], [0, 0, 1, 1], [], []>} : vector<16x128xbf16>, vector<128x128xbf16>, vector<16x128xf32> -> vector<16x128xf32>
    %211 = arith.addf %206, %210 : vector<16x128xf32>
    %212 = vector.broadcast %4 : vector<1x128xf32> to vector<16x128xf32>
    %213 = arith.addf %211, %212 : vector<16x128xf32>
    %214 = math.tanh %213 : vector<16x128xf32>
    %c0_163 = arith.constant 0 : index
    %c0_164 = arith.constant 0 : index
    %c0_165 = arith.constant 0 : index
    %215 = vector.load %arg10[%c0_163, %c0_164, %c0_165] : memref<2x16x128xf32, #tpu.memory_space<vmem>>, vector<1x16x128xf32>
    %216 = vector.shape_cast %215 : vector<1x16x128xf32> to vector<16x128xf32>
    %217 = vector.shape_cast %214 : vector<16x128xf32> to vector<1x16x128xf32>
    tpu.vector_store %arg10[%c0_163, %c0_164, %c0_165], %217 {strides = array<i32>} : memref<2x16x128xf32, #tpu.memory_space<vmem>>, vector<1x16x128xf32>,
    %cst_166 = arith.constant 0.000000e+00 : f32
    %218 = vector.broadcast %cst_166 : f32 to vector<16x128xf32>
    %219 = arith.maximumf %214, %218 : vector<16x128xf32>
    %c1_167 = arith.constant 1 : index
    %c0_168 = arith.constant 0 : index
    %c0_169 = arith.constant 0 : index
    %220 = vector.load %arg10[%c1_167, %c0_168, %c0_169] : memref<2x16x128xf32, #tpu.memory_space<vmem>>, vector<1x16x128xf32>
    %221 = vector.shape_cast %220 : vector<1x16x128xf32> to vector<16x128xf32>
    %222 = arith.truncf %219 : vector<16x128xf32> to vector<16x128xbf16>
    %c0_170 = arith.constant 0 : index
    %c0_171 = arith.constant 0 : index
    %c0_172 = arith.constant 0 : index
    %223 = vector.load %arg5[%c0_170, %c0_171, %c0_172] : memref<1x128x128xbf16, #tpu.memory_space<vmem>>, vector<1x128x128xbf16>
    %224 = vector.shape_cast %223 : vector<1x128x128xbf16> to vector<128x128xbf16>
    %cst_173 = arith.constant dense<0.000000e+00> : vector<16x128xf32>
    %225 = tpu.matmul %222, %224, %cst_173 {dimension_numbers = #tpu.dot_dimension_numbers<[1], [0], [0], [1], [0, 0, 1, 1], [], []>} : vector<16x128xbf16>, vector<128x128xbf16>, vector<16x128xf32> -> vector<16x128xf32>
    %226 = arith.truncf %221 : vector<16x128xf32> to vector<16x128xbf16>
    %c1_174 = arith.constant 1 : index
    %c0_175 = arith.constant 0 : index
    %c0_176 = arith.constant 0 : index
    %227 = vector.load %arg4[%c1_174, %c0_175, %c0_176] : memref<2x128x128xbf16, #tpu.memory_space<vmem>>, vector<1x128x128xbf16>
    %228 = vector.shape_cast %227 : vector<1x128x128xbf16> to vector<128x128xbf16>
    %cst_177 = arith.constant dense<0.000000e+00> : vector<16x128xf32>
    %229 = tpu.matmul %226, %228, %cst_177 {dimension_numbers = #tpu.dot_dimension_numbers<[1], [0], [0], [1], [0, 0, 1, 1], [], []>} : vector<16x128xbf16>, vector<128x128xbf16>, vector<16x128xf32> -> vector<16x128xf32>
    %230 = arith.addf %225, %229 : vector<16x128xf32>
    %231 = vector.broadcast %6 : vector<1x128xf32> to vector<16x128xf32>
    %232 = arith.addf %230, %231 : vector<16x128xf32>
    %233 = math.tanh %232 : vector<16x128xf32>
    %c1_178 = arith.constant 1 : index
    %c0_179 = arith.constant 0 : index
    %c0_180 = arith.constant 0 : index
    %234 = vector.load %arg10[%c1_178, %c0_179, %c0_180] : memref<2x16x128xf32, #tpu.memory_space<vmem>>, vector<1x16x128xf32>
    %235 = vector.shape_cast %234 : vector<1x16x128xf32> to vector<16x128xf32>
    %236 = vector.shape_cast %233 : vector<16x128xf32> to vector<1x16x128xf32>
    tpu.vector_store %arg10[%c1_178, %c0_179, %c0_180], %236 {strides = array<i32>} : memref<2x16x128xf32, #tpu.memory_space<vmem>>, vector<1x16x128xf32>,
    %cst_181 = arith.constant 0.000000e+00 : f32
    %237 = vector.broadcast %cst_181 : f32 to vector<16x128xf32>
    %238 = arith.maximumf %233, %237 : vector<16x128xf32>
    %239 = arith.truncf %238 : vector<16x128xf32> to vector<16x128xbf16>
    %c0_182 = arith.constant 0 : index
    %c0_183 = arith.constant 0 : index
    %240 = vector.load %arg7[%c0_182, %c0_183] : memref<128x128xbf16, #tpu.memory_space<vmem>>, vector<128x128xbf16>
    %cst_184 = arith.constant dense<0.000000e+00> : vector<16x128xf32>
    %241 = tpu.matmul %239, %240, %cst_184 {dimension_numbers = #tpu.dot_dimension_numbers<[1], [0], [0], [1], [0, 0, 1, 1], [], []>} : vector<16x128xbf16>, vector<128x128xbf16>, vector<16x128xf32> -> vector<16x128xf32>
    %242 = vector.broadcast %7 : vector<1x128xf32> to vector<16x128xf32>
    %243 = arith.addf %241, %242 : vector<16x128xf32>
    %244 = arith.index_cast %c4_i32 : i32 to index
    %c0_185 = arith.constant 0 : index
    %c0_186 = arith.constant 0 : index
    %245 = vector.load %arg9[%244, %c0_185, %c0_186] : memref<8x16x128xf32, #tpu.memory_space<vmem>>, vector<1x16x128xf32>
    %246 = vector.shape_cast %245 : vector<1x16x128xf32> to vector<16x128xf32>
    %247 = vector.shape_cast %243 : vector<16x128xf32> to vector<1x16x128xf32>
    tpu.vector_store %arg9[%244, %c0_185, %c0_186], %247 {strides = array<i32>} : memref<8x16x128xf32, #tpu.memory_space<vmem>>, vector<1x16x128xf32>,
    %c5_i32 = arith.constant 5 : i32
    %248 = arith.index_cast %c5_i32 : i32 to index
    %c0_187 = arith.constant 0 : index
    %c0_188 = arith.constant 0 : index
    %249 = vector.load %arg2[%248, %c0_187, %c0_188] : memref<8x16x128xbf16, #tpu.memory_space<vmem>>, vector<1x16x128xbf16>
    %250 = vector.shape_cast %249 : vector<1x16x128xbf16> to vector<16x128xbf16>
    %c0_189 = arith.constant 0 : index
    %c0_190 = arith.constant 0 : index
    %c0_191 = arith.constant 0 : index
    %251 = vector.load %arg10[%c0_189, %c0_190, %c0_191] : memref<2x16x128xf32, #tpu.memory_space<vmem>>, vector<1x16x128xf32>
    %252 = vector.shape_cast %251 : vector<1x16x128xf32> to vector<16x128xf32>
    %c0_192 = arith.constant 0 : index
    %c0_193 = arith.constant 0 : index
    %253 = vector.load %arg3[%c0_192, %c0_193] : memref<128x128xbf16, #tpu.memory_space<vmem>>, vector<128x128xbf16>
    %cst_194 = arith.constant dense<0.000000e+00> : vector<16x128xf32>
    %254 = tpu.matmul %250, %253, %cst_194 {dimension_numbers = #tpu.dot_dimension_numbers<[1], [0], [0], [1], [0, 0, 1, 1], [], []>} : vector<16x128xbf16>, vector<128x128xbf16>, vector<16x128xf32> -> vector<16x128xf32>
    %255 = arith.truncf %252 : vector<16x128xf32> to vector<16x128xbf16>
    %c0_195 = arith.constant 0 : index
    %c0_196 = arith.constant 0 : index
    %c0_197 = arith.constant 0 : index
    %256 = vector.load %arg4[%c0_195, %c0_196, %c0_197] : memref<2x128x128xbf16, #tpu.memory_space<vmem>>, vector<1x128x128xbf16>
    %257 = vector.shape_cast %256 : vector<1x128x128xbf16> to vector<128x128xbf16>
    %cst_198 = arith.constant dense<0.000000e+00> : vector<16x128xf32>
    %258 = tpu.matmul %255, %257, %cst_198 {dimension_numbers = #tpu.dot_dimension_numbers<[1], [0], [0], [1], [0, 0, 1, 1], [], []>} : vector<16x128xbf16>, vector<128x128xbf16>, vector<16x128xf32> -> vector<16x128xf32>
    %259 = arith.addf %254, %258 : vector<16x128xf32>
    %260 = vector.broadcast %4 : vector<1x128xf32> to vector<16x128xf32>
    %261 = arith.addf %259, %260 : vector<16x128xf32>
    %262 = math.tanh %261 : vector<16x128xf32>
    %c0_199 = arith.constant 0 : index
    %c0_200 = arith.constant 0 : index
    %c0_201 = arith.constant 0 : index
    %263 = vector.load %arg10[%c0_199, %c0_200, %c0_201] : memref<2x16x128xf32, #tpu.memory_space<vmem>>, vector<1x16x128xf32>
    %264 = vector.shape_cast %263 : vector<1x16x128xf32> to vector<16x128xf32>
    %265 = vector.shape_cast %262 : vector<16x128xf32> to vector<1x16x128xf32>
    tpu.vector_store %arg10[%c0_199, %c0_200, %c0_201], %265 {strides = array<i32>} : memref<2x16x128xf32, #tpu.memory_space<vmem>>, vector<1x16x128xf32>,
    %cst_202 = arith.constant 0.000000e+00 : f32
    %266 = vector.broadcast %cst_202 : f32 to vector<16x128xf32>
    %267 = arith.maximumf %262, %266 : vector<16x128xf32>
    %c1_203 = arith.constant 1 : index
    %c0_204 = arith.constant 0 : index
    %c0_205 = arith.constant 0 : index
    %268 = vector.load %arg10[%c1_203, %c0_204, %c0_205] : memref<2x16x128xf32, #tpu.memory_space<vmem>>, vector<1x16x128xf32>
    %269 = vector.shape_cast %268 : vector<1x16x128xf32> to vector<16x128xf32>
    %270 = arith.truncf %267 : vector<16x128xf32> to vector<16x128xbf16>
    %c0_206 = arith.constant 0 : index
    %c0_207 = arith.constant 0 : index
    %c0_208 = arith.constant 0 : index
    %271 = vector.load %arg5[%c0_206, %c0_207, %c0_208] : memref<1x128x128xbf16, #tpu.memory_space<vmem>>, vector<1x128x128xbf16>
    %272 = vector.shape_cast %271 : vector<1x128x128xbf16> to vector<128x128xbf16>
    %cst_209 = arith.constant dense<0.000000e+00> : vector<16x128xf32>
    %273 = tpu.matmul %270, %272, %cst_209 {dimension_numbers = #tpu.dot_dimension_numbers<[1], [0], [0], [1], [0, 0, 1, 1], [], []>} : vector<16x128xbf16>, vector<128x128xbf16>, vector<16x128xf32> -> vector<16x128xf32>
    %274 = arith.truncf %269 : vector<16x128xf32> to vector<16x128xbf16>
    %c1_210 = arith.constant 1 : index
    %c0_211 = arith.constant 0 : index
    %c0_212 = arith.constant 0 : index
    %275 = vector.load %arg4[%c1_210, %c0_211, %c0_212] : memref<2x128x128xbf16, #tpu.memory_space<vmem>>, vector<1x128x128xbf16>
    %276 = vector.shape_cast %275 : vector<1x128x128xbf16> to vector<128x128xbf16>
    %cst_213 = arith.constant dense<0.000000e+00> : vector<16x128xf32>
    %277 = tpu.matmul %274, %276, %cst_213 {dimension_numbers = #tpu.dot_dimension_numbers<[1], [0], [0], [1], [0, 0, 1, 1], [], []>} : vector<16x128xbf16>, vector<128x128xbf16>, vector<16x128xf32> -> vector<16x128xf32>
    %278 = arith.addf %273, %277 : vector<16x128xf32>
    %279 = vector.broadcast %6 : vector<1x128xf32> to vector<16x128xf32>
    %280 = arith.addf %278, %279 : vector<16x128xf32>
    %281 = math.tanh %280 : vector<16x128xf32>
    %c1_214 = arith.constant 1 : index
    %c0_215 = arith.constant 0 : index
    %c0_216 = arith.constant 0 : index
    %282 = vector.load %arg10[%c1_214, %c0_215, %c0_216] : memref<2x16x128xf32, #tpu.memory_space<vmem>>, vector<1x16x128xf32>
    %283 = vector.shape_cast %282 : vector<1x16x128xf32> to vector<16x128xf32>
    %284 = vector.shape_cast %281 : vector<16x128xf32> to vector<1x16x128xf32>
    tpu.vector_store %arg10[%c1_214, %c0_215, %c0_216], %284 {strides = array<i32>} : memref<2x16x128xf32, #tpu.memory_space<vmem>>, vector<1x16x128xf32>,
    %cst_217 = arith.constant 0.000000e+00 : f32
    %285 = vector.broadcast %cst_217 : f32 to vector<16x128xf32>
    %286 = arith.maximumf %281, %285 : vector<16x128xf32>
    %287 = arith.truncf %286 : vector<16x128xf32> to vector<16x128xbf16>
    %c0_218 = arith.constant 0 : index
    %c0_219 = arith.constant 0 : index
    %288 = vector.load %arg7[%c0_218, %c0_219] : memref<128x128xbf16, #tpu.memory_space<vmem>>, vector<128x128xbf16>
    %cst_220 = arith.constant dense<0.000000e+00> : vector<16x128xf32>
    %289 = tpu.matmul %287, %288, %cst_220 {dimension_numbers = #tpu.dot_dimension_numbers<[1], [0], [0], [1], [0, 0, 1, 1], [], []>} : vector<16x128xbf16>, vector<128x128xbf16>, vector<16x128xf32> -> vector<16x128xf32>
    %290 = vector.broadcast %7 : vector<1x128xf32> to vector<16x128xf32>
    %291 = arith.addf %289, %290 : vector<16x128xf32>
    %292 = arith.index_cast %c5_i32 : i32 to index
    %c0_221 = arith.constant 0 : index
    %c0_222 = arith.constant 0 : index
    %293 = vector.load %arg9[%292, %c0_221, %c0_222] : memref<8x16x128xf32, #tpu.memory_space<vmem>>, vector<1x16x128xf32>
    %294 = vector.shape_cast %293 : vector<1x16x128xf32> to vector<16x128xf32>
    %295 = vector.shape_cast %291 : vector<16x128xf32> to vector<1x16x128xf32>
    tpu.vector_store %arg9[%292, %c0_221, %c0_222], %295 {strides = array<i32>} : memref<8x16x128xf32, #tpu.memory_space<vmem>>, vector<1x16x128xf32>,
    %c6_i32 = arith.constant 6 : i32
    %296 = arith.index_cast %c6_i32 : i32 to index
    %c0_223 = arith.constant 0 : index
    %c0_224 = arith.constant 0 : index
    %297 = vector.load %arg2[%296, %c0_223, %c0_224] : memref<8x16x128xbf16, #tpu.memory_space<vmem>>, vector<1x16x128xbf16>
    %298 = vector.shape_cast %297 : vector<1x16x128xbf16> to vector<16x128xbf16>
    %c0_225 = arith.constant 0 : index
    %c0_226 = arith.constant 0 : index
    %c0_227 = arith.constant 0 : index
    %299 = vector.load %arg10[%c0_225, %c0_226, %c0_227] : memref<2x16x128xf32, #tpu.memory_space<vmem>>, vector<1x16x128xf32>
    %300 = vector.shape_cast %299 : vector<1x16x128xf32> to vector<16x128xf32>
    %c0_228 = arith.constant 0 : index
    %c0_229 = arith.constant 0 : index
    %301 = vector.load %arg3[%c0_228, %c0_229] : memref<128x128xbf16, #tpu.memory_space<vmem>>, vector<128x128xbf16>
    %cst_230 = arith.constant dense<0.000000e+00> : vector<16x128xf32>
    %302 = tpu.matmul %298, %301, %cst_230 {dimension_numbers = #tpu.dot_dimension_numbers<[1], [0], [0], [1], [0, 0, 1, 1], [], []>} : vector<16x128xbf16>, vector<128x128xbf16>, vector<16x128xf32> -> vector<16x128xf32>
    %303 = arith.truncf %300 : vector<16x128xf32> to vector<16x128xbf16>
    %c0_231 = arith.constant 0 : index
    %c0_232 = arith.constant 0 : index
    %c0_233 = arith.constant 0 : index
    %304 = vector.load %arg4[%c0_231, %c0_232, %c0_233] : memref<2x128x128xbf16, #tpu.memory_space<vmem>>, vector<1x128x128xbf16>
    %305 = vector.shape_cast %304 : vector<1x128x128xbf16> to vector<128x128xbf16>
    %cst_234 = arith.constant dense<0.000000e+00> : vector<16x128xf32>
    %306 = tpu.matmul %303, %305, %cst_234 {dimension_numbers = #tpu.dot_dimension_numbers<[1], [0], [0], [1], [0, 0, 1, 1], [], []>} : vector<16x128xbf16>, vector<128x128xbf16>, vector<16x128xf32> -> vector<16x128xf32>
    %307 = arith.addf %302, %306 : vector<16x128xf32>
    %308 = vector.broadcast %4 : vector<1x128xf32> to vector<16x128xf32>
    %309 = arith.addf %307, %308 : vector<16x128xf32>
    %310 = math.tanh %309 : vector<16x128xf32>
    %c0_235 = arith.constant 0 : index
    %c0_236 = arith.constant 0 : index
    %c0_237 = arith.constant 0 : index
    %311 = vector.load %arg10[%c0_235, %c0_236, %c0_237] : memref<2x16x128xf32, #tpu.memory_space<vmem>>, vector<1x16x128xf32>
    %312 = vector.shape_cast %311 : vector<1x16x128xf32> to vector<16x128xf32>
    %313 = vector.shape_cast %310 : vector<16x128xf32> to vector<1x16x128xf32>
    tpu.vector_store %arg10[%c0_235, %c0_236, %c0_237], %313 {strides = array<i32>} : memref<2x16x128xf32, #tpu.memory_space<vmem>>, vector<1x16x128xf32>,
    %cst_238 = arith.constant 0.000000e+00 : f32
    %314 = vector.broadcast %cst_238 : f32 to vector<16x128xf32>
    %315 = arith.maximumf %310, %314 : vector<16x128xf32>
    %c1_239 = arith.constant 1 : index
    %c0_240 = arith.constant 0 : index
    %c0_241 = arith.constant 0 : index
    %316 = vector.load %arg10[%c1_239, %c0_240, %c0_241] : memref<2x16x128xf32, #tpu.memory_space<vmem>>, vector<1x16x128xf32>
    %317 = vector.shape_cast %316 : vector<1x16x128xf32> to vector<16x128xf32>
    %318 = arith.truncf %315 : vector<16x128xf32> to vector<16x128xbf16>
    %c0_242 = arith.constant 0 : index
    %c0_243 = arith.constant 0 : index
    %c0_244 = arith.constant 0 : index
    %319 = vector.load %arg5[%c0_242, %c0_243, %c0_244] : memref<1x128x128xbf16, #tpu.memory_space<vmem>>, vector<1x128x128xbf16>
    %320 = vector.shape_cast %319 : vector<1x128x128xbf16> to vector<128x128xbf16>
    %cst_245 = arith.constant dense<0.000000e+00> : vector<16x128xf32>
    %321 = tpu.matmul %318, %320, %cst_245 {dimension_numbers = #tpu.dot_dimension_numbers<[1], [0], [0], [1], [0, 0, 1, 1], [], []>} : vector<16x128xbf16>, vector<128x128xbf16>, vector<16x128xf32> -> vector<16x128xf32>
    %322 = arith.truncf %317 : vector<16x128xf32> to vector<16x128xbf16>
    %c1_246 = arith.constant 1 : index
    %c0_247 = arith.constant 0 : index
    %c0_248 = arith.constant 0 : index
    %323 = vector.load %arg4[%c1_246, %c0_247, %c0_248] : memref<2x128x128xbf16, #tpu.memory_space<vmem>>, vector<1x128x128xbf16>
    %324 = vector.shape_cast %323 : vector<1x128x128xbf16> to vector<128x128xbf16>
    %cst_249 = arith.constant dense<0.000000e+00> : vector<16x128xf32>
    %325 = tpu.matmul %322, %324, %cst_249 {dimension_numbers = #tpu.dot_dimension_numbers<[1], [0], [0], [1], [0, 0, 1, 1], [], []>} : vector<16x128xbf16>, vector<128x128xbf16>, vector<16x128xf32> -> vector<16x128xf32>
    %326 = arith.addf %321, %325 : vector<16x128xf32>
    %327 = vector.broadcast %6 : vector<1x128xf32> to vector<16x128xf32>
    %328 = arith.addf %326, %327 : vector<16x128xf32>
    %329 = math.tanh %328 : vector<16x128xf32>
    %c1_250 = arith.constant 1 : index
    %c0_251 = arith.constant 0 : index
    %c0_252 = arith.constant 0 : index
    %330 = vector.load %arg10[%c1_250, %c0_251, %c0_252] : memref<2x16x128xf32, #tpu.memory_space<vmem>>, vector<1x16x128xf32>
    %331 = vector.shape_cast %330 : vector<1x16x128xf32> to vector<16x128xf32>
    %332 = vector.shape_cast %329 : vector<16x128xf32> to vector<1x16x128xf32>
    tpu.vector_store %arg10[%c1_250, %c0_251, %c0_252], %332 {strides = array<i32>} : memref<2x16x128xf32, #tpu.memory_space<vmem>>, vector<1x16x128xf32>,
    %cst_253 = arith.constant 0.000000e+00 : f32
    %333 = vector.broadcast %cst_253 : f32 to vector<16x128xf32>
    %334 = arith.maximumf %329, %333 : vector<16x128xf32>
    %335 = arith.truncf %334 : vector<16x128xf32> to vector<16x128xbf16>
    %c0_254 = arith.constant 0 : index
    %c0_255 = arith.constant 0 : index
    %336 = vector.load %arg7[%c0_254, %c0_255] : memref<128x128xbf16, #tpu.memory_space<vmem>>, vector<128x128xbf16>
    %cst_256 = arith.constant dense<0.000000e+00> : vector<16x128xf32>
    %337 = tpu.matmul %335, %336, %cst_256 {dimension_numbers = #tpu.dot_dimension_numbers<[1], [0], [0], [1], [0, 0, 1, 1], [], []>} : vector<16x128xbf16>, vector<128x128xbf16>, vector<16x128xf32> -> vector<16x128xf32>
    %338 = vector.broadcast %7 : vector<1x128xf32> to vector<16x128xf32>
    %339 = arith.addf %337, %338 : vector<16x128xf32>
    %340 = arith.index_cast %c6_i32 : i32 to index
    %c0_257 = arith.constant 0 : index
    %c0_258 = arith.constant 0 : index
    %341 = vector.load %arg9[%340, %c0_257, %c0_258] : memref<8x16x128xf32, #tpu.memory_space<vmem>>, vector<1x16x128xf32>
    %342 = vector.shape_cast %341 : vector<1x16x128xf32> to vector<16x128xf32>
    %343 = vector.shape_cast %339 : vector<16x128xf32> to vector<1x16x128xf32>
    tpu.vector_store %arg9[%340, %c0_257, %c0_258], %343 {strides = array<i32>} : memref<8x16x128xf32, #tpu.memory_space<vmem>>, vector<1x16x128xf32>,
    %c7_i32 = arith.constant 7 : i32
    %344 = arith.index_cast %c7_i32 : i32 to index
    %c0_259 = arith.constant 0 : index
    %c0_260 = arith.constant 0 : index
    %345 = vector.load %arg2[%344, %c0_259, %c0_260] : memref<8x16x128xbf16, #tpu.memory_space<vmem>>, vector<1x16x128xbf16>
    %346 = vector.shape_cast %345 : vector<1x16x128xbf16> to vector<16x128xbf16>
    %c0_261 = arith.constant 0 : index
    %c0_262 = arith.constant 0 : index
    %c0_263 = arith.constant 0 : index
    %347 = vector.load %arg10[%c0_261, %c0_262, %c0_263] : memref<2x16x128xf32, #tpu.memory_space<vmem>>, vector<1x16x128xf32>
    %348 = vector.shape_cast %347 : vector<1x16x128xf32> to vector<16x128xf32>
    %c0_264 = arith.constant 0 : index
    %c0_265 = arith.constant 0 : index
    %349 = vector.load %arg3[%c0_264, %c0_265] : memref<128x128xbf16, #tpu.memory_space<vmem>>, vector<128x128xbf16>
    %cst_266 = arith.constant dense<0.000000e+00> : vector<16x128xf32>
    %350 = tpu.matmul %346, %349, %cst_266 {dimension_numbers = #tpu.dot_dimension_numbers<[1], [0], [0], [1], [0, 0, 1, 1], [], []>} : vector<16x128xbf16>, vector<128x128xbf16>, vector<16x128xf32> -> vector<16x128xf32>
    %351 = arith.truncf %348 : vector<16x128xf32> to vector<16x128xbf16>
    %c0_267 = arith.constant 0 : index
    %c0_268 = arith.constant 0 : index
    %c0_269 = arith.constant 0 : index
    %352 = vector.load %arg4[%c0_267, %c0_268, %c0_269] : memref<2x128x128xbf16, #tpu.memory_space<vmem>>, vector<1x128x128xbf16>
    %353 = vector.shape_cast %352 : vector<1x128x128xbf16> to vector<128x128xbf16>
    %cst_270 = arith.constant dense<0.000000e+00> : vector<16x128xf32>
    %354 = tpu.matmul %351, %353, %cst_270 {dimension_numbers = #tpu.dot_dimension_numbers<[1], [0], [0], [1], [0, 0, 1, 1], [], []>} : vector<16x128xbf16>, vector<128x128xbf16>, vector<16x128xf32> -> vector<16x128xf32>
    %355 = arith.addf %350, %354 : vector<16x128xf32>
    %356 = vector.broadcast %4 : vector<1x128xf32> to vector<16x128xf32>
    %357 = arith.addf %355, %356 : vector<16x128xf32>
    %358 = math.tanh %357 : vector<16x128xf32>
    %c0_271 = arith.constant 0 : index
    %c0_272 = arith.constant 0 : index
    %c0_273 = arith.constant 0 : index
    %359 = vector.load %arg10[%c0_271, %c0_272, %c0_273] : memref<2x16x128xf32, #tpu.memory_space<vmem>>, vector<1x16x128xf32>
    %360 = vector.shape_cast %359 : vector<1x16x128xf32> to vector<16x128xf32>
    %361 = vector.shape_cast %358 : vector<16x128xf32> to vector<1x16x128xf32>
    tpu.vector_store %arg10[%c0_271, %c0_272, %c0_273], %361 {strides = array<i32>} : memref<2x16x128xf32, #tpu.memory_space<vmem>>, vector<1x16x128xf32>,
    %cst_274 = arith.constant 0.000000e+00 : f32
    %362 = vector.broadcast %cst_274 : f32 to vector<16x128xf32>
    %363 = arith.maximumf %358, %362 : vector<16x128xf32>
    %c1_275 = arith.constant 1 : index
    %c0_276 = arith.constant 0 : index
    %c0_277 = arith.constant 0 : index
    %364 = vector.load %arg10[%c1_275, %c0_276, %c0_277] : memref<2x16x128xf32, #tpu.memory_space<vmem>>, vector<1x16x128xf32>
    %365 = vector.shape_cast %364 : vector<1x16x128xf32> to vector<16x128xf32>
    %366 = arith.truncf %363 : vector<16x128xf32> to vector<16x128xbf16>
    %c0_278 = arith.constant 0 : index
    %c0_279 = arith.constant 0 : index
    %c0_280 = arith.constant 0 : index
    %367 = vector.load %arg5[%c0_278, %c0_279, %c0_280] : memref<1x128x128xbf16, #tpu.memory_space<vmem>>, vector<1x128x128xbf16>
    %368 = vector.shape_cast %367 : vector<1x128x128xbf16> to vector<128x128xbf16>
    %cst_281 = arith.constant dense<0.000000e+00> : vector<16x128xf32>
    %369 = tpu.matmul %366, %368, %cst_281 {dimension_numbers = #tpu.dot_dimension_numbers<[1], [0], [0], [1], [0, 0, 1, 1], [], []>} : vector<16x128xbf16>, vector<128x128xbf16>, vector<16x128xf32> -> vector<16x128xf32>
    %370 = arith.truncf %365 : vector<16x128xf32> to vector<16x128xbf16>
    %c1_282 = arith.constant 1 : index
    %c0_283 = arith.constant 0 : index
    %c0_284 = arith.constant 0 : index
    %371 = vector.load %arg4[%c1_282, %c0_283, %c0_284] : memref<2x128x128xbf16, #tpu.memory_space<vmem>>, vector<1x128x128xbf16>
    %372 = vector.shape_cast %371 : vector<1x128x128xbf16> to vector<128x128xbf16>
    %cst_285 = arith.constant dense<0.000000e+00> : vector<16x128xf32>
    %373 = tpu.matmul %370, %372, %cst_285 {dimension_numbers = #tpu.dot_dimension_numbers<[1], [0], [0], [1], [0, 0, 1, 1], [], []>} : vector<16x128xbf16>, vector<128x128xbf16>, vector<16x128xf32> -> vector<16x128xf32>
    %374 = arith.addf %369, %373 : vector<16x128xf32>
    %375 = vector.broadcast %6 : vector<1x128xf32> to vector<16x128xf32>
    %376 = arith.addf %374, %375 : vector<16x128xf32>
    %377 = math.tanh %376 : vector<16x128xf32>
    %c1_286 = arith.constant 1 : index
    %c0_287 = arith.constant 0 : index
    %c0_288 = arith.constant 0 : index
    %378 = vector.load %arg10[%c1_286, %c0_287, %c0_288] : memref<2x16x128xf32, #tpu.memory_space<vmem>>, vector<1x16x128xf32>
    %379 = vector.shape_cast %378 : vector<1x16x128xf32> to vector<16x128xf32>
    %380 = vector.shape_cast %377 : vector<16x128xf32> to vector<1x16x128xf32>
    tpu.vector_store %arg10[%c1_286, %c0_287, %c0_288], %380 {strides = array<i32>} : memref<2x16x128xf32, #tpu.memory_space<vmem>>, vector<1x16x128xf32>,
    %cst_289 = arith.constant 0.000000e+00 : f32
    %381 = vector.broadcast %cst_289 : f32 to vector<16x128xf32>
    %382 = arith.maximumf %377, %381 : vector<16x128xf32>
    %383 = arith.truncf %382 : vector<16x128xf32> to vector<16x128xbf16>
    %c0_290 = arith.constant 0 : index
    %c0_291 = arith.constant 0 : index
    %384 = vector.load %arg7[%c0_290, %c0_291] : memref<128x128xbf16, #tpu.memory_space<vmem>>, vector<128x128xbf16>
    %cst_292 = arith.constant dense<0.000000e+00> : vector<16x128xf32>
    %385 = tpu.matmul %383, %384, %cst_292 {dimension_numbers = #tpu.dot_dimension_numbers<[1], [0], [0], [1], [0, 0, 1, 1], [], []>} : vector<16x128xbf16>, vector<128x128xbf16>, vector<16x128xf32> -> vector<16x128xf32>
    %386 = vector.broadcast %7 : vector<1x128xf32> to vector<16x128xf32>
    %387 = arith.addf %385, %386 : vector<16x128xf32>
    %388 = arith.index_cast %c7_i32 : i32 to index
    %c0_293 = arith.constant 0 : index
    %c0_294 = arith.constant 0 : index
    %389 = vector.load %arg9[%388, %c0_293, %c0_294] : memref<8x16x128xf32, #tpu.memory_space<vmem>>, vector<1x16x128xf32>
    %390 = vector.shape_cast %389 : vector<1x16x128xf32> to vector<16x128xf32>
    %391 = vector.shape_cast %387 : vector<16x128xf32> to vector<1x16x128xf32>
    tpu.vector_store %arg9[%388, %c0_293, %c0_294], %391 {strides = array<i32>} : memref<8x16x128xf32, #tpu.memory_space<vmem>>, vector<1x16x128xf32>,
    %c8_i32 = arith.constant 8 : i32
    return
  }
  func.func @transform_0(%arg0: i32, %arg1: i32) -> (i32, i32, i32) {
    %c0_i32 = arith.constant 0 : i32
    %c0_i32_0 = arith.constant 0 : i32
    return %arg1, %arg0, %c0_i32 : i32, i32, i32
  }
  func.func @transform_1(%arg0: i32, %arg1: i32) -> (i32, i32) {
    %c0_i32 = arith.constant 0 : i32
    %c0_i32_0 = arith.constant 0 : i32
    %c0_i32_1 = arith.constant 0 : i32
    return %c0_i32, %c0_i32_0 : i32, i32
  }
  func.func @transform_2(%arg0: i32, %arg1: i32) -> (i32, i32, i32) {
    %c0_i32 = arith.constant 0 : i32
    %c0_i32_0 = arith.constant 0 : i32
    %c0_i32_1 = arith.constant 0 : i32
    %c0_i32_2 = arith.constant 0 : i32
    return %c0_i32, %c0_i32_0, %c0_i32_1 : i32, i32, i32
  }
  func.func @transform_3(%arg0: i32, %arg1: i32) -> (i32, i32, i32) {
    %c0_i32 = arith.constant 0 : i32
    %c0_i32_0 = arith.constant 0 : i32
    %c0_i32_1 = arith.constant 0 : i32
    %c0_i32_2 = arith.constant 0 : i32
    return %c0_i32, %c0_i32_0, %c0_i32_1 : i32, i32, i32
  }
  func.func @transform_4(%arg0: i32, %arg1: i32) -> (i32, i32, i32) {
    %c0_i32 = arith.constant 0 : i32
    %c0_i32_0 = arith.constant 0 : i32
    %c0_i32_1 = arith.constant 0 : i32
    %c0_i32_2 = arith.constant 0 : i32
    return %c0_i32, %c0_i32_0, %c0_i32_1 : i32, i32, i32
  }
  func.func @transform_5(%arg0: i32, %arg1: i32) -> (i32, i32) {
    %c0_i32 = arith.constant 0 : i32
    %c0_i32_0 = arith.constant 0 : i32
    %c0_i32_1 = arith.constant 0 : i32
    return %c0_i32, %c0_i32_0 : i32, i32
  }
  func.func @transform_6(%arg0: i32, %arg1: i32) -> (i32, i32) {
    %c0_i32 = arith.constant 0 : i32
    %c0_i32_0 = arith.constant 0 : i32
    %c0_i32_1 = arith.constant 0 : i32
    return %c0_i32, %c0_i32_0 : i32, i32
  }
  func.func @transform_7(%arg0: i32, %arg1: i32) -> (i32, i32, i32) {
    %c0_i32 = arith.constant 0 : i32
    %c0_i32_0 = arith.constant 0 : i32
    return %arg1, %arg0, %c0_i32 : i32, i32, i32
  }
}

</mosaic_0001>

<llo_original>
// kernel: deep_rnn_forward.1
$region0: #{deep_rnn_forward.1}
  #allocation0 [shape = 'u32[]', space=smem, size = 0x4, offset = 0x4, fixed_abs, tag = 'smem constant byte address 0x4 - core index']
  #allocation1 [shape = 'u32[72,128]{1,0:T(1,128)}', space=vmem, size = 0x9000, scoped, tag = 'internal scratch']
  #allocation2 [shape = 'f32[2,16,128]{2,1,0:T(8,128)}', space=vmem, size = 0x4000, scoped, tag = 'scratch operand']
  %s0 = inlined_call_operand.vmem [shape: bf16[8,16,128], index: 0, kind: input, shape index: {}]
  %s1 = inlined_call_operand.vmem [shape: bf16[128,128], index: 1, kind: input, shape index: {}]
  %s2 = inlined_call_operand.vmem [shape: bf16[2,128,128], index: 2, kind: input, shape index: {}]
  %s3 = inlined_call_operand.vmem [shape: bf16[1,128,128], index: 3, kind: input, shape index: {}]
  %s4 = inlined_call_operand.vmem [shape: f32[2,1,128], index: 4, kind: input, shape index: {}]
  %s5 = inlined_call_operand.vmem [shape: bf16[128,128], index: 5, kind: input, shape index: {}]
  %s6 = inlined_call_operand.vmem [shape: f32[1,128], index: 6, kind: input, shape index: {}]
  %s7 = inlined_call_operand.vmem [shape: f32[8,16,128], index: 7, kind: output, shape index: {}]
  %s8 = sld [smem:[#allocation0]]
  $region42: #{deep_rnn_forward.1} parent=0
    _
  %s10 = ssub.s32 1, %s8
  %s11 = scalar_select 0, %s10, %s8
  // Predicated region
  $region2: #{deep_rnn_forward.1} parent=0 // pred_check
    _
  $region3: #{deep_rnn_forward.1} parent=0 // pred_check_branch
    %13 = sbr.rel (0) target = $region5
  $region4: #{deep_rnn_forward.1} parent=0 // pred_region
    _
  $region5: #{deep_rnn_forward.1} parent=0 // pred_fallthru
    _
  // Predicated region
  $region6: #{deep_rnn_forward.1} parent=0 // pred_check
    _
  $region7: #{deep_rnn_forward.1} parent=0 // pred_check_branch
    %15 = sbr.rel (0) target = $region9
  $region8: #{deep_rnn_forward.1} parent=0 // pred_region
    _
  $region9: #{deep_rnn_forward.1} parent=0 // pred_fallthru
    _
  // Predicated region
  $region10: #{deep_rnn_forward.1} parent=0 // pred_check
    _
  $region11: #{deep_rnn_forward.1} parent=0 // pred_check_branch
    %17 = sbr.rel (0) target = $region13
  $region12: #{deep_rnn_forward.1} parent=0 // pred_region
    _
  $region13: #{deep_rnn_forward.1} parent=0 // pred_fallthru
    _
  // Predicated region
  $region14: #{deep_rnn_forward.1} parent=0 // pred_check
    _
  $region15: #{deep_rnn_forward.1} parent=0 // pred_check_branch
    %19 = sbr.rel (0) target = $region17
  $region16: #{deep_rnn_forward.1} parent=0 // pred_region
    _
  $region17: #{deep_rnn_forward.1} parent=0 // pred_fallthru
    _
  // Predicated region
  $region18: #{deep_rnn_forward.1} parent=0 // pred_check
    _
  $region19: #{deep_rnn_forward.1} parent=0 // pred_check_branch
    %21 = sbr.rel (0) target = $region21
  $region20: #{deep_rnn_forward.1} parent=0 // pred_region
    _
  $region21: #{deep_rnn_forward.1} parent=0 // pred_fallthru
    _
  // Predicated region
  $region22: #{deep_rnn_forward.1} parent=0 // pred_check
    _
  $region23: #{deep_rnn_forward.1} parent=0 // pred_check_branch
    %23 = sbr.rel (0) target = $region25
  $region24: #{deep_rnn_forward.1} parent=0 // pred_region
    _
  $region25: #{deep_rnn_forward.1} parent=0 // pred_fallthru
    _
  // Predicated region
  $region26: #{deep_rnn_forward.1} parent=0 // pred_check
    _
  $region27: #{deep_rnn_forward.1} parent=0 // pred_check_branch
    %25 = sbr.rel (0) target = $region29
  $region28: #{deep_rnn_forward.1} parent=0 // pred_region
    _
  $region29: #{deep_rnn_forward.1} parent=0 // pred_fallthru
    _
  %p26 = scmp.eq.s32.totalorder 0, 0
  // Predicated region
  $region30: #{deep_rnn_forward.1} parent=0 // pred_check
    %p27 = pneg %p26
  $region31: #{deep_rnn_forward.1} parent=0 // pred_check_branch
    %29 = sbr.rel (%p27) target = $region33
  $region32: #{deep_rnn_forward.1} parent=0 // pred_region
    %30 = vst [vmem:[#allocation2] sm:$0xff] 0.0
    %31 = vst [vmem:[#allocation2 + $0x8] sm:$0xff] 0.0
    %32 = vst [vmem:[#allocation2 + $0x10] sm:$0xff] 0.0
    %33 = vst [vmem:[#allocation2 + $0x18] sm:$0xff] 0.0
  $region33: #{deep_rnn_forward.1} parent=0 // pred_fallthru
    _
  %v34 = vld [vmem:[%s4] sm:$0x1]
  %s35 = scalar_lea.vmem %s4, 1
  %v36 = vld [vmem:[%s35] sm:$0x1]
  %v37 = vld [vmem:[%s6] sm:$0x1]
  %v38 = vld [vmem:[%s0] sm:$0xf]
  %v39 = vld [vmem:[%s0 + $0x4] sm:$0xf]
  %v40 = vld [vmem:[#allocation2] sm:$0xff]
  %v41 = vld [vmem:[#allocation2 + $0x8] sm:$0xff]
  %v42 = vld [vmem:[%s1] sm:$0xf]
  %v43 = vld [vmem:[%s1 + $0x4] sm:$0xf]
  %v44 = vld [vmem:[%s1 + $0x8] sm:$0xf]
  %v45 = vld [vmem:[%s1 + $0xc] sm:$0xf]
  %v46 = vld [vmem:[%s1 + $0x10] sm:$0xf]
  %v47 = vld [vmem:[%s1 + $0x14] sm:$0xf]
  %v48 = vld [vmem:[%s1 + $0x18] sm:$0xf]
  %v49 = vld [vmem:[%s1 + $0x1c] sm:$0xf]
  %v50 = vld [vmem:[%s1 + $0x20] sm:$0xf]
  %v51 = vld [vmem:[%s1 + $0x24] sm:$0xf]
  %v52 = vld [vmem:[%s1 + $0x28] sm:$0xf]
  %v53 = vld [vmem:[%s1 + $0x2c] sm:$0xf]
  %v54 = vld [vmem:[%s1 + $0x30] sm:$0xf]
  %v55 = vld [vmem:[%s1 + $0x34] sm:$0xf]
  %v56 = vld [vmem:[%s1 + $0x38] sm:$0xf]
  %v57 = vld [vmem:[%s1 + $0x3c] sm:$0xf]
  %v58 = vpack.c.bf16 %v41, %v40
  %v59 = vld [vmem:[%s2] sm:$0xf]
  %v60 = vld [vmem:[%s2 + $0x4] sm:$0xf]
  %v61 = vld [vmem:[%s2 + $0x8] sm:$0xf]
  %v62 = vld [vmem:[%s2 + $0xc] sm:$0xf]
  %v63 = vld [vmem:[%s2 + $0x10] sm:$0xf]
  %v64 = vld [vmem:[%s2 + $0x14] sm:$0xf]
  %v65 = vld [vmem:[%s2 + $0x18] sm:$0xf]
  %v66 = vld [vmem:[%s2 + $0x1c] sm:$0xf]
  %v67 = vld [vmem:[%s2 + $0x20] sm:$0xf]
  %v68 = vld [vmem:[%s2 + $0x24] sm:$0xf]
  %v69 = vld [vmem:[%s2 + $0x28] sm:$0xf]
  %v70 = vld [vmem:[%s2 + $0x2c] sm:$0xf]
  %v71 = vld [vmem:[%s2 + $0x30] sm:$0xf]
  %v72 = vld [vmem:[%s2 + $0x34] sm:$0xf]
  %v73 = vld [vmem:[%s2 + $0x38] sm:$0xf]
  %v74 = vld [vmem:[%s2 + $0x3c] sm:$0xf]
  %v91 = vunpack.c.l.b16 %v59
  %v92 = vunpack.c.l.b16 %v60
  %v93 = vunpack.c.l.b16 %v61
  %v94 = vunpack.c.l.b16 %v62
  %v95 = vunpack.c.l.b16 %v63
  %v96 = vunpack.c.l.b16 %v64
  %v97 = vunpack.c.l.b16 %v65
  %v98 = vunpack.c.l.b16 %v66
  %v99 = vunpack.c.l.b16 %v67
  %v100 = vunpack.c.l.b16 %v68
  %v101 = vunpack.c.l.b16 %v69
  %v102 = vunpack.c.l.b16 %v70
  %v103 = vunpack.c.l.b16 %v71
  %v104 = vunpack.c.l.b16 %v72
  %v105 = vunpack.c.l.b16 %v73
  %v106 = vunpack.c.l.b16 %v74
  %v107 = vpack.c.b16 %v92, %v91
  %v108 = vpack.c.b16 %v94, %v93
  %v109 = vpack.c.b16 %v96, %v95
  %v110 = vpack.c.b16 %v98, %v97
  %v111 = vpack.c.b16 %v100, %v99
  %v112 = vpack.c.b16 %v102, %v101
  %v113 = vpack.c.b16 %v104, %v103
  %v114 = vpack.c.b16 %v106, %v105
  %123 = vmatpush.bf16.msra.mxu0 %v114
  %124 = vmatpush.bf16.msra.mxu0 %v113
  %125 = vmatpush.bf16.msra.mxu0 %v112
  %126 = vmatpush.bf16.msra.mxu0 %v111
  %127 = vmatpush.bf16.msra.mxu0 %v110
  %128 = vmatpush.bf16.msra.mxu0 %v109
  %129 = vmatpush.bf16.msra.mxu0 %v108
  %130 = vmatpush.bf16.msra.mxu0 %v107
  %131 = vmatmul.bf16.gmra.mxu0 %v58
  %v132 = vpop.f32.mrf.mxu0
  %v133 = vadd.f32 0.0, %v132
  %v134 = vpop.f32.mrf.mxu0
  %v135 = vadd.f32 0.0, %v134
  %136 = vdwg.mxu0
  %v139 = vunpack.c.l.b16 %v38
  %v140 = vunpack.c.l.b16 %v39
  %v141 = vpack.c.b16 %v140, %v139
  %v159 = vunpack.c.l.b16 %v42
  %v160 = vunpack.c.l.b16 %v43
  %v161 = vunpack.c.l.b16 %v44
  %v162 = vunpack.c.l.b16 %v45
  %v163 = vunpack.c.l.b16 %v46
  %v164 = vunpack.c.l.b16 %v47
  %v165 = vunpack.c.l.b16 %v48
  %v166 = vunpack.c.l.b16 %v49
  %v167 = vunpack.c.l.b16 %v50
  %v168 = vunpack.c.l.b16 %v51
  %v169 = vunpack.c.l.b16 %v52
  %v170 = vunpack.c.l.b16 %v53
  %v171 = vunpack.c.l.b16 %v54
  %v172 = vunpack.c.l.b16 %v55
  %v173 = vunpack.c.l.b16 %v56
  %v174 = vunpack.c.l.b16 %v57
  %v175 = vpack.c.b16 %v160, %v159
  %v176 = vpack.c.b16 %v162, %v161
  %v177 = vpack.c.b16 %v164, %v163
  %v178 = vpack.c.b16 %v166, %v165
  %v179 = vpack.c.b16 %v168, %v167
  %v180 = vpack.c.b16 %v170, %v169
  %v181 = vpack.c.b16 %v172, %v171
  %v182 = vpack.c.b16 %v174, %v173
  %191 = vmatpush.bf16.msra.mxu0 %v182
  %192 = vmatpush.bf16.msra.mxu0 %v181
  %193 = vmatpush.bf16.msra.mxu0 %v180
  %194 = vmatpush.bf16.msra.mxu0 %v179
  %195 = vmatpush.bf16.msra.mxu0 %v178
  %196 = vmatpush.bf16.msra.mxu0 %v177
  %197 = vmatpush.bf16.msra.mxu0 %v176
  %198 = vmatpush.bf16.msra.mxu0 %v175
  %199 = vmatmul.bf16.gmra.mxu0 %v141
  %v200 = vpop.f32.mrf.mxu0
  %v201 = vadd.f32 %v133, %v200
  %v202 = vpop.f32.mrf.mxu0
  %v203 = vadd.f32 %v135, %v202
  %204 = vdwg.mxu0
  %v206 = vperm.slane %v34, 0
  %v208 = vadd.f32 %v201, %v206
  %v209 = vadd.f32 %v203, %v206
  %v210 = vtanh.pop %v208
  %v211 = vtanh.pop %v209
  %212 = vst [vmem:[#allocation2] sm:$0xff] %v210
  %213 = vst [vmem:[#allocation2 + $0x8] sm:$0xff] %v211
  %v214 = vmax.f32 %v210, 0.0
  %v215 = vmax.f32 %v211, 0.0
  %s216 = scalar_lea.vmem [#allocation2], 16
  %v217 = vld [vmem:[%s216] sm:$0xff]
  %v218 = vld [vmem:[%s216 + $0x8] sm:$0xff]
  %v219 = vpack.c.bf16 %v215, %v214
  %v220 = vld [vmem:[%s3] sm:$0xf]
  %v221 = vld [vmem:[%s3 + $0x4] sm:$0xf]
  %v222 = vld [vmem:[%s3 + $0x8] sm:$0xf]
  %v223 = vld [vmem:[%s3 + $0xc] sm:$0xf]
  %v224 = vld [vmem:[%s3 + $0x10] sm:$0xf]
  %v225 = vld [vmem:[%s3 + $0x14] sm:$0xf]
  %v226 = vld [vmem:[%s3 + $0x18] sm:$0xf]
  %v227 = vld [vmem:[%s3 + $0x1c] sm:$0xf]
  %v228 = vld [vmem:[%s3 + $0x20] sm:$0xf]
  %v229 = vld [vmem:[%s3 + $0x24] sm:$0xf]
  %v230 = vld [vmem:[%s3 + $0x28] sm:$0xf]
  %v231 = vld [vmem:[%s3 + $0x2c] sm:$0xf]
  %v232 = vld [vmem:[%s3 + $0x30] sm:$0xf]
  %v233 = vld [vmem:[%s3 + $0x34] sm:$0xf]
  %v234 = vld [vmem:[%s3 + $0x38] sm:$0xf]
  %v235 = vld [vmem:[%s3 + $0x3c] sm:$0xf]
  %v236 = vpack.c.bf16 %v218, %v217
  %s237 = scalar_lea.vmem %s2, 64
  %v238 = vld [vmem:[%s237] sm:$0xf]
  %v239 = vld [vmem:[%s237 + $0x4] sm:$0xf]
  %v240 = vld [vmem:[%s237 + $0x8] sm:$0xf]
  %v241 = vld [vmem:[%s237 + $0xc] sm:$0xf]
  %v242 = vld [vmem:[%s237 + $0x10] sm:$0xf]
  %v243 = vld [vmem:[%s237 + $0x14] sm:$0xf]
  %v244 = vld [vmem:[%s237 + $0x18] sm:$0xf]
  %v245 = vld [vmem:[%s237 + $0x1c] sm:$0xf]
  %v246 = vld [vmem:[%s237 + $0x20] sm:$0xf]
  %v247 = vld [vmem:[%s237 + $0x24] sm:$0xf]
  %v248 = vld [vmem:[%s237 + $0x28] sm:$0xf]
  %v249 = vld [vmem:[%s237 + $0x2c] sm:$0xf]
  %v250 = vld [vmem:[%s237 + $0x30] sm:$0xf]
  %v251 = vld [vmem:[%s237 + $0x34] sm:$0xf]
  %v252 = vld [vmem:[%s237 + $0x38] sm:$0xf]
  %v253 = vld [vmem:[%s237 + $0x3c] sm:$0xf]
  %v270 = vunpack.c.l.b16 %v238
  %v271 = vunpack.c.l.b16 %v239
  %v272 = vunpack.c.l.b16 %v240
  %v273 = vunpack.c.l.b16 %v241
  %v274 = vunpack.c.l.b16 %v242
  %v275 = vunpack.c.l.b16 %v243
  %v276 = vunpack.c.l.b16 %v244
  %v277 = vunpack.c.l.b16 %v245
  %v278 = vunpack.c.l.b16 %v246
  %v279 = vunpack.c.l.b16 %v247
  %v280 = vunpack.c.l.b16 %v248
  %v281 = vunpack.c.l.b16 %v249
  %v282 = vunpack.c.l.b16 %v250
  %v283 = vunpack.c.l.b16 %v251
  %v284 = vunpack.c.l.b16 %v252
  %v285 = vunpack.c.l.b16 %v253
  %v286 = vpack.c.b16 %v271, %v270
  %v287 = vpack.c.b16 %v273, %v272
  %v288 = vpack.c.b16 %v275, %v274
  %v289 = vpack.c.b16 %v277, %v276
  %v290 = vpack.c.b16 %v279, %v278
  %v291 = vpack.c.b16 %v281, %v280
  %v292 = vpack.c.b16 %v283, %v282
  %v293 = vpack.c.b16 %v285, %v284
  %302 = vmatpush.bf16.msra.mxu0 %v293
  %303 = vmatpush.bf16.msra.mxu0 %v292
  %304 = vmatpush.bf16.msra.mxu0 %v291
  %305 = vmatpush.bf16.msra.mxu0 %v290
  %306 = vmatpush.bf16.msra.mxu0 %v289
  %307 = vmatpush.bf16.msra.mxu0 %v288
  %308 = vmatpush.bf16.msra.mxu0 %v287
  %309 = vmatpush.bf16.msra.mxu0 %v286
  %310 = vmatmul.bf16.gmra.mxu0 %v236
  %v311 = vpop.f32.mrf.mxu0
  %v312 = vadd.f32 0.0, %v311
  %v313 = vpop.f32.mrf.mxu0
  %v314 = vadd.f32 0.0, %v313
  %315 = vdwg.mxu0
  %v332 = vunpack.c.l.b16 %v220
  %v333 = vunpack.c.l.b16 %v221
  %v334 = vunpack.c.l.b16 %v222
  %v335 = vunpack.c.l.b16 %v223
  %v336 = vunpack.c.l.b16 %v224
  %v337 = vunpack.c.l.b16 %v225
  %v338 = vunpack.c.l.b16 %v226
  %v339 = vunpack.c.l.b16 %v227
  %v340 = vunpack.c.l.b16 %v228
  %v341 = vunpack.c.l.b16 %v229
  %v342 = vunpack.c.l.b16 %v230
  %v343 = vunpack.c.l.b16 %v231
  %v344 = vunpack.c.l.b16 %v232
  %v345 = vunpack.c.l.b16 %v233
  %v346 = vunpack.c.l.b16 %v234
  %v347 = vunpack.c.l.b16 %v235
  %v348 = vpack.c.b16 %v333, %v332
  %v349 = vpack.c.b16 %v335, %v334
  %v350 = vpack.c.b16 %v337, %v336
  %v351 = vpack.c.b16 %v339, %v338
  %v352 = vpack.c.b16 %v341, %v340
  %v353 = vpack.c.b16 %v343, %v342
  %v354 = vpack.c.b16 %v345, %v344
  %v355 = vpack.c.b16 %v347, %v346
  %364 = vmatpush.bf16.msra.mxu0 %v355
  %365 = vmatpush.bf16.msra.mxu0 %v354
  %366 = vmatpush.bf16.msra.mxu0 %v353
  %367 = vmatpush.bf16.msra.mxu0 %v352
  %368 = vmatpush.bf16.msra.mxu0 %v351
  %369 = vmatpush.bf16.msra.mxu0 %v350
  %370 = vmatpush.bf16.msra.mxu0 %v349
  %371 = vmatpush.bf16.msra.mxu0 %v348
  %372 = vmatmul.bf16.gmra.mxu0 %v219
  %v373 = vpop.f32.mrf.mxu0
  %v374 = vadd.f32 %v312, %v373
  %v375 = vpop.f32.mrf.mxu0
  %v376 = vadd.f32 %v314, %v375
  %377 = vdwg.mxu0
  %v379 = vperm.slane %v36, 0
  %v381 = vadd.f32 %v374, %v379
  %v382 = vadd.f32 %v376, %v379
  %v383 = vtanh.pop %v381
  %v384 = vtanh.pop %v382
  %385 = vst [vmem:[%s216] sm:$0xff] %v383
  %386 = vst [vmem:[%s216 + $0x8] sm:$0xff] %v384
  %v387 = vmax.f32 %v383, 0.0
  %v388 = vmax.f32 %v384, 0.0
  %v389 = vpack.c.bf16 %v388, %v387
  %v390 = vld [vmem:[%s5] sm:$0xf]
  %v391 = vld [vmem:[%s5 + $0x4] sm:$0xf]
  %v392 = vld [vmem:[%s5 + $0x8] sm:$0xf]
  %v393 = vld [vmem:[%s5 + $0xc] sm:$0xf]
  %v394 = vld [vmem:[%s5 + $0x10] sm:$0xf]
  %v395 = vld [vmem:[%s5 + $0x14] sm:$0xf]
  %v396 = vld [vmem:[%s5 + $0x18] sm:$0xf]
  %v397 = vld [vmem:[%s5 + $0x1c] sm:$0xf]
  %v398 = vld [vmem:[%s5 + $0x20] sm:$0xf]
  %v399 = vld [vmem:[%s5 + $0x24] sm:$0xf]
  %v400 = vld [vmem:[%s5 + $0x28] sm:$0xf]
  %v401 = vld [vmem:[%s5 + $0x2c] sm:$0xf]
  %v402 = vld [vmem:[%s5 + $0x30] sm:$0xf]
  %v403 = vld [vmem:[%s5 + $0x34] sm:$0xf]
  %v404 = vld [vmem:[%s5 + $0x38] sm:$0xf]
  %v405 = vld [vmem:[%s5 + $0x3c] sm:$0xf]
  %v407 = vperm.slane %v37, 0
  %v425 = vunpack.c.l.b16 %v390
  %v426 = vunpack.c.l.b16 %v391
  %v427 = vunpack.c.l.b16 %v392
  %v428 = vunpack.c.l.b16 %v393
  %v429 = vunpack.c.l.b16 %v394
  %v430 = vunpack.c.l.b16 %v395
  %v431 = vunpack.c.l.b16 %v396
  %v432 = vunpack.c.l.b16 %v397
  %v433 = vunpack.c.l.b16 %v398
  %v434 = vunpack.c.l.b16 %v399
  %v435 = vunpack.c.l.b16 %v400
  %v436 = vunpack.c.l.b16 %v401
  %v437 = vunpack.c.l.b16 %v402
  %v438 = vunpack.c.l.b16 %v403
  %v439 = vunpack.c.l.b16 %v404
  %v440 = vunpack.c.l.b16 %v405
  %v441 = vpack.c.b16 %v426, %v425
  %v442 = vpack.c.b16 %v428, %v427
  %v443 = vpack.c.b16 %v430, %v429
  %v444 = vpack.c.b16 %v432, %v431
  %v445 = vpack.c.b16 %v434, %v433
  %v446 = vpack.c.b16 %v436, %v435
  %v447 = vpack.c.b16 %v438, %v437
  %v448 = vpack.c.b16 %v440, %v439
  %457 = vmatpush.bf16.msra.mxu0 %v448
  %458 = vmatpush.bf16.msra.mxu0 %v447
  %459 = vmatpush.bf16.msra.mxu0 %v446
  %460 = vmatpush.bf16.msra.mxu0 %v445
  %461 = vmatpush.bf16.msra.mxu0 %v444
  %462 = vmatpush.bf16.msra.mxu0 %v443
  %463 = vmatpush.bf16.msra.mxu0 %v442
  %464 = vmatpush.bf16.msra.mxu0 %v441
  %465 = vmatmul.bf16.gmra.mxu0 %v389
  %v466 = vpop.f32.mrf.mxu0
  %v467 = vadd.f32 %v407, %v466
  %v468 = vpop.f32.mrf.mxu0
  %v469 = vadd.f32 %v407, %v468
  %470 = vdwg.mxu0
  %471 = vst [vmem:[%s7] sm:$0xff] %v467
  %472 = vst [vmem:[%s7 + $0x8] sm:$0xff] %v469
  %s473 = scalar_lea.vmem %s0, 8
  %v474 = vld [vmem:[%s473] sm:$0xf]
  %v475 = vld [vmem:[%s473 + $0x4] sm:$0xf]
  %v476 = vld [vmem:[#allocation2] sm:$0xff]
  %v477 = vld [vmem:[#allocation2 + $0x8] sm:$0xff]
  %v478 = vld [vmem:[%s1] sm:$0xf]
  %v479 = vld [vmem:[%s1 + $0x4] sm:$0xf]
  %v480 = vld [vmem:[%s1 + $0x8] sm:$0xf]
  %v481 = vld [vmem:[%s1 + $0xc] sm:$0xf]
  %v482 = vld [vmem:[%s1 + $0x10] sm:$0xf]
  %v483 = vld [vmem:[%s1 + $0x14] sm:$0xf]
  %v484 = vld [vmem:[%s1 + $0x18] sm:$0xf]
  %v485 = vld [vmem:[%s1 + $0x1c] sm:$0xf]
  %v486 = vld [vmem:[%s1 + $0x20] sm:$0xf]
  %v487 = vld [vmem:[%s1 + $0x24] sm:$0xf]
  %v488 = vld [vmem:[%s1 + $0x28] sm:$0xf]
  %v489 = vld [vmem:[%s1 + $0x2c] sm:$0xf]
  %v490 = vld [vmem:[%s1 + $0x30] sm:$0xf]
  %v491 = vld [vmem:[%s1 + $0x34] sm:$0xf]
  %v492 = vld [vmem:[%s1 + $0x38] sm:$0xf]
  %v493 = vld [vmem:[%s1 + $0x3c] sm:$0xf]
  %v494 = vpack.c.bf16 %v477, %v476
  %v495 = vld [vmem:[%s2] sm:$0xf]
  %v496 = vld [vmem:[%s2 + $0x4] sm:$0xf]
  %v497 = vld [vmem:[%s2 + $0x8] sm:$0xf]
  %v498 = vld [vmem:[%s2 + $0xc] sm:$0xf]
  %v499 = vld [vmem:[%s2 + $0x10] sm:$0xf]
  %v500 = vld [vmem:[%s2 + $0x14] sm:$0xf]
  %v501 = vld [vmem:[%s2 + $0x18] sm:$0xf]
  %v502 = vld [vmem:[%s2 + $0x1c] sm:$0xf]
  %v503 = vld [vmem:[%s2 + $0x20] sm:$0xf]
  %v504 = vld [vmem:[%s2 + $0x24] sm:$0xf]
  %v505 = vld [vmem:[%s2 + $0x28] sm:$0xf]
  %v506 = vld [vmem:[%s2 + $0x2c] sm:$0xf]
  %v507 = vld [vmem:[%s2 + $0x30] sm:$0xf]
  %v508 = vld [vmem:[%s2 + $0x34] sm:$0xf]
  %v509 = vld [vmem:[%s2 + $0x38] sm:$0xf]
  %v510 = vld [vmem:[%s2 + $0x3c] sm:$0xf]
  %v527 = vunpack.c.l.b16 %v495
  %v528 = vunpack.c.l.b16 %v496
  %v529 = vunpack.c.l.b16 %v497
  %v530 = vunpack.c.l.b16 %v498
  %v531 = vunpack.c.l.b16 %v499
  %v532 = vunpack.c.l.b16 %v500
  %v533 = vunpack.c.l.b16 %v501
  %v534 = vunpack.c.l.b16 %v502
  %v535 = vunpack.c.l.b16 %v503
  %v536 = vunpack.c.l.b16 %v504
  %v537 = vunpack.c.l.b16 %v505
  %v538 = vunpack.c.l.b16 %v506
  %v539 = vunpack.c.l.b16 %v507
  %v540 = vunpack.c.l.b16 %v508
  %v541 = vunpack.c.l.b16 %v509
  %v542 = vunpack.c.l.b16 %v510
  %v543 = vpack.c.b16 %v528, %v527
  %v544 = vpack.c.b16 %v530, %v529
  %v545 = vpack.c.b16 %v532, %v531
  %v546 = vpack.c.b16 %v534, %v533
  %v547 = vpack.c.b16 %v536, %v535
  %v548 = vpack.c.b16 %v538, %v537
  %v549 = vpack.c.b16 %v540, %v539
  %v550 = vpack.c.b16 %v542, %v541
  %559 = vmatpush.bf16.msra.mxu0 %v550
  %560 = vmatpush.bf16.msra.mxu0 %v549
  %561 = vmatpush.bf16.msra.mxu0 %v548
  %562 = vmatpush.bf16.msra.mxu0 %v547
  %563 = vmatpush.bf16.msra.mxu0 %v546
  %564 = vmatpush.bf16.msra.mxu0 %v545
  %565 = vmatpush.bf16.msra.mxu0 %v544
  %566 = vmatpush.bf16.msra.mxu0 %v543
  %567 = vmatmul.bf16.gmra.mxu0 %v494
  %v568 = vpop.f32.mrf.mxu0
  %v569 = vadd.f32 0.0, %v568
  %v570 = vpop.f32.mrf.mxu0
  %v571 = vadd.f32 0.0, %v570
  %572 = vdwg.mxu0
  %v575 = vunpack.c.l.b16 %v474
  %v576 = vunpack.c.l.b16 %v475
  %v577 = vpack.c.b16 %v576, %v575
  %v595 = vunpack.c.l.b16 %v478
  %v596 = vunpack.c.l.b16 %v479
  %v597 = vunpack.c.l.b16 %v480
  %v598 = vunpack.c.l.b16 %v481
  %v599 = vunpack.c.l.b16 %v482
  %v600 = vunpack.c.l.b16 %v483
  %v601 = vunpack.c.l.b16 %v484
  %v602 = vunpack.c.l.b16 %v485
  %v603 = vunpack.c.l.b16 %v486
  %v604 = vunpack.c.l.b16 %v487
  %v605 = vunpack.c.l.b16 %v488
  %v606 = vunpack.c.l.b16 %v489
  %v607 = vunpack.c.l.b16 %v490
  %v608 = vunpack.c.l.b16 %v491
  %v609 = vunpack.c.l.b16 %v492
  %v610 = vunpack.c.l.b16 %v493
  %v611 = vpack.c.b16 %v596, %v595
  %v612 = vpack.c.b16 %v598, %v597
  %v613 = vpack.c.b16 %v600, %v599
  %v614 = vpack.c.b16 %v602, %v601
  %v615 = vpack.c.b16 %v604, %v603
  %v616 = vpack.c.b16 %v606, %v605
  %v617 = vpack.c.b16 %v608, %v607
  %v618 = vpack.c.b16 %v610, %v609
  %627 = vmatpush.bf16.msra.mxu0 %v618
  %628 = vmatpush.bf16.msra.mxu0 %v617
  %629 = vmatpush.bf16.msra.mxu0 %v616
  %630 = vmatpush.bf16.msra.mxu0 %v615
  %631 = vmatpush.bf16.msra.mxu0 %v614
  %632 = vmatpush.bf16.msra.mxu0 %v613
  %633 = vmatpush.bf16.msra.mxu0 %v612
  %634 = vmatpush.bf16.msra.mxu0 %v611
  %635 = vmatmul.bf16.gmra.mxu0 %v577
  %v636 = vpop.f32.mrf.mxu0
  %v637 = vadd.f32 %v569, %v636
  %v638 = vpop.f32.mrf.mxu0
  %v639 = vadd.f32 %v571, %v638
  %640 = vdwg.mxu0
  %v641 = vadd.f32 %v637, %v206
  %v642 = vadd.f32 %v639, %v206
  %v643 = vtanh.pop %v641
  %v644 = vtanh.pop %v642
  %645 = vst [vmem:[#allocation2] sm:$0xff] %v643
  %646 = vst [vmem:[#allocation2 + $0x8] sm:$0xff] %v644
  %v647 = vmax.f32 %v643, 0.0
  %v648 = vmax.f32 %v644, 0.0
  %v649 = vld [vmem:[%s216] sm:$0xff]
  %v650 = vld [vmem:[%s216 + $0x8] sm:$0xff]
  %v651 = vpack.c.bf16 %v648, %v647
  %v652 = vld [vmem:[%s3] sm:$0xf]
  %v653 = vld [vmem:[%s3 + $0x4] sm:$0xf]
  %v654 = vld [vmem:[%s3 + $0x8] sm:$0xf]
  %v655 = vld [vmem:[%s3 + $0xc] sm:$0xf]
  %v656 = vld [vmem:[%s3 + $0x10] sm:$0xf]
  %v657 = vld [vmem:[%s3 + $0x14] sm:$0xf]
  %v658 = vld [vmem:[%s3 + $0x18] sm:$0xf]
  %v659 = vld [vmem:[%s3 + $0x1c] sm:$0xf]
  %v660 = vld [vmem:[%s3 + $0x20] sm:$0xf]
  %v661 = vld [vmem:[%s3 + $0x24] sm:$0xf]
  %v662 = vld [vmem:[%s3 + $0x28] sm:$0xf]
  %v663 = vld [vmem:[%s3 + $0x2c] sm:$0xf]
  %v664 = vld [vmem:[%s3 + $0x30] sm:$0xf]
  %v665 = vld [vmem:[%s3 + $0x34] sm:$0xf]
  %v666 = vld [vmem:[%s3 + $0x38] sm:$0xf]
  %v667 = vld [vmem:[%s3 + $0x3c] sm:$0xf]
  %v668 = vpack.c.bf16 %v650, %v649
  %v669 = vld [vmem:[%s237] sm:$0xf]
  %v670 = vld [vmem:[%s237 + $0x4] sm:$0xf]
  %v671 = vld [vmem:[%s237 + $0x8] sm:$0xf]
  %v672 = vld [vmem:[%s237 + $0xc] sm:$0xf]
  %v673 = vld [vmem:[%s237 + $0x10] sm:$0xf]
  %v674 = vld [vmem:[%s237 + $0x14] sm:$0xf]
  %v675 = vld [vmem:[%s237 + $0x18] sm:$0xf]
  %v676 = vld [vmem:[%s237 + $0x1c] sm:$0xf]
  %v677 = vld [vmem:[%s237 + $0x20] sm:$0xf]
  %v678 = vld [vmem:[%s237 + $0x24] sm:$0xf]
  %v679 = vld [vmem:[%s237 + $0x28] sm:$0xf]
  %v680 = vld [vmem:[%s237 + $0x2c] sm:$0xf]
  %v681 = vld [vmem:[%s237 + $0x30] sm:$0xf]
  %v682 = vld [vmem:[%s237 + $0x34] sm:$0xf]
  %v683 = vld [vmem:[%s237 + $0x38] sm:$0xf]
  %v684 = vld [vmem:[%s237 + $0x3c] sm:$0xf]
  %v701 = vunpack.c.l.b16 %v669
  %v702 = vunpack.c.l.b16 %v670
  %v703 = vunpack.c.l.b16 %v671
  %v704 = vunpack.c.l.b16 %v672
  %v705 = vunpack.c.l.b16 %v673
  %v706 = vunpack.c.l.b16 %v674
  %v707 = vunpack.c.l.b16 %v675
  %v708 = vunpack.c.l.b16 %v676
  %v709 = vunpack.c.l.b16 %v677
  %v710 = vunpack.c.l.b16 %v678
  %v711 = vunpack.c.l.b16 %v679
  %v712 = vunpack.c.l.b16 %v680
  %v713 = vunpack.c.l.b16 %v681
  %v714 = vunpack.c.l.b16 %v682
  %v715 = vunpack.c.l.b16 %v683
  %v716 = vunpack.c.l.b16 %v684
  %v717 = vpack.c.b16 %v702, %v701
  %v718 = vpack.c.b16 %v704, %v703
  %v719 = vpack.c.b16 %v706, %v705
  %v720 = vpack.c.b16 %v708, %v707
  %v721 = vpack.c.b16 %v710, %v709
  %v722 = vpack.c.b16 %v712, %v711
  %v723 = vpack.c.b16 %v714, %v713
  %v724 = vpack.c.b16 %v716, %v715
  %733 = vmatpush.bf16.msra.mxu0 %v724
  %734 = vmatpush.bf16.msra.mxu0 %v723
  %735 = vmatpush.bf16.msra.mxu0 %v722
  %736 = vmatpush.bf16.msra.mxu0 %v721
  %737 = vmatpush.bf16.msra.mxu0 %v720
  %738 = vmatpush.bf16.msra.mxu0 %v719
  %739 = vmatpush.bf16.msra.mxu0 %v718
  %740 = vmatpush.bf16.msra.mxu0 %v717
  %741 = vmatmul.bf16.gmra.mxu0 %v668
  %v742 = vpop.f32.mrf.mxu0
  %v743 = vadd.f32 0.0, %v742
  %v744 = vpop.f32.mrf.mxu0
  %v745 = vadd.f32 0.0, %v744
  %746 = vdwg.mxu0
  %v763 = vunpack.c.l.b16 %v652
  %v764 = vunpack.c.l.b16 %v653
  %v765 = vunpack.c.l.b16 %v654
  %v766 = vunpack.c.l.b16 %v655
  %v767 = vunpack.c.l.b16 %v656
  %v768 = vunpack.c.l.b16 %v657
  %v769 = vunpack.c.l.b16 %v658
  %v770 = vunpack.c.l.b16 %v659
  %v771 = vunpack.c.l.b16 %v660
  %v772 = vunpack.c.l.b16 %v661
  %v773 = vunpack.c.l.b16 %v662
  %v774 = vunpack.c.l.b16 %v663
  %v775 = vunpack.c.l.b16 %v664
  %v776 = vunpack.c.l.b16 %v665
  %v777 = vunpack.c.l.b16 %v666
  %v778 = vunpack.c.l.b16 %v667
  %v779 = vpack.c.b16 %v764, %v763
  %v780 = vpack.c.b16 %v766, %v765
  %v781 = vpack.c.b16 %v768, %v767
  %v782 = vpack.c.b16 %v770, %v769
  %v783 = vpack.c.b16 %v772, %v771
  %v784 = vpack.c.b16 %v774, %v773
  %v785 = vpack.c.b16 %v776, %v775
  %v786 = vpack.c.b16 %v778, %v777
  %795 = vmatpush.bf16.msra.mxu0 %v786
  %796 = vmatpush.bf16.msra.mxu0 %v785
  %797 = vmatpush.bf16.msra.mxu0 %v784
  %798 = vmatpush.bf16.msra.mxu0 %v783
  %799 = vmatpush.bf16.msra.mxu0 %v782
  %800 = vmatpush.bf16.msra.mxu0 %v781
  %801 = vmatpush.bf16.msra.mxu0 %v780
  %802 = vmatpush.bf16.msra.mxu0 %v779
  %803 = vmatmul.bf16.gmra.mxu0 %v651
  %v804 = vpop.f32.mrf.mxu0
  %v805 = vadd.f32 %v743, %v804
  %v806 = vpop.f32.mrf.mxu0
  %v807 = vadd.f32 %v745, %v806
  %808 = vdwg.mxu0
  %v809 = vadd.f32 %v805, %v379
  %v810 = vadd.f32 %v807, %v379
  %v811 = vtanh.pop %v809
  %v812 = vtanh.pop %v810
  %813 = vst [vmem:[%s216] sm:$0xff] %v811
  %814 = vst [vmem:[%s216 + $0x8] sm:$0xff] %v812
  %v815 = vmax.f32 %v811, 0.0
  %v816 = vmax.f32 %v812, 0.0
  %v817 = vpack.c.bf16 %v816, %v815
  %v818 = vld [vmem:[%s5] sm:$0xf]
  %v819 = vld [vmem:[%s5 + $0x4] sm:$0xf]
  %v820 = vld [vmem:[%s5 + $0x8] sm:$0xf]
  %v821 = vld [vmem:[%s5 + $0xc] sm:$0xf]
  %v822 = vld [vmem:[%s5 + $0x10] sm:$0xf]
  %v823 = vld [vmem:[%s5 + $0x14] sm:$0xf]
  %v824 = vld [vmem:[%s5 + $0x18] sm:$0xf]
  %v825 = vld [vmem:[%s5 + $0x1c] sm:$0xf]
  %v826 = vld [vmem:[%s5 + $0x20] sm:$0xf]
  %v827 = vld [vmem:[%s5 + $0x24] sm:$0xf]
  %v828 = vld [vmem:[%s5 + $0x28] sm:$0xf]
  %v829 = vld [vmem:[%s5 + $0x2c] sm:$0xf]
  %v830 = vld [vmem:[%s5 + $0x30] sm:$0xf]
  %v831 = vld [vmem:[%s5 + $0x34] sm:$0xf]
  %v832 = vld [vmem:[%s5 + $0x38] sm:$0xf]
  %v833 = vld [vmem:[%s5 + $0x3c] sm:$0xf]
  %v850 = vunpack.c.l.b16 %v818
  %v851 = vunpack.c.l.b16 %v819
  %v852 = vunpack.c.l.b16 %v820
  %v853 = vunpack.c.l.b16 %v821
  %v854 = vunpack.c.l.b16 %v822
  %v855 = vunpack.c.l.b16 %v823
  %v856 = vunpack.c.l.b16 %v824
  %v857 = vunpack.c.l.b16 %v825
  %v858 = vunpack.c.l.b16 %v826
  %v859 = vunpack.c.l.b16 %v827
  %v860 = vunpack.c.l.b16 %v828
  %v861 = vunpack.c.l.b16 %v829
  %v862 = vunpack.c.l.b16 %v830
  %v863 = vunpack.c.l.b16 %v831
  %v864 = vunpack.c.l.b16 %v832
  %v865 = vunpack.c.l.b16 %v833
  %v866 = vpack.c.b16 %v851, %v850
  %v867 = vpack.c.b16 %v853, %v852
  %v868 = vpack.c.b16 %v855, %v854
  %v869 = vpack.c.b16 %v857, %v856
  %v870 = vpack.c.b16 %v859, %v858
  %v871 = vpack.c.b16 %v861, %v860
  %v872 = vpack.c.b16 %v863, %v862
  %v873 = vpack.c.b16 %v865, %v864
  %882 = vmatpush.bf16.msra.mxu0 %v873
  %883 = vmatpush.bf16.msra.mxu0 %v872
  %884 = vmatpush.bf16.msra.mxu0 %v871
  %885 = vmatpush.bf16.msra.mxu0 %v870
  %886 = vmatpush.bf16.msra.mxu0 %v869
  %887 = vmatpush.bf16.msra.mxu0 %v868
  %888 = vmatpush.bf16.msra.mxu0 %v867
  %889 = vmatpush.bf16.msra.mxu0 %v866
  %890 = vmatmul.bf16.gmra.mxu0 %v817
  %v891 = vpop.f32.mrf.mxu0
  %v892 = vadd.f32 %v407, %v891
  %v893 = vpop.f32.mrf.mxu0
  %v894 = vadd.f32 %v407, %v893
  %895 = vdwg.mxu0
  %s896 = scalar_lea.vmem %s7, 16
  %897 = vst [vmem:[%s896] sm:$0xff] %v892
  %898 = vst [vmem:[%s896 + $0x8] sm:$0xff] %v894
  %s899 = scalar_lea.vmem %s0, 16
  %v900 = vld [vmem:[%s899] sm:$0xf]
  %v901 = vld [vmem:[%s899 + $0x4] sm:$0xf]
  %v902 = vld [vmem:[#allocation2] sm:$0xff]
  %v903 = vld [vmem:[#allocation2 + $0x8] sm:$0xff]
  %v904 = vld [vmem:[%s1] sm:$0xf]
  %v905 = vld [vmem:[%s1 + $0x4] sm:$0xf]
  %v906 = vld [vmem:[%s1 + $0x8] sm:$0xf]
  %v907 = vld [vmem:[%s1 + $0xc] sm:$0xf]
  %v908 = vld [vmem:[%s1 + $0x10] sm:$0xf]
  %v909 = vld [vmem:[%s1 + $0x14] sm:$0xf]
  %v910 = vld [vmem:[%s1 + $0x18] sm:$0xf]
  %v911 = vld [vmem:[%s1 + $0x1c] sm:$0xf]
  %v912 = vld [vmem:[%s1 + $0x20] sm:$0xf]
  %v913 = vld [vmem:[%s1 + $0x24] sm:$0xf]
  %v914 = vld [vmem:[%s1 + $0x28] sm:$0xf]
  %v915 = vld [vmem:[%s1 + $0x2c] sm:$0xf]
  %v916 = vld [vmem:[%s1 + $0x30] sm:$0xf]
  %v917 = vld [vmem:[%s1 + $0x34] sm:$0xf]
  %v918 = vld [vmem:[%s1 + $0x38] sm:$0xf]
  %v919 = vld [vmem:[%s1 + $0x3c] sm:$0xf]
  %v920 = vpack.c.bf16 %v903, %v902
  %v921 = vld [vmem:[%s2] sm:$0xf]
  %v922 = vld [vmem:[%s2 + $0x4] sm:$0xf]
  %v923 = vld [vmem:[%s2 + $0x8] sm:$0xf]
  %v924 = vld [vmem:[%s2 + $0xc] sm:$0xf]
  %v925 = vld [vmem:[%s2 + $0x10] sm:$0xf]
  %v926 = vld [vmem:[%s2 + $0x14] sm:$0xf]
  %v927 = vld [vmem:[%s2 + $0x18] sm:$0xf]
  %v928 = vld [vmem:[%s2 + $0x1c] sm:$0xf]
  %v929 = vld [vmem:[%s2 + $0x20] sm:$0xf]
  %v930 = vld [vmem:[%s2 + $0x24] sm:$0xf]
  %v931 = vld [vmem:[%s2 + $0x28] sm:$0xf]
  %v932 = vld [vmem:[%s2 + $0x2c] sm:$0xf]
  %v933 = vld [vmem:[%s2 + $0x30] sm:$0xf]
  %v934 = vld [vmem:[%s2 + $0x34] sm:$0xf]
  %v935 = vld [vmem:[%s2 + $0x38] sm:$0xf]
  %v936 = vld [vmem:[%s2 + $0x3c] sm:$0xf]
  %v953 = vunpack.c.l.b16 %v921
  %v954 = vunpack.c.l.b16 %v922
  %v955 = vunpack.c.l.b16 %v923
  %v956 = vunpack.c.l.b16 %v924
  %v957 = vunpack.c.l.b16 %v925
  %v958 = vunpack.c.l.b16 %v926
  %v959 = vunpack.c.l.b16 %v927
  %v960 = vunpack.c.l.b16 %v928
  %v961 = vunpack.c.l.b16 %v929
  %v962 = vunpack.c.l.b16 %v930
  %v963 = vunpack.c.l.b16 %v931
  %v964 = vunpack.c.l.b16 %v932
  %v965 = vunpack.c.l.b16 %v933
  %v966 = vunpack.c.l.b16 %v934
  %v967 = vunpack.c.l.b16 %v935
  %v968 = vunpack.c.l.b16 %v936
  %v969 = vpack.c.b16 %v954, %v953
  %v970 = vpack.c.b16 %v956, %v955
  %v971 = vpack.c.b16 %v958, %v957
  %v972 = vpack.c.b16 %v960, %v959
  %v973 = vpack.c.b16 %v962, %v961
  %v974 = vpack.c.b16 %v964, %v963
  %v975 = vpack.c.b16 %v966, %v965
  %v976 = vpack.c.b16 %v968, %v967
  %985 = vmatpush.bf16.msra.mxu0 %v976
  %986 = vmatpush.bf16.msra.mxu0 %v975
  %987 = vmatpush.bf16.msra.mxu0 %v974
  %988 = vmatpush.bf16.msra.mxu0 %v973
  %989 = vmatpush.bf16.msra.mxu0 %v972
  %990 = vmatpush.bf16.msra.mxu0 %v971
  %991 = vmatpush.bf16.msra.mxu0 %v970
  %992 = vmatpush.bf16.msra.mxu0 %v969
  %993 = vmatmul.bf16.gmra.mxu0 %v920
  %v994 = vpop.f32.mrf.mxu0
  %v995 = vadd.f32 0.0, %v994
  %v996 = vpop.f32.mrf.mxu0
  %v997 = vadd.f32 0.0, %v996
  %998 = vdwg.mxu0
  %v1001 = vunpack.c.l.b16 %v900
  %v1002 = vunpack.c.l.b16 %v901
  %v1003 = vpack.c.b16 %v1002, %v1001
  %v1021 = vunpack.c.l.b16 %v904
  %v1022 = vunpack.c.l.b16 %v905
  %v1023 = vunpack.c.l.b16 %v906
  %v1024 = vunpack.c.l.b16 %v907
  %v1025 = vunpack.c.l.b16 %v908
  %v1026 = vunpack.c.l.b16 %v909
  %v1027 = vunpack.c.l.b16 %v910
  %v1028 = vunpack.c.l.b16 %v911
  %v1029 = vunpack.c.l.b16 %v912
  %v1030 = vunpack.c.l.b16 %v913
  %v1031 = vunpack.c.l.b16 %v914
  %v1032 = vunpack.c.l.b16 %v915
  %v1033 = vunpack.c.l.b16 %v916
  %v1034 = vunpack.c.l.b16 %v917
  %v1035 = vunpack.c.l.b16 %v918
  %v1036 = vunpack.c.l.b16 %v919
  %v1037 = vpack.c.b16 %v1022, %v1021
  %v1038 = vpack.c.b16 %v1024, %v1023
  %v1039 = vpack.c.b16 %v1026, %v1025
  %v1040 = vpack.c.b16 %v1028, %v1027
  %v1041 = vpack.c.b16 %v1030, %v1029
  %v1042 = vpack.c.b16 %v1032, %v1031
  %v1043 = vpack.c.b16 %v1034, %v1033
  %v1044 = vpack.c.b16 %v1036, %v1035
  %1053 = vmatpush.bf16.msra.mxu0 %v1044
  %1054 = vmatpush.bf16.msra.mxu0 %v1043
  %1055 = vmatpush.bf16.msra.mxu0 %v1042
  %1056 = vmatpush.bf16.msra.mxu0 %v1041
  %1057 = vmatpush.bf16.msra.mxu0 %v1040
  %1058 = vmatpush.bf16.msra.mxu0 %v1039
  %1059 = vmatpush.bf16.msra.mxu0 %v1038
  %1060 = vmatpush.bf16.msra.mxu0 %v1037
  %1061 = vmatmul.bf16.gmra.mxu0 %v1003
  %v1062 = vpop.f32.mrf.mxu0
  %v1063 = vadd.f32 %v995, %v1062
  %v1064 = vpop.f32.mrf.mxu0
  %v1065 = vadd.f32 %v997, %v1064
  %1066 = vdwg.mxu0
  %v1067 = vadd.f32 %v1063, %v206
  %v1068 = vadd.f32 %v1065, %v206
  %v1069 = vtanh.pop %v1067
  %v1070 = vtanh.pop %v1068
  %1071 = vst [vmem:[#allocation2] sm:$0xff] %v1069
  %1072 = vst [vmem:[#allocation2 + $0x8] sm:$0xff] %v1070
  %v1073 = vmax.f32 %v1069, 0.0
  %v1074 = vmax.f32 %v1070, 0.0
  %v1075 = vld [vmem:[%s216] sm:$0xff]
  %v1076 = vld [vmem:[%s216 + $0x8] sm:$0xff]
  %v1077 = vpack.c.bf16 %v1074, %v1073
  %v1078 = vld [vmem:[%s3] sm:$0xf]
  %v1079 = vld [vmem:[%s3 + $0x4] sm:$0xf]
  %v1080 = vld [vmem:[%s3 + $0x8] sm:$0xf]
  %v1081 = vld [vmem:[%s3 + $0xc] sm:$0xf]
  %v1082 = vld [vmem:[%s3 + $0x10] sm:$0xf]
  %v1083 = vld [vmem:[%s3 + $0x14] sm:$0xf]
  %v1084 = vld [vmem:[%s3 + $0x18] sm:$0xf]
  %v1085 = vld [vmem:[%s3 + $0x1c] sm:$0xf]
  %v1086 = vld [vmem:[%s3 + $0x20] sm:$0xf]
  %v1087 = vld [vmem:[%s3 + $0x24] sm:$0xf]
  %v1088 = vld [vmem:[%s3 + $0x28] sm:$0xf]
  %v1089 = vld [vmem:[%s3 + $0x2c] sm:$0xf]
  %v1090 = vld [vmem:[%s3 + $0x30] sm:$0xf]
  %v1091 = vld [vmem:[%s3 + $0x34] sm:$0xf]
  %v1092 = vld [vmem:[%s3 + $0x38] sm:$0xf]
  %v1093 = vld [vmem:[%s3 + $0x3c] sm:$0xf]
  %v1094 = vpack.c.bf16 %v1076, %v1075
  %v1095 = vld [vmem:[%s237] sm:$0xf]
  %v1096 = vld [vmem:[%s237 + $0x4] sm:$0xf]
  %v1097 = vld [vmem:[%s237 + $0x8] sm:$0xf]
  %v1098 = vld [vmem:[%s237 + $0xc] sm:$0xf]
  %v1099 = vld [vmem:[%s237 + $0x10] sm:$0xf]
  %v1100 = vld [vmem:[%s237 + $0x14] sm:$0xf]
  %v1101 = vld [vmem:[%s237 + $0x18] sm:$0xf]
  %v1102 = vld [vmem:[%s237 + $0x1c] sm:$0xf]
  %v1103 = vld [vmem:[%s237 + $0x20] sm:$0xf]
  %v1104 = vld [vmem:[%s237 + $0x24] sm:$0xf]
  %v1105 = vld [vmem:[%s237 + $0x28] sm:$0xf]
  %v1106 = vld [vmem:[%s237 + $0x2c] sm:$0xf]
  %v1107 = vld [vmem:[%s237 + $0x30] sm:$0xf]
  %v1108 = vld [vmem:[%s237 + $0x34] sm:$0xf]
  %v1109 = vld [vmem:[%s237 + $0x38] sm:$0xf]
  %v1110 = vld [vmem:[%s237 + $0x3c] sm:$0xf]
  %v1127 = vunpack.c.l.b16 %v1095
  %v1128 = vunpack.c.l.b16 %v1096
  %v1129 = vunpack.c.l.b16 %v1097
  %v1130 = vunpack.c.l.b16 %v1098
  %v1131 = vunpack.c.l.b16 %v1099
  %v1132 = vunpack.c.l.b16 %v1100
  %v1133 = vunpack.c.l.b16 %v1101
  %v1134 = vunpack.c.l.b16 %v1102
  %v1135 = vunpack.c.l.b16 %v1103
  %v1136 = vunpack.c.l.b16 %v1104
  %v1137 = vunpack.c.l.b16 %v1105
  %v1138 = vunpack.c.l.b16 %v1106
  %v1139 = vunpack.c.l.b16 %v1107
  %v1140 = vunpack.c.l.b16 %v1108
  %v1141 = vunpack.c.l.b16 %v1109
  %v1142 = vunpack.c.l.b16 %v1110
  %v1143 = vpack.c.b16 %v1128, %v1127
  %v1144 = vpack.c.b16 %v1130, %v1129
  %v1145 = vpack.c.b16 %v1132, %v1131
  %v1146 = vpack.c.b16 %v1134, %v1133
  %v1147 = vpack.c.b16 %v1136, %v1135
  %v1148 = vpack.c.b16 %v1138, %v1137
  %v1149 = vpack.c.b16 %v1140, %v1139
  %v1150 = vpack.c.b16 %v1142, %v1141
  %1159 = vmatpush.bf16.msra.mxu0 %v1150
  %1160 = vmatpush.bf16.msra.mxu0 %v1149
  %1161 = vmatpush.bf16.msra.mxu0 %v1148
  %1162 = vmatpush.bf16.msra.mxu0 %v1147
  %1163 = vmatpush.bf16.msra.mxu0 %v1146
  %1164 = vmatpush.bf16.msra.mxu0 %v1145
  %1165 = vmatpush.bf16.msra.mxu0 %v1144
  %1166 = vmatpush.bf16.msra.mxu0 %v1143
  %1167 = vmatmul.bf16.gmra.mxu0 %v1094
  %v1168 = vpop.f32.mrf.mxu0
  %v1169 = vadd.f32 0.0, %v1168
  %v1170 = vpop.f32.mrf.mxu0
  %v1171 = vadd.f32 0.0, %v1170
  %1172 = vdwg.mxu0
  %v1189 = vunpack.c.l.b16 %v1078
  %v1190 = vunpack.c.l.b16 %v1079
  %v1191 = vunpack.c.l.b16 %v1080
  %v1192 = vunpack.c.l.b16 %v1081
  %v1193 = vunpack.c.l.b16 %v1082
  %v1194 = vunpack.c.l.b16 %v1083
  %v1195 = vunpack.c.l.b16 %v1084
  %v1196 = vunpack.c.l.b16 %v1085
  %v1197 = vunpack.c.l.b16 %v1086
  %v1198 = vunpack.c.l.b16 %v1087
  %v1199 = vunpack.c.l.b16 %v1088
  %v1200 = vunpack.c.l.b16 %v1089
  %v1201 = vunpack.c.l.b16 %v1090
  %v1202 = vunpack.c.l.b16 %v1091
  %v1203 = vunpack.c.l.b16 %v1092
  %v1204 = vunpack.c.l.b16 %v1093
  %v1205 = vpack.c.b16 %v1190, %v1189
  %v1206 = vpack.c.b16 %v1192, %v1191
  %v1207 = vpack.c.b16 %v1194, %v1193
  %v1208 = vpack.c.b16 %v1196, %v1195
  %v1209 = vpack.c.b16 %v1198, %v1197
  %v1210 = vpack.c.b16 %v1200, %v1199
  %v1211 = vpack.c.b16 %v1202, %v1201
  %v1212 = vpack.c.b16 %v1204, %v1203
  %1221 = vmatpush.bf16.msra.mxu0 %v1212
  %1222 = vmatpush.bf16.msra.mxu0 %v1211
  %1223 = vmatpush.bf16.msra.mxu0 %v1210
  %1224 = vmatpush.bf16.msra.mxu0 %v1209
  %1225 = vmatpush.bf16.msra.mxu0 %v1208
  %1226 = vmatpush.bf16.msra.mxu0 %v1207
  %1227 = vmatpush.bf16.msra.mxu0 %v1206
  %1228 = vmatpush.bf16.msra.mxu0 %v1205
  %1229 = vmatmul.bf16.gmra.mxu0 %v1077
  %v1230 = vpop.f32.mrf.mxu0
  %v1231 = vadd.f32 %v1169, %v1230
  %v1232 = vpop.f32.mrf.mxu0
  %v1233 = vadd.f32 %v1171, %v1232
  %1234 = vdwg.mxu0
  %v1235 = vadd.f32 %v1231, %v379
  %v1236 = vadd.f32 %v1233, %v379
  %v1237 = vtanh.pop %v1235
  %v1238 = vtanh.pop %v1236
  %1239 = vst [vmem:[%s216] sm:$0xff] %v1237
  %1240 = vst [vmem:[%s216 + $0x8] sm:$0xff] %v1238
  %v1241 = vmax.f32 %v1237, 0.0
  %v1242 = vmax.f32 %v1238, 0.0
  %v1243 = vpack.c.bf16 %v1242, %v1241
  %v1244 = vld [vmem:[%s5] sm:$0xf]
  %v1245 = vld [vmem:[%s5 + $0x4] sm:$0xf]
  %v1246 = vld [vmem:[%s5 + $0x8] sm:$0xf]
  %v1247 = vld [vmem:[%s5 + $0xc] sm:$0xf]
  %v1248 = vld [vmem:[%s5 + $0x10] sm:$0xf]
  %v1249 = vld [vmem:[%s5 + $0x14] sm:$0xf]
  %v1250 = vld [vmem:[%s5 + $0x18] sm:$0xf]
  %v1251 = vld [vmem:[%s5 + $0x1c] sm:$0xf]
  %v1252 = vld [vmem:[%s5 + $0x20] sm:$0xf]
  %v1253 = vld [vmem:[%s5 + $0x24] sm:$0xf]
  %v1254 = vld [vmem:[%s5 + $0x28] sm:$0xf]
  %v1255 = vld [vmem:[%s5 + $0x2c] sm:$0xf]
  %v1256 = vld [vmem:[%s5 + $0x30] sm:$0xf]
  %v1257 = vld [vmem:[%s5 + $0x34] sm:$0xf]
  %v1258 = vld [vmem:[%s5 + $0x38] sm:$0xf]
  %v1259 = vld [vmem:[%s5 + $0x3c] sm:$0xf]
  %v1276 = vunpack.c.l.b16 %v1244
  %v1277 = vunpack.c.l.b16 %v1245
  %v1278 = vunpack.c.l.b16 %v1246
  %v1279 = vunpack.c.l.b16 %v1247
  %v1280 = vunpack.c.l.b16 %v1248
  %v1281 = vunpack.c.l.b16 %v1249
  %v1282 = vunpack.c.l.b16 %v1250
  %v1283 = vunpack.c.l.b16 %v1251
  %v1284 = vunpack.c.l.b16 %v1252
  %v1285 = vunpack.c.l.b16 %v1253
  %v1286 = vunpack.c.l.b16 %v1254
  %v1287 = vunpack.c.l.b16 %v1255
  %v1288 = vunpack.c.l.b16 %v1256
  %v1289 = vunpack.c.l.b16 %v1257
  %v1290 = vunpack.c.l.b16 %v1258
  %v1291 = vunpack.c.l.b16 %v1259
  %v1292 = vpack.c.b16 %v1277, %v1276
  %v1293 = vpack.c.b16 %v1279, %v1278
  %v1294 = vpack.c.b16 %v1281, %v1280
  %v1295 = vpack.c.b16 %v1283, %v1282
  %v1296 = vpack.c.b16 %v1285, %v1284
  %v1297 = vpack.c.b16 %v1287, %v1286
  %v1298 = vpack.c.b16 %v1289, %v1288
  %v1299 = vpack.c.b16 %v1291, %v1290
  %1308 = vmatpush.bf16.msra.mxu0 %v1299
  %1309 = vmatpush.bf16.msra.mxu0 %v1298
  %1310 = vmatpush.bf16.msra.mxu0 %v1297
  %1311 = vmatpush.bf16.msra.mxu0 %v1296
  %1312 = vmatpush.bf16.msra.mxu0 %v1295
  %1313 = vmatpush.bf16.msra.mxu0 %v1294
  %1314 = vmatpush.bf16.msra.mxu0 %v1293
  %1315 = vmatpush.bf16.msra.mxu0 %v1292
  %1316 = vmatmul.bf16.gmra.mxu0 %v1243
  %v1317 = vpop.f32.mrf.mxu0
  %v1318 = vadd.f32 %v407, %v1317
  %v1319 = vpop.f32.mrf.mxu0
  %v1320 = vadd.f32 %v407, %v1319
  %1321 = vdwg.mxu0
  %s1322 = scalar_lea.vmem %s7, 32
  %1323 = vst [vmem:[%s1322] sm:$0xff] %v1318
  %1324 = vst [vmem:[%s1322 + $0x8] sm:$0xff] %v1320
  %s1325 = scalar_lea.vmem %s0, 24
  %v1326 = vld [vmem:[%s1325] sm:$0xf]
  %v1327 = vld [vmem:[%s1325 + $0x4] sm:$0xf]
  %v1328 = vld [vmem:[#allocation2] sm:$0xff]
  %v1329 = vld [vmem:[#allocation2 + $0x8] sm:$0xff]
  %v1330 = vld [vmem:[%s1] sm:$0xf]
  %v1331 = vld [vmem:[%s1 + $0x4] sm:$0xf]
  %v1332 = vld [vmem:[%s1 + $0x8] sm:$0xf]
  %v1333 = vld [vmem:[%s1 + $0xc] sm:$0xf]
  %v1334 = vld [vmem:[%s1 + $0x10] sm:$0xf]
  %v1335 = vld [vmem:[%s1 + $0x14] sm:$0xf]
  %v1336 = vld [vmem:[%s1 + $0x18] sm:$0xf]
  %v1337 = vld [vmem:[%s1 + $0x1c] sm:$0xf]
  %v1338 = vld [vmem:[%s1 + $0x20] sm:$0xf]
  %v1339 = vld [vmem:[%s1 + $0x24] sm:$0xf]
  %v1340 = vld [vmem:[%s1 + $0x28] sm:$0xf]
  %v1341 = vld [vmem:[%s1 + $0x2c] sm:$0xf]
  %v1342 = vld [vmem:[%s1 + $0x30] sm:$0xf]
  %v1343 = vld [vmem:[%s1 + $0x34] sm:$0xf]
  %v1344 = vld [vmem:[%s1 + $0x38] sm:$0xf]
  %v1345 = vld [vmem:[%s1 + $0x3c] sm:$0xf]
  %v1346 = vpack.c.bf16 %v1329, %v1328
  %v1347 = vld [vmem:[%s2] sm:$0xf]
  %v1348 = vld [vmem:[%s2 + $0x4] sm:$0xf]
  %v1349 = vld [vmem:[%s2 + $0x8] sm:$0xf]
  %v1350 = vld [vmem:[%s2 + $0xc] sm:$0xf]
  %v1351 = vld [vmem:[%s2 + $0x10] sm:$0xf]
  %v1352 = vld [vmem:[%s2 + $0x14] sm:$0xf]
  %v1353 = vld [vmem:[%s2 + $0x18] sm:$0xf]
  %v1354 = vld [vmem:[%s2 + $0x1c] sm:$0xf]
  %v1355 = vld [vmem:[%s2 + $0x20] sm:$0xf]
  %v1356 = vld [vmem:[%s2 + $0x24] sm:$0xf]
  %v1357 = vld [vmem:[%s2 + $0x28] sm:$0xf]
  %v1358 = vld [vmem:[%s2 + $0x2c] sm:$0xf]
  %v1359 = vld [vmem:[%s2 + $0x30] sm:$0xf]
  %v1360 = vld [vmem:[%s2 + $0x34] sm:$0xf]
  %v1361 = vld [vmem:[%s2 + $0x38] sm:$0xf]
  %v1362 = vld [vmem:[%s2 + $0x3c] sm:$0xf]
  %v1379 = vunpack.c.l.b16 %v1347
  %v1380 = vunpack.c.l.b16 %v1348
  %v1381 = vunpack.c.l.b16 %v1349
  %v1382 = vunpack.c.l.b16 %v1350
  %v1383 = vunpack.c.l.b16 %v1351
  %v1384 = vunpack.c.l.b16 %v1352
  %v1385 = vunpack.c.l.b16 %v1353
  %v1386 = vunpack.c.l.b16 %v1354
  %v1387 = vunpack.c.l.b16 %v1355
  %v1388 = vunpack.c.l.b16 %v1356
  %v1389 = vunpack.c.l.b16 %v1357
  %v1390 = vunpack.c.l.b16 %v1358
  %v1391 = vunpack.c.l.b16 %v1359
  %v1392 = vunpack.c.l.b16 %v1360
  %v1393 = vunpack.c.l.b16 %v1361
  %v1394 = vunpack.c.l.b16 %v1362
  %v1395 = vpack.c.b16 %v1380, %v1379
  %v1396 = vpack.c.b16 %v1382, %v1381
  %v1397 = vpack.c.b16 %v1384, %v1383
  %v1398 = vpack.c.b16 %v1386, %v1385
  %v1399 = vpack.c.b16 %v1388, %v1387
  %v1400 = vpack.c.b16 %v1390, %v1389
  %v1401 = vpack.c.b16 %v1392, %v1391
  %v1402 = vpack.c.b16 %v1394, %v1393
  %1411 = vmatpush.bf16.msra.mxu0 %v1402
  %1412 = vmatpush.bf16.msra.mxu0 %v1401
  %1413 = vmatpush.bf16.msra.mxu0 %v1400
  %1414 = vmatpush.bf16.msra.mxu0 %v1399
  %1415 = vmatpush.bf16.msra.mxu0 %v1398
  %1416 = vmatpush.bf16.msra.mxu0 %v1397
  %1417 = vmatpush.bf16.msra.mxu0 %v1396
  %1418 = vmatpush.bf16.msra.mxu0 %v1395
  %1419 = vmatmul.bf16.gmra.mxu0 %v1346
  %v1420 = vpop.f32.mrf.mxu0
  %v1421 = vadd.f32 0.0, %v1420
  %v1422 = vpop.f32.mrf.mxu0
  %v1423 = vadd.f32 0.0, %v1422
  %1424 = vdwg.mxu0
  %v1427 = vunpack.c.l.b16 %v1326
  %v1428 = vunpack.c.l.b16 %v1327
  %v1429 = vpack.c.b16 %v1428, %v1427
  %v1447 = vunpack.c.l.b16 %v1330
  %v1448 = vunpack.c.l.b16 %v1331
  %v1449 = vunpack.c.l.b16 %v1332
  %v1450 = vunpack.c.l.b16 %v1333
  %v1451 = vunpack.c.l.b16 %v1334
  %v1452 = vunpack.c.l.b16 %v1335
  %v1453 = vunpack.c.l.b16 %v1336
  %v1454 = vunpack.c.l.b16 %v1337
  %v1455 = vunpack.c.l.b16 %v1338
  %v1456 = vunpack.c.l.b16 %v1339
  %v1457 = vunpack.c.l.b16 %v1340
  %v1458 = vunpack.c.l.b16 %v1341
  %v1459 = vunpack.c.l.b16 %v1342
  %v1460 = vunpack.c.l.b16 %v1343
  %v1461 = vunpack.c.l.b16 %v1344
  %v1462 = vunpack.c.l.b16 %v1345
  %v1463 = vpack.c.b16 %v1448, %v1447
  %v1464 = vpack.c.b16 %v1450, %v1449
  %v1465 = vpack.c.b16 %v1452, %v1451
  %v1466 = vpack.c.b16 %v1454, %v1453
  %v1467 = vpack.c.b16 %v1456, %v1455
  %v1468 = vpack.c.b16 %v1458, %v1457
  %v1469 = vpack.c.b16 %v1460, %v1459
  %v1470 = vpack.c.b16 %v1462, %v1461
  %1479 = vmatpush.bf16.msra.mxu0 %v1470
  %1480 = vmatpush.bf16.msra.mxu0 %v1469
  %1481 = vmatpush.bf16.msra.mxu0 %v1468
  %1482 = vmatpush.bf16.msra.mxu0 %v1467
  %1483 = vmatpush.bf16.msra.mxu0 %v1466
  %1484 = vmatpush.bf16.msra.mxu0 %v1465
  %1485 = vmatpush.bf16.msra.mxu0 %v1464
  %1486 = vmatpush.bf16.msra.mxu0 %v1463
  %1487 = vmatmul.bf16.gmra.mxu0 %v1429
  %v1488 = vpop.f32.mrf.mxu0
  %v1489 = vadd.f32 %v1421, %v1488
  %v1490 = vpop.f32.mrf.mxu0
  %v1491 = vadd.f32 %v1423, %v1490
  %1492 = vdwg.mxu0
  %v1493 = vadd.f32 %v1489, %v206
  %v1494 = vadd.f32 %v1491, %v206
  %v1495 = vtanh.pop %v1493
  %v1496 = vtanh.pop %v1494
  %1497 = vst [vmem:[#allocation2] sm:$0xff] %v1495
  %1498 = vst [vmem:[#allocation2 + $0x8] sm:$0xff] %v1496
  %v1499 = vmax.f32 %v1495, 0.0
  %v1500 = vmax.f32 %v1496, 0.0
  %v1501 = vld [vmem:[%s216] sm:$0xff]
  %v1502 = vld [vmem:[%s216 + $0x8] sm:$0xff]
  %v1503 = vpack.c.bf16 %v1500, %v1499
  %v1504 = vld [vmem:[%s3] sm:$0xf]
  %v1505 = vld [vmem:[%s3 + $0x4] sm:$0xf]
  %v1506 = vld [vmem:[%s3 + $0x8] sm:$0xf]
  %v1507 = vld [vmem:[%s3 + $0xc] sm:$0xf]
  %v1508 = vld [vmem:[%s3 + $0x10] sm:$0xf]
  %v1509 = vld [vmem:[%s3 + $0x14] sm:$0xf]
  %v1510 = vld [vmem:[%s3 + $0x18] sm:$0xf]
  %v1511 = vld [vmem:[%s3 + $0x1c] sm:$0xf]
  %v1512 = vld [vmem:[%s3 + $0x20] sm:$0xf]
  %v1513 = vld [vmem:[%s3 + $0x24] sm:$0xf]
  %v1514 = vld [vmem:[%s3 + $0x28] sm:$0xf]
  %v1515 = vld [vmem:[%s3 + $0x2c] sm:$0xf]
  %v1516 = vld [vmem:[%s3 + $0x30] sm:$0xf]
  %v1517 = vld [vmem:[%s3 + $0x34] sm:$0xf]
  %v1518 = vld [vmem:[%s3 + $0x38] sm:$0xf]
  %v1519 = vld [vmem:[%s3 + $0x3c] sm:$0xf]
  %v1520 = vpack.c.bf16 %v1502, %v1501
  %v1521 = vld [vmem:[%s237] sm:$0xf]
  %v1522 = vld [vmem:[%s237 + $0x4] sm:$0xf]
  %v1523 = vld [vmem:[%s237 + $0x8] sm:$0xf]
  %v1524 = vld [vmem:[%s237 + $0xc] sm:$0xf]
  %v1525 = vld [vmem:[%s237 + $0x10] sm:$0xf]
  %v1526 = vld [vmem:[%s237 + $0x14] sm:$0xf]
  %v1527 = vld [vmem:[%s237 + $0x18] sm:$0xf]
  %v1528 = vld [vmem:[%s237 + $0x1c] sm:$0xf]
  %v1529 = vld [vmem:[%s237 + $0x20] sm:$0xf]
  %v1530 = vld [vmem:[%s237 + $0x24] sm:$0xf]
  %v1531 = vld [vmem:[%s237 + $0x28] sm:$0xf]
  %v1532 = vld [vmem:[%s237 + $0x2c] sm:$0xf]
  %v1533 = vld [vmem:[%s237 + $0x30] sm:$0xf]
  %v1534 = vld [vmem:[%s237 + $0x34] sm:$0xf]
  %v1535 = vld [vmem:[%s237 + $0x38] sm:$0xf]
  %v1536 = vld [vmem:[%s237 + $0x3c] sm:$0xf]
  %v1553 = vunpack.c.l.b16 %v1521
  %v1554 = vunpack.c.l.b16 %v1522
  %v1555 = vunpack.c.l.b16 %v1523
  %v1556 = vunpack.c.l.b16 %v1524
  %v1557 = vunpack.c.l.b16 %v1525
  %v1558 = vunpack.c.l.b16 %v1526
  %v1559 = vunpack.c.l.b16 %v1527
  %v1560 = vunpack.c.l.b16 %v1528
  %v1561 = vunpack.c.l.b16 %v1529
  %v1562 = vunpack.c.l.b16 %v1530
  %v1563 = vunpack.c.l.b16 %v1531
  %v1564 = vunpack.c.l.b16 %v1532
  %v1565 = vunpack.c.l.b16 %v1533
  %v1566 = vunpack.c.l.b16 %v1534
  %v1567 = vunpack.c.l.b16 %v1535
  %v1568 = vunpack.c.l.b16 %v1536
  %v1569 = vpack.c.b16 %v1554, %v1553
  %v1570 = vpack.c.b16 %v1556, %v1555
  %v1571 = vpack.c.b16 %v1558, %v1557
  %v1572 = vpack.c.b16 %v1560, %v1559
  %v1573 = vpack.c.b16 %v1562, %v1561
  %v1574 = vpack.c.b16 %v1564, %v1563
  %v1575 = vpack.c.b16 %v1566, %v1565
  %v1576 = vpack.c.b16 %v1568, %v1567
  %1585 = vmatpush.bf16.msra.mxu0 %v1576
  %1586 = vmatpush.bf16.msra.mxu0 %v1575
  %1587 = vmatpush.bf16.msra.mxu0 %v1574
  %1588 = vmatpush.bf16.msra.mxu0 %v1573
  %1589 = vmatpush.bf16.msra.mxu0 %v1572
  %1590 = vmatpush.bf16.msra.mxu0 %v1571
  %1591 = vmatpush.bf16.msra.mxu0 %v1570
  %1592 = vmatpush.bf16.msra.mxu0 %v1569
  %1593 = vmatmul.bf16.gmra.mxu0 %v1520
  %v1594 = vpop.f32.mrf.mxu0
  %v1595 = vadd.f32 0.0, %v1594
  %v1596 = vpop.f32.mrf.mxu0
  %v1597 = vadd.f32 0.0, %v1596
  %1598 = vdwg.mxu0
  %v1615 = vunpack.c.l.b16 %v1504
  %v1616 = vunpack.c.l.b16 %v1505
  %v1617 = vunpack.c.l.b16 %v1506
  %v1618 = vunpack.c.l.b16 %v1507
  %v1619 = vunpack.c.l.b16 %v1508
  %v1620 = vunpack.c.l.b16 %v1509
  %v1621 = vunpack.c.l.b16 %v1510
  %v1622 = vunpack.c.l.b16 %v1511
  %v1623 = vunpack.c.l.b16 %v1512
  %v1624 = vunpack.c.l.b16 %v1513
  %v1625 = vunpack.c.l.b16 %v1514
  %v1626 = vunpack.c.l.b16 %v1515
  %v1627 = vunpack.c.l.b16 %v1516
  %v1628 = vunpack.c.l.b16 %v1517
  %v1629 = vunpack.c.l.b16 %v1518
  %v1630 = vunpack.c.l.b16 %v1519
  %v1631 = vpack.c.b16 %v1616, %v1615
  %v1632 = vpack.c.b16 %v1618, %v1617
  %v1633 = vpack.c.b16 %v1620, %v1619
  %v1634 = vpack.c.b16 %v1622, %v1621
  %v1635 = vpack.c.b16 %v1624, %v1623
  %v1636 = vpack.c.b16 %v1626, %v1625
  %v1637 = vpack.c.b16 %v1628, %v1627
  %v1638 = vpack.c.b16 %v1630, %v1629
  %1647 = vmatpush.bf16.msra.mxu0 %v1638
  %1648 = vmatpush.bf16.msra.mxu0 %v1637
  %1649 = vmatpush.bf16.msra.mxu0 %v1636
  %1650 = vmatpush.bf16.msra.mxu0 %v1635
  %1651 = vmatpush.bf16.msra.mxu0 %v1634
  %1652 = vmatpush.bf16.msra.mxu0 %v1633
  %1653 = vmatpush.bf16.msra.mxu0 %v1632
  %1654 = vmatpush.bf16.msra.mxu0 %v1631
  %1655 = vmatmul.bf16.gmra.mxu0 %v1503
  %v1656 = vpop.f32.mrf.mxu0
  %v1657 = vadd.f32 %v1595, %v1656
  %v1658 = vpop.f32.mrf.mxu0
  %v1659 = vadd.f32 %v1597, %v1658
  %1660 = vdwg.mxu0
  %v1661 = vadd.f32 %v1657, %v379
  %v1662 = vadd.f32 %v1659, %v379
  %v1663 = vtanh.pop %v1661
  %v1664 = vtanh.pop %v1662
  %1665 = vst [vmem:[%s216] sm:$0xff] %v1663
  %1666 = vst [vmem:[%s216 + $0x8] sm:$0xff] %v1664
  %v1667 = vmax.f32 %v1663, 0.0
  %v1668 = vmax.f32 %v1664, 0.0
  %v1669 = vpack.c.bf16 %v1668, %v1667
  %v1670 = vld [vmem:[%s5] sm:$0xf]
  %v1671 = vld [vmem:[%s5 + $0x4] sm:$0xf]
  %v1672 = vld [vmem:[%s5 + $0x8] sm:$0xf]
  %v1673 = vld [vmem:[%s5 + $0xc] sm:$0xf]
  %v1674 = vld [vmem:[%s5 + $0x10] sm:$0xf]
  %v1675 = vld [vmem:[%s5 + $0x14] sm:$0xf]
  %v1676 = vld [vmem:[%s5 + $0x18] sm:$0xf]
  %v1677 = vld [vmem:[%s5 + $0x1c] sm:$0xf]
  %v1678 = vld [vmem:[%s5 + $0x20] sm:$0xf]
  %v1679 = vld [vmem:[%s5 + $0x24] sm:$0xf]
  %v1680 = vld [vmem:[%s5 + $0x28] sm:$0xf]
  %v1681 = vld [vmem:[%s5 + $0x2c] sm:$0xf]
  %v1682 = vld [vmem:[%s5 + $0x30] sm:$0xf]
  %v1683 = vld [vmem:[%s5 + $0x34] sm:$0xf]
  %v1684 = vld [vmem:[%s5 + $0x38] sm:$0xf]
  %v1685 = vld [vmem:[%s5 + $0x3c] sm:$0xf]
  %v1702 = vunpack.c.l.b16 %v1670
  %v1703 = vunpack.c.l.b16 %v1671
  %v1704 = vunpack.c.l.b16 %v1672
  %v1705 = vunpack.c.l.b16 %v1673
  %v1706 = vunpack.c.l.b16 %v1674
  %v1707 = vunpack.c.l.b16 %v1675
  %v1708 = vunpack.c.l.b16 %v1676
  %v1709 = vunpack.c.l.b16 %v1677
  %v1710 = vunpack.c.l.b16 %v1678
  %v1711 = vunpack.c.l.b16 %v1679
  %v1712 = vunpack.c.l.b16 %v1680
  %v1713 = vunpack.c.l.b16 %v1681
  %v1714 = vunpack.c.l.b16 %v1682
  %v1715 = vunpack.c.l.b16 %v1683
  %v1716 = vunpack.c.l.b16 %v1684
  %v1717 = vunpack.c.l.b16 %v1685
  %v1718 = vpack.c.b16 %v1703, %v1702
  %v1719 = vpack.c.b16 %v1705, %v1704
  %v1720 = vpack.c.b16 %v1707, %v1706
  %v1721 = vpack.c.b16 %v1709, %v1708
  %v1722 = vpack.c.b16 %v1711, %v1710
  %v1723 = vpack.c.b16 %v1713, %v1712
  %v1724 = vpack.c.b16 %v1715, %v1714
  %v1725 = vpack.c.b16 %v1717, %v1716
  %1734 = vmatpush.bf16.msra.mxu0 %v1725
  %1735 = vmatpush.bf16.msra.mxu0 %v1724
  %1736 = vmatpush.bf16.msra.mxu0 %v1723
  %1737 = vmatpush.bf16.msra.mxu0 %v1722
  %1738 = vmatpush.bf16.msra.mxu0 %v1721
  %1739 = vmatpush.bf16.msra.mxu0 %v1720
  %1740 = vmatpush.bf16.msra.mxu0 %v1719
  %1741 = vmatpush.bf16.msra.mxu0 %v1718
  %1742 = vmatmul.bf16.gmra.mxu0 %v1669
  %v1743 = vpop.f32.mrf.mxu0
  %v1744 = vadd.f32 %v407, %v1743
  %v1745 = vpop.f32.mrf.mxu0
  %v1746 = vadd.f32 %v407, %v1745
  %1747 = vdwg.mxu0
  %s1748 = scalar_lea.vmem %s7, 48
  %1749 = vst [vmem:[%s1748] sm:$0xff] %v1744
  %1750 = vst [vmem:[%s1748 + $0x8] sm:$0xff] %v1746
  %s1751 = scalar_lea.vmem %s0, 32
  %v1752 = vld [vmem:[%s1751] sm:$0xf]
  %v1753 = vld [vmem:[%s1751 + $0x4] sm:$0xf]
  %v1754 = vld [vmem:[#allocation2] sm:$0xff]
  %v1755 = vld [vmem:[#allocation2 + $0x8] sm:$0xff]
  %v1756 = vld [vmem:[%s1] sm:$0xf]
  %v1757 = vld [vmem:[%s1 + $0x4] sm:$0xf]
  %v1758 = vld [vmem:[%s1 + $0x8] sm:$0xf]
  %v1759 = vld [vmem:[%s1 + $0xc] sm:$0xf]
  %v1760 = vld [vmem:[%s1 + $0x10] sm:$0xf]
  %v1761 = vld [vmem:[%s1 + $0x14] sm:$0xf]
  %v1762 = vld [vmem:[%s1 + $0x18] sm:$0xf]
  %v1763 = vld [vmem:[%s1 + $0x1c] sm:$0xf]
  %v1764 = vld [vmem:[%s1 + $0x20] sm:$0xf]
  %v1765 = vld [vmem:[%s1 + $0x24] sm:$0xf]
  %v1766 = vld [vmem:[%s1 + $0x28] sm:$0xf]
  %v1767 = vld [vmem:[%s1 + $0x2c] sm:$0xf]
  %v1768 = vld [vmem:[%s1 + $0x30] sm:$0xf]
  %v1769 = vld [vmem:[%s1 + $0x34] sm:$0xf]
  %v1770 = vld [vmem:[%s1 + $0x38] sm:$0xf]
  %v1771 = vld [vmem:[%s1 + $0x3c] sm:$0xf]
  %v1772 = vpack.c.bf16 %v1755, %v1754
  %v1773 = vld [vmem:[%s2] sm:$0xf]
  %v1774 = vld [vmem:[%s2 + $0x4] sm:$0xf]
  %v1775 = vld [vmem:[%s2 + $0x8] sm:$0xf]
  %v1776 = vld [vmem:[%s2 + $0xc] sm:$0xf]
  %v1777 = vld [vmem:[%s2 + $0x10] sm:$0xf]
  %v1778 = vld [vmem:[%s2 + $0x14] sm:$0xf]
  %v1779 = vld [vmem:[%s2 + $0x18] sm:$0xf]
  %v1780 = vld [vmem:[%s2 + $0x1c] sm:$0xf]
  %v1781 = vld [vmem:[%s2 + $0x20] sm:$0xf]
  %v1782 = vld [vmem:[%s2 + $0x24] sm:$0xf]
  %v1783 = vld [vmem:[%s2 + $0x28] sm:$0xf]
  %v1784 = vld [vmem:[%s2 + $0x2c] sm:$0xf]
  %v1785 = vld [vmem:[%s2 + $0x30] sm:$0xf]
  %v1786 = vld [vmem:[%s2 + $0x34] sm:$0xf]
  %v1787 = vld [vmem:[%s2 + $0x38] sm:$0xf]
  %v1788 = vld [vmem:[%s2 + $0x3c] sm:$0xf]
  %v1805 = vunpack.c.l.b16 %v1773
  %v1806 = vunpack.c.l.b16 %v1774
  %v1807 = vunpack.c.l.b16 %v1775
  %v1808 = vunpack.c.l.b16 %v1776
  %v1809 = vunpack.c.l.b16 %v1777
  %v1810 = vunpack.c.l.b16 %v1778
  %v1811 = vunpack.c.l.b16 %v1779
  %v1812 = vunpack.c.l.b16 %v1780
  %v1813 = vunpack.c.l.b16 %v1781
  %v1814 = vunpack.c.l.b16 %v1782
  %v1815 = vunpack.c.l.b16 %v1783
  %v1816 = vunpack.c.l.b16 %v1784
  %v1817 = vunpack.c.l.b16 %v1785
  %v1818 = vunpack.c.l.b16 %v1786
  %v1819 = vunpack.c.l.b16 %v1787
  %v1820 = vunpack.c.l.b16 %v1788
  %v1821 = vpack.c.b16 %v1806, %v1805
  %v1822 = vpack.c.b16 %v1808, %v1807
  %v1823 = vpack.c.b16 %v1810, %v1809
  %v1824 = vpack.c.b16 %v1812, %v1811
  %v1825 = vpack.c.b16 %v1814, %v1813
  %v1826 = vpack.c.b16 %v1816, %v1815
  %v1827 = vpack.c.b16 %v1818, %v1817
  %v1828 = vpack.c.b16 %v1820, %v1819
  %1837 = vmatpush.bf16.msra.mxu0 %v1828
  %1838 = vmatpush.bf16.msra.mxu0 %v1827
  %1839 = vmatpush.bf16.msra.mxu0 %v1826
  %1840 = vmatpush.bf16.msra.mxu0 %v1825
  %1841 = vmatpush.bf16.msra.mxu0 %v1824
  %1842 = vmatpush.bf16.msra.mxu0 %v1823
  %1843 = vmatpush.bf16.msra.mxu0 %v1822
  %1844 = vmatpush.bf16.msra.mxu0 %v1821
  %1845 = vmatmul.bf16.gmra.mxu0 %v1772
  %v1846 = vpop.f32.mrf.mxu0
  %v1847 = vadd.f32 0.0, %v1846
  %v1848 = vpop.f32.mrf.mxu0
  %v1849 = vadd.f32 0.0, %v1848
  %1850 = vdwg.mxu0
  %v1853 = vunpack.c.l.b16 %v1752
  %v1854 = vunpack.c.l.b16 %v1753
  %v1855 = vpack.c.b16 %v1854, %v1853
  %v1873 = vunpack.c.l.b16 %v1756
  %v1874 = vunpack.c.l.b16 %v1757
  %v1875 = vunpack.c.l.b16 %v1758
  %v1876 = vunpack.c.l.b16 %v1759
  %v1877 = vunpack.c.l.b16 %v1760
  %v1878 = vunpack.c.l.b16 %v1761
  %v1879 = vunpack.c.l.b16 %v1762
  %v1880 = vunpack.c.l.b16 %v1763
  %v1881 = vunpack.c.l.b16 %v1764
  %v1882 = vunpack.c.l.b16 %v1765
  %v1883 = vunpack.c.l.b16 %v1766
  %v1884 = vunpack.c.l.b16 %v1767
  %v1885 = vunpack.c.l.b16 %v1768
  %v1886 = vunpack.c.l.b16 %v1769
  %v1887 = vunpack.c.l.b16 %v1770
  %v1888 = vunpack.c.l.b16 %v1771
  %v1889 = vpack.c.b16 %v1874, %v1873
  %v1890 = vpack.c.b16 %v1876, %v1875
  %v1891 = vpack.c.b16 %v1878, %v1877
  %v1892 = vpack.c.b16 %v1880, %v1879
  %v1893 = vpack.c.b16 %v1882, %v1881
  %v1894 = vpack.c.b16 %v1884, %v1883
  %v1895 = vpack.c.b16 %v1886, %v1885
  %v1896 = vpack.c.b16 %v1888, %v1887
  %1905 = vmatpush.bf16.msra.mxu0 %v1896
  %1906 = vmatpush.bf16.msra.mxu0 %v1895
  %1907 = vmatpush.bf16.msra.mxu0 %v1894
  %1908 = vmatpush.bf16.msra.mxu0 %v1893
  %1909 = vmatpush.bf16.msra.mxu0 %v1892
  %1910 = vmatpush.bf16.msra.mxu0 %v1891
  %1911 = vmatpush.bf16.msra.mxu0 %v1890
  %1912 = vmatpush.bf16.msra.mxu0 %v1889
  %1913 = vmatmul.bf16.gmra.mxu0 %v1855
  %v1914 = vpop.f32.mrf.mxu0
  %v1915 = vadd.f32 %v1847, %v1914
  %v1916 = vpop.f32.mrf.mxu0
  %v1917 = vadd.f32 %v1849, %v1916
  %1918 = vdwg.mxu0
  %v1919 = vadd.f32 %v1915, %v206
  %v1920 = vadd.f32 %v1917, %v206
  %v1921 = vtanh.pop %v1919
  %v1922 = vtanh.pop %v1920
  %1923 = vst [vmem:[#allocation2] sm:$0xff] %v1921
  %1924 = vst [vmem:[#allocation2 + $0x8] sm:$0xff] %v1922
  %v1925 = vmax.f32 %v1921, 0.0
  %v1926 = vmax.f32 %v1922, 0.0
  %v1927 = vld [vmem:[%s216] sm:$0xff]
  %v1928 = vld [vmem:[%s216 + $0x8] sm:$0xff]
  %v1929 = vpack.c.bf16 %v1926, %v1925
  %v1930 = vld [vmem:[%s3] sm:$0xf]
  %v1931 = vld [vmem:[%s3 + $0x4] sm:$0xf]
  %v1932 = vld [vmem:[%s3 + $0x8] sm:$0xf]
  %v1933 = vld [vmem:[%s3 + $0xc] sm:$0xf]
  %v1934 = vld [vmem:[%s3 + $0x10] sm:$0xf]
  %v1935 = vld [vmem:[%s3 + $0x14] sm:$0xf]
  %v1936 = vld [vmem:[%s3 + $0x18] sm:$0xf]
  %v1937 = vld [vmem:[%s3 + $0x1c] sm:$0xf]
  %v1938 = vld [vmem:[%s3 + $0x20] sm:$0xf]
  %v1939 = vld [vmem:[%s3 + $0x24] sm:$0xf]
  %v1940 = vld [vmem:[%s3 + $0x28] sm:$0xf]
  %v1941 = vld [vmem:[%s3 + $0x2c] sm:$0xf]
  %v1942 = vld [vmem:[%s3 + $0x30] sm:$0xf]
  %v1943 = vld [vmem:[%s3 + $0x34] sm:$0xf]
  %v1944 = vld [vmem:[%s3 + $0x38] sm:$0xf]
  %v1945 = vld [vmem:[%s3 + $0x3c] sm:$0xf]
  %v1946 = vpack.c.bf16 %v1928, %v1927
  %v1947 = vld [vmem:[%s237] sm:$0xf]
  %v1948 = vld [vmem:[%s237 + $0x4] sm:$0xf]
  %v1949 = vld [vmem:[%s237 + $0x8] sm:$0xf]
  %v1950 = vld [vmem:[%s237 + $0xc] sm:$0xf]
  %v1951 = vld [vmem:[%s237 + $0x10] sm:$0xf]
  %v1952 = vld [vmem:[%s237 + $0x14] sm:$0xf]
  %v1953 = vld [vmem:[%s237 + $0x18] sm:$0xf]
  %v1954 = vld [vmem:[%s237 + $0x1c] sm:$0xf]
  %v1955 = vld [vmem:[%s237 + $0x20] sm:$0xf]
  %v1956 = vld [vmem:[%s237 + $0x24] sm:$0xf]
  %v1957 = vld [vmem:[%s237 + $0x28] sm:$0xf]
  %v1958 = vld [vmem:[%s237 + $0x2c] sm:$0xf]
  %v1959 = vld [vmem:[%s237 + $0x30] sm:$0xf]
  %v1960 = vld [vmem:[%s237 + $0x34] sm:$0xf]
  %v1961 = vld [vmem:[%s237 + $0x38] sm:$0xf]
  %v1962 = vld [vmem:[%s237 + $0x3c] sm:$0xf]
  %v1979 = vunpack.c.l.b16 %v1947
  %v1980 = vunpack.c.l.b16 %v1948
  %v1981 = vunpack.c.l.b16 %v1949
  %v1982 = vunpack.c.l.b16 %v1950
  %v1983 = vunpack.c.l.b16 %v1951
  %v1984 = vunpack.c.l.b16 %v1952
  %v1985 = vunpack.c.l.b16 %v1953
  %v1986 = vunpack.c.l.b16 %v1954
  %v1987 = vunpack.c.l.b16 %v1955
  %v1988 = vunpack.c.l.b16 %v1956
  %v1989 = vunpack.c.l.b16 %v1957
  %v1990 = vunpack.c.l.b16 %v1958
  %v1991 = vunpack.c.l.b16 %v1959
  %v1992 = vunpack.c.l.b16 %v1960
  %v1993 = vunpack.c.l.b16 %v1961
  %v1994 = vunpack.c.l.b16 %v1962
  %v1995 = vpack.c.b16 %v1980, %v1979
  %v1996 = vpack.c.b16 %v1982, %v1981
  %v1997 = vpack.c.b16 %v1984, %v1983
  %v1998 = vpack.c.b16 %v1986, %v1985
  %v1999 = vpack.c.b16 %v1988, %v1987
  %v2000 = vpack.c.b16 %v1990, %v1989
  %v2001 = vpack.c.b16 %v1992, %v1991
  %v2002 = vpack.c.b16 %v1994, %v1993
  %2011 = vmatpush.bf16.msra.mxu0 %v2002
  %2012 = vmatpush.bf16.msra.mxu0 %v2001
  %2013 = vmatpush.bf16.msra.mxu0 %v2000
  %2014 = vmatpush.bf16.msra.mxu0 %v1999
  %2015 = vmatpush.bf16.msra.mxu0 %v1998
  %2016 = vmatpush.bf16.msra.mxu0 %v1997
  %2017 = vmatpush.bf16.msra.mxu0 %v1996
  %2018 = vmatpush.bf16.msra.mxu0 %v1995
  %2019 = vmatmul.bf16.gmra.mxu0 %v1946
  %v2020 = vpop.f32.mrf.mxu0
  %v2021 = vadd.f32 0.0, %v2020
  %v2022 = vpop.f32.mrf.mxu0
  %v2023 = vadd.f32 0.0, %v2022
  %2024 = vdwg.mxu0
  %v2041 = vunpack.c.l.b16 %v1930
  %v2042 = vunpack.c.l.b16 %v1931
  %v2043 = vunpack.c.l.b16 %v1932
  %v2044 = vunpack.c.l.b16 %v1933
  %v2045 = vunpack.c.l.b16 %v1934
  %v2046 = vunpack.c.l.b16 %v1935
  %v2047 = vunpack.c.l.b16 %v1936
  %v2048 = vunpack.c.l.b16 %v1937
  %v2049 = vunpack.c.l.b16 %v1938
  %v2050 = vunpack.c.l.b16 %v1939
  %v2051 = vunpack.c.l.b16 %v1940
  %v2052 = vunpack.c.l.b16 %v1941
  %v2053 = vunpack.c.l.b16 %v1942
  %v2054 = vunpack.c.l.b16 %v1943
  %v2055 = vunpack.c.l.b16 %v1944
  %v2056 = vunpack.c.l.b16 %v1945
  %v2057 = vpack.c.b16 %v2042, %v2041
  %v2058 = vpack.c.b16 %v2044, %v2043
  %v2059 = vpack.c.b16 %v2046, %v2045
  %v2060 = vpack.c.b16 %v2048, %v2047
  %v2061 = vpack.c.b16 %v2050, %v2049
  %v2062 = vpack.c.b16 %v2052, %v2051
  %v2063 = vpack.c.b16 %v2054, %v2053
  %v2064 = vpack.c.b16 %v2056, %v2055
  %2073 = vmatpush.bf16.msra.mxu0 %v2064
  %2074 = vmatpush.bf16.msra.mxu0 %v2063
  %2075 = vmatpush.bf16.msra.mxu0 %v2062
  %2076 = vmatpush.bf16.msra.mxu0 %v2061
  %2077 = vmatpush.bf16.msra.mxu0 %v2060
  %2078 = vmatpush.bf16.msra.mxu0 %v2059
  %2079 = vmatpush.bf16.msra.mxu0 %v2058
  %2080 = vmatpush.bf16.msra.mxu0 %v2057
  %2081 = vmatmul.bf16.gmra.mxu0 %v1929
  %v2082 = vpop.f32.mrf.mxu0
  %v2083 = vadd.f32 %v2021, %v2082
  %v2084 = vpop.f32.mrf.mxu0
  %v2085 = vadd.f32 %v2023, %v2084
  %2086 = vdwg.mxu0
  %v2087 = vadd.f32 %v2083, %v379
  %v2088 = vadd.f32 %v2085, %v379
  %v2089 = vtanh.pop %v2087
  %v2090 = vtanh.pop %v2088
  %2091 = vst [vmem:[%s216] sm:$0xff] %v2089
  %2092 = vst [vmem:[%s216 + $0x8] sm:$0xff] %v2090
  %v2093 = vmax.f32 %v2089, 0.0
  %v2094 = vmax.f32 %v2090, 0.0
  %v2095 = vpack.c.bf16 %v2094, %v2093
  %v2096 = vld [vmem:[%s5] sm:$0xf]
  %v2097 = vld [vmem:[%s5 + $0x4] sm:$0xf]
  %v2098 = vld [vmem:[%s5 + $0x8] sm:$0xf]
  %v2099 = vld [vmem:[%s5 + $0xc] sm:$0xf]
  %v2100 = vld [vmem:[%s5 + $0x10] sm:$0xf]
  %v2101 = vld [vmem:[%s5 + $0x14] sm:$0xf]
  %v2102 = vld [vmem:[%s5 + $0x18] sm:$0xf]
  %v2103 = vld [vmem:[%s5 + $0x1c] sm:$0xf]
  %v2104 = vld [vmem:[%s5 + $0x20] sm:$0xf]
  %v2105 = vld [vmem:[%s5 + $0x24] sm:$0xf]
  %v2106 = vld [vmem:[%s5 + $0x28] sm:$0xf]
  %v2107 = vld [vmem:[%s5 + $0x2c] sm:$0xf]
  %v2108 = vld [vmem:[%s5 + $0x30] sm:$0xf]
  %v2109 = vld [vmem:[%s5 + $0x34] sm:$0xf]
  %v2110 = vld [vmem:[%s5 + $0x38] sm:$0xf]
  %v2111 = vld [vmem:[%s5 + $0x3c] sm:$0xf]
  %v2128 = vunpack.c.l.b16 %v2096
  %v2129 = vunpack.c.l.b16 %v2097
  %v2130 = vunpack.c.l.b16 %v2098
  %v2131 = vunpack.c.l.b16 %v2099
  %v2132 = vunpack.c.l.b16 %v2100
  %v2133 = vunpack.c.l.b16 %v2101
  %v2134 = vunpack.c.l.b16 %v2102
  %v2135 = vunpack.c.l.b16 %v2103
  %v2136 = vunpack.c.l.b16 %v2104
  %v2137 = vunpack.c.l.b16 %v2105
  %v2138 = vunpack.c.l.b16 %v2106
  %v2139 = vunpack.c.l.b16 %v2107
  %v2140 = vunpack.c.l.b16 %v2108
  %v2141 = vunpack.c.l.b16 %v2109
  %v2142 = vunpack.c.l.b16 %v2110
  %v2143 = vunpack.c.l.b16 %v2111
  %v2144 = vpack.c.b16 %v2129, %v2128
  %v2145 = vpack.c.b16 %v2131, %v2130
  %v2146 = vpack.c.b16 %v2133, %v2132
  %v2147 = vpack.c.b16 %v2135, %v2134
  %v2148 = vpack.c.b16 %v2137, %v2136
  %v2149 = vpack.c.b16 %v2139, %v2138
  %v2150 = vpack.c.b16 %v2141, %v2140
  %v2151 = vpack.c.b16 %v2143, %v2142
  %2160 = vmatpush.bf16.msra.mxu0 %v2151
  %2161 = vmatpush.bf16.msra.mxu0 %v2150
  %2162 = vmatpush.bf16.msra.mxu0 %v2149
  %2163 = vmatpush.bf16.msra.mxu0 %v2148
  %2164 = vmatpush.bf16.msra.mxu0 %v2147
  %2165 = vmatpush.bf16.msra.mxu0 %v2146
  %2166 = vmatpush.bf16.msra.mxu0 %v2145
  %2167 = vmatpush.bf16.msra.mxu0 %v2144
  %2168 = vmatmul.bf16.gmra.mxu0 %v2095
  %v2169 = vpop.f32.mrf.mxu0
  %v2170 = vadd.f32 %v407, %v2169
  %v2171 = vpop.f32.mrf.mxu0
  %v2172 = vadd.f32 %v407, %v2171
  %2173 = vdwg.mxu0
  %s2174 = scalar_lea.vmem %s7, 64
  %2175 = vst [vmem:[%s2174] sm:$0xff] %v2170
  %2176 = vst [vmem:[%s2174 + $0x8] sm:$0xff] %v2172
  %s2177 = scalar_lea.vmem %s0, 40
  %v2178 = vld [vmem:[%s2177] sm:$0xf]
  %v2179 = vld [vmem:[%s2177 + $0x4] sm:$0xf]
  %v2180 = vld [vmem:[#allocation2] sm:$0xff]
  %v2181 = vld [vmem:[#allocation2 + $0x8] sm:$0xff]
  %v2182 = vld [vmem:[%s1] sm:$0xf]
  %v2183 = vld [vmem:[%s1 + $0x4] sm:$0xf]
  %v2184 = vld [vmem:[%s1 + $0x8] sm:$0xf]
  %v2185 = vld [vmem:[%s1 + $0xc] sm:$0xf]
  %v2186 = vld [vmem:[%s1 + $0x10] sm:$0xf]
  %v2187 = vld [vmem:[%s1 + $0x14] sm:$0xf]
  %v2188 = vld [vmem:[%s1 + $0x18] sm:$0xf]
  %v2189 = vld [vmem:[%s1 + $0x1c] sm:$0xf]
  %v2190 = vld [vmem:[%s1 + $0x20] sm:$0xf]
  %v2191 = vld [vmem:[%s1 + $0x24] sm:$0xf]
  %v2192 = vld [vmem:[%s1 + $0x28] sm:$0xf]
  %v2193 = vld [vmem:[%s1 + $0x2c] sm:$0xf]
  %v2194 = vld [vmem:[%s1 + $0x30] sm:$0xf]
  %v2195 = vld [vmem:[%s1 + $0x34] sm:$0xf]
  %v2196 = vld [vmem:[%s1 + $0x38] sm:$0xf]
  %v2197 = vld [vmem:[%s1 + $0x3c] sm:$0xf]
  %v2198 = vpack.c.bf16 %v2181, %v2180
  %v2199 = vld [vmem:[%s2] sm:$0xf]
  %v2200 = vld [vmem:[%s2 + $0x4] sm:$0xf]
  %v2201 = vld [vmem:[%s2 + $0x8] sm:$0xf]
  %v2202 = vld [vmem:[%s2 + $0xc] sm:$0xf]
  %v2203 = vld [vmem:[%s2 + $0x10] sm:$0xf]
  %v2204 = vld [vmem:[%s2 + $0x14] sm:$0xf]
  %v2205 = vld [vmem:[%s2 + $0x18] sm:$0xf]
  %v2206 = vld [vmem:[%s2 + $0x1c] sm:$0xf]
  %v2207 = vld [vmem:[%s2 + $0x20] sm:$0xf]
  %v2208 = vld [vmem:[%s2 + $0x24] sm:$0xf]
  %v2209 = vld [vmem:[%s2 + $0x28] sm:$0xf]
  %v2210 = vld [vmem:[%s2 + $0x2c] sm:$0xf]
  %v2211 = vld [vmem:[%s2 + $0x30] sm:$0xf]
  %v2212 = vld [vmem:[%s2 + $0x34] sm:$0xf]
  %v2213 = vld [vmem:[%s2 + $0x38] sm:$0xf]
  %v2214 = vld [vmem:[%s2 + $0x3c] sm:$0xf]
  %v2231 = vunpack.c.l.b16 %v2199
  %v2232 = vunpack.c.l.b16 %v2200
  %v2233 = vunpack.c.l.b16 %v2201
  %v2234 = vunpack.c.l.b16 %v2202
  %v2235 = vunpack.c.l.b16 %v2203
  %v2236 = vunpack.c.l.b16 %v2204
  %v2237 = vunpack.c.l.b16 %v2205
  %v2238 = vunpack.c.l.b16 %v2206
  %v2239 = vunpack.c.l.b16 %v2207
  %v2240 = vunpack.c.l.b16 %v2208
  %v2241 = vunpack.c.l.b16 %v2209
  %v2242 = vunpack.c.l.b16 %v2210
  %v2243 = vunpack.c.l.b16 %v2211
  %v2244 = vunpack.c.l.b16 %v2212
  %v2245 = vunpack.c.l.b16 %v2213
  %v2246 = vunpack.c.l.b16 %v2214
  %v2247 = vpack.c.b16 %v2232, %v2231
  %v2248 = vpack.c.b16 %v2234, %v2233
  %v2249 = vpack.c.b16 %v2236, %v2235
  %v2250 = vpack.c.b16 %v2238, %v2237
  %v2251 = vpack.c.b16 %v2240, %v2239
  %v2252 = vpack.c.b16 %v2242, %v2241
  %v2253 = vpack.c.b16 %v2244, %v2243
  %v2254 = vpack.c.b16 %v2246, %v2245
  %2263 = vmatpush.bf16.msra.mxu0 %v2254
  %2264 = vmatpush.bf16.msra.mxu0 %v2253
  %2265 = vmatpush.bf16.msra.mxu0 %v2252
  %2266 = vmatpush.bf16.msra.mxu0 %v2251
  %2267 = vmatpush.bf16.msra.mxu0 %v2250
  %2268 = vmatpush.bf16.msra.mxu0 %v2249
  %2269 = vmatpush.bf16.msra.mxu0 %v2248
  %2270 = vmatpush.bf16.msra.mxu0 %v2247
  %2271 = vmatmul.bf16.gmra.mxu0 %v2198
  %v2272 = vpop.f32.mrf.mxu0
  %v2273 = vadd.f32 0.0, %v2272
  %v2274 = vpop.f32.mrf.mxu0
  %v2275 = vadd.f32 0.0, %v2274
  %2276 = vdwg.mxu0
  %v2279 = vunpack.c.l.b16 %v2178
  %v2280 = vunpack.c.l.b16 %v2179
  %v2281 = vpack.c.b16 %v2280, %v2279
  %v2299 = vunpack.c.l.b16 %v2182
  %v2300 = vunpack.c.l.b16 %v2183
  %v2301 = vunpack.c.l.b16 %v2184
  %v2302 = vunpack.c.l.b16 %v2185
  %v2303 = vunpack.c.l.b16 %v2186
  %v2304 = vunpack.c.l.b16 %v2187
  %v2305 = vunpack.c.l.b16 %v2188
  %v2306 = vunpack.c.l.b16 %v2189
  %v2307 = vunpack.c.l.b16 %v2190
  %v2308 = vunpack.c.l.b16 %v2191
  %v2309 = vunpack.c.l.b16 %v2192
  %v2310 = vunpack.c.l.b16 %v2193
  %v2311 = vunpack.c.l.b16 %v2194
  %v2312 = vunpack.c.l.b16 %v2195
  %v2313 = vunpack.c.l.b16 %v2196
  %v2314 = vunpack.c.l.b16 %v2197
  %v2315 = vpack.c.b16 %v2300, %v2299
  %v2316 = vpack.c.b16 %v2302, %v2301
  %v2317 = vpack.c.b16 %v2304, %v2303
  %v2318 = vpack.c.b16 %v2306, %v2305
  %v2319 = vpack.c.b16 %v2308, %v2307
  %v2320 = vpack.c.b16 %v2310, %v2309
  %v2321 = vpack.c.b16 %v2312, %v2311
  %v2322 = vpack.c.b16 %v2314, %v2313
  %2331 = vmatpush.bf16.msra.mxu0 %v2322
  %2332 = vmatpush.bf16.msra.mxu0 %v2321
  %2333 = vmatpush.bf16.msra.mxu0 %v2320
  %2334 = vmatpush.bf16.msra.mxu0 %v2319
  %2335 = vmatpush.bf16.msra.mxu0 %v2318
  %2336 = vmatpush.bf16.msra.mxu0 %v2317
  %2337 = vmatpush.bf16.msra.mxu0 %v2316
  %2338 = vmatpush.bf16.msra.mxu0 %v2315
  %2339 = vmatmul.bf16.gmra.mxu0 %v2281
  %v2340 = vpop.f32.mrf.mxu0
  %v2341 = vadd.f32 %v2273, %v2340
  %v2342 = vpop.f32.mrf.mxu0
  %v2343 = vadd.f32 %v2275, %v2342
  %2344 = vdwg.mxu0
  %v2345 = vadd.f32 %v2341, %v206
  %v2346 = vadd.f32 %v2343, %v206
  %v2347 = vtanh.pop %v2345
  %v2348 = vtanh.pop %v2346
  %2349 = vst [vmem:[#allocation2] sm:$0xff] %v2347
  %2350 = vst [vmem:[#allocation2 + $0x8] sm:$0xff] %v2348
  %v2351 = vmax.f32 %v2347, 0.0
  %v2352 = vmax.f32 %v2348, 0.0
  %v2353 = vld [vmem:[%s216] sm:$0xff]
  %v2354 = vld [vmem:[%s216 + $0x8] sm:$0xff]
  %v2355 = vpack.c.bf16 %v2352, %v2351
  %v2356 = vld [vmem:[%s3] sm:$0xf]
  %v2357 = vld [vmem:[%s3 + $0x4] sm:$0xf]
  %v2358 = vld [vmem:[%s3 + $0x8] sm:$0xf]
  %v2359 = vld [vmem:[%s3 + $0xc] sm:$0xf]
  %v2360 = vld [vmem:[%s3 + $0x10] sm:$0xf]
  %v2361 = vld [vmem:[%s3 + $0x14] sm:$0xf]
  %v2362 = vld [vmem:[%s3 + $0x18] sm:$0xf]
  %v2363 = vld [vmem:[%s3 + $0x1c] sm:$0xf]
  %v2364 = vld [vmem:[%s3 + $0x20] sm:$0xf]
  %v2365 = vld [vmem:[%s3 + $0x24] sm:$0xf]
  %v2366 = vld [vmem:[%s3 + $0x28] sm:$0xf]
  %v2367 = vld [vmem:[%s3 + $0x2c] sm:$0xf]
  %v2368 = vld [vmem:[%s3 + $0x30] sm:$0xf]
  %v2369 = vld [vmem:[%s3 + $0x34] sm:$0xf]
  %v2370 = vld [vmem:[%s3 + $0x38] sm:$0xf]
  %v2371 = vld [vmem:[%s3 + $0x3c] sm:$0xf]
  %v2372 = vpack.c.bf16 %v2354, %v2353
  %v2373 = vld [vmem:[%s237] sm:$0xf]
  %v2374 = vld [vmem:[%s237 + $0x4] sm:$0xf]
  %v2375 = vld [vmem:[%s237 + $0x8] sm:$0xf]
  %v2376 = vld [vmem:[%s237 + $0xc] sm:$0xf]
  %v2377 = vld [vmem:[%s237 + $0x10] sm:$0xf]
  %v2378 = vld [vmem:[%s237 + $0x14] sm:$0xf]
  %v2379 = vld [vmem:[%s237 + $0x18] sm:$0xf]
  %v2380 = vld [vmem:[%s237 + $0x1c] sm:$0xf]
  %v2381 = vld [vmem:[%s237 + $0x20] sm:$0xf]
  %v2382 = vld [vmem:[%s237 + $0x24] sm:$0xf]
  %v2383 = vld [vmem:[%s237 + $0x28] sm:$0xf]
  %v2384 = vld [vmem:[%s237 + $0x2c] sm:$0xf]
  %v2385 = vld [vmem:[%s237 + $0x30] sm:$0xf]
  %v2386 = vld [vmem:[%s237 + $0x34] sm:$0xf]
  %v2387 = vld [vmem:[%s237 + $0x38] sm:$0xf]
  %v2388 = vld [vmem:[%s237 + $0x3c] sm:$0xf]
  %v2405 = vunpack.c.l.b16 %v2373
  %v2406 = vunpack.c.l.b16 %v2374
  %v2407 = vunpack.c.l.b16 %v2375
  %v2408 = vunpack.c.l.b16 %v2376
  %v2409 = vunpack.c.l.b16 %v2377
  %v2410 = vunpack.c.l.b16 %v2378
  %v2411 = vunpack.c.l.b16 %v2379
  %v2412 = vunpack.c.l.b16 %v2380
  %v2413 = vunpack.c.l.b16 %v2381
  %v2414 = vunpack.c.l.b16 %v2382
  %v2415 = vunpack.c.l.b16 %v2383
  %v2416 = vunpack.c.l.b16 %v2384
  %v2417 = vunpack.c.l.b16 %v2385
  %v2418 = vunpack.c.l.b16 %v2386
  %v2419 = vunpack.c.l.b16 %v2387
  %v2420 = vunpack.c.l.b16 %v2388
  %v2421 = vpack.c.b16 %v2406, %v2405
  %v2422 = vpack.c.b16 %v2408, %v2407
  %v2423 = vpack.c.b16 %v2410, %v2409
  %v2424 = vpack.c.b16 %v2412, %v2411
  %v2425 = vpack.c.b16 %v2414, %v2413
  %v2426 = vpack.c.b16 %v2416, %v2415
  %v2427 = vpack.c.b16 %v2418, %v2417
  %v2428 = vpack.c.b16 %v2420, %v2419
  %2437 = vmatpush.bf16.msra.mxu0 %v2428
  %2438 = vmatpush.bf16.msra.mxu0 %v2427
  %2439 = vmatpush.bf16.msra.mxu0 %v2426
  %2440 = vmatpush.bf16.msra.mxu0 %v2425
  %2441 = vmatpush.bf16.msra.mxu0 %v2424
  %2442 = vmatpush.bf16.msra.mxu0 %v2423
  %2443 = vmatpush.bf16.msra.mxu0 %v2422
  %2444 = vmatpush.bf16.msra.mxu0 %v2421
  %2445 = vmatmul.bf16.gmra.mxu0 %v2372
  %v2446 = vpop.f32.mrf.mxu0
  %v2447 = vadd.f32 0.0, %v2446
  %v2448 = vpop.f32.mrf.mxu0
  %v2449 = vadd.f32 0.0, %v2448
  %2450 = vdwg.mxu0
  %v2467 = vunpack.c.l.b16 %v2356
  %v2468 = vunpack.c.l.b16 %v2357
  %v2469 = vunpack.c.l.b16 %v2358
  %v2470 = vunpack.c.l.b16 %v2359
  %v2471 = vunpack.c.l.b16 %v2360
  %v2472 = vunpack.c.l.b16 %v2361
  %v2473 = vunpack.c.l.b16 %v2362
  %v2474 = vunpack.c.l.b16 %v2363
  %v2475 = vunpack.c.l.b16 %v2364
  %v2476 = vunpack.c.l.b16 %v2365
  %v2477 = vunpack.c.l.b16 %v2366
  %v2478 = vunpack.c.l.b16 %v2367
  %v2479 = vunpack.c.l.b16 %v2368
  %v2480 = vunpack.c.l.b16 %v2369
  %v2481 = vunpack.c.l.b16 %v2370
  %v2482 = vunpack.c.l.b16 %v2371
  %v2483 = vpack.c.b16 %v2468, %v2467
  %v2484 = vpack.c.b16 %v2470, %v2469
  %v2485 = vpack.c.b16 %v2472, %v2471
  %v2486 = vpack.c.b16 %v2474, %v2473
  %v2487 = vpack.c.b16 %v2476, %v2475
  %v2488 = vpack.c.b16 %v2478, %v2477
  %v2489 = vpack.c.b16 %v2480, %v2479
  %v2490 = vpack.c.b16 %v2482, %v2481
  %2499 = vmatpush.bf16.msra.mxu0 %v2490
  %2500 = vmatpush.bf16.msra.mxu0 %v2489
  %2501 = vmatpush.bf16.msra.mxu0 %v2488
  %2502 = vmatpush.bf16.msra.mxu0 %v2487
  %2503 = vmatpush.bf16.msra.mxu0 %v2486
  %2504 = vmatpush.bf16.msra.mxu0 %v2485
  %2505 = vmatpush.bf16.msra.mxu0 %v2484
  %2506 = vmatpush.bf16.msra.mxu0 %v2483
  %2507 = vmatmul.bf16.gmra.mxu0 %v2355
  %v2508 = vpop.f32.mrf.mxu0
  %v2509 = vadd.f32 %v2447, %v2508
  %v2510 = vpop.f32.mrf.mxu0
  %v2511 = vadd.f32 %v2449, %v2510
  %2512 = vdwg.mxu0
  %v2513 = vadd.f32 %v2509, %v379
  %v2514 = vadd.f32 %v2511, %v379
  %v2515 = vtanh.pop %v2513
  %v2516 = vtanh.pop %v2514
  %2517 = vst [vmem:[%s216] sm:$0xff] %v2515
  %2518 = vst [vmem:[%s216 + $0x8] sm:$0xff] %v2516
  %v2519 = vmax.f32 %v2515, 0.0
  %v2520 = vmax.f32 %v2516, 0.0
  %v2521 = vpack.c.bf16 %v2520, %v2519
  %v2522 = vld [vmem:[%s5] sm:$0xf]
  %v2523 = vld [vmem:[%s5 + $0x4] sm:$0xf]
  %v2524 = vld [vmem:[%s5 + $0x8] sm:$0xf]
  %v2525 = vld [vmem:[%s5 + $0xc] sm:$0xf]
  %v2526 = vld [vmem:[%s5 + $0x10] sm:$0xf]
  %v2527 = vld [vmem:[%s5 + $0x14] sm:$0xf]
  %v2528 = vld [vmem:[%s5 + $0x18] sm:$0xf]
  %v2529 = vld [vmem:[%s5 + $0x1c] sm:$0xf]
  %v2530 = vld [vmem:[%s5 + $0x20] sm:$0xf]
  %v2531 = vld [vmem:[%s5 + $0x24] sm:$0xf]
  %v2532 = vld [vmem:[%s5 + $0x28] sm:$0xf]
  %v2533 = vld [vmem:[%s5 + $0x2c] sm:$0xf]
  %v2534 = vld [vmem:[%s5 + $0x30] sm:$0xf]
  %v2535 = vld [vmem:[%s5 + $0x34] sm:$0xf]
  %v2536 = vld [vmem:[%s5 + $0x38] sm:$0xf]
  %v2537 = vld [vmem:[%s5 + $0x3c] sm:$0xf]
  %v2554 = vunpack.c.l.b16 %v2522
  %v2555 = vunpack.c.l.b16 %v2523
  %v2556 = vunpack.c.l.b16 %v2524
  %v2557 = vunpack.c.l.b16 %v2525
  %v2558 = vunpack.c.l.b16 %v2526
  %v2559 = vunpack.c.l.b16 %v2527
  %v2560 = vunpack.c.l.b16 %v2528
  %v2561 = vunpack.c.l.b16 %v2529
  %v2562 = vunpack.c.l.b16 %v2530
  %v2563 = vunpack.c.l.b16 %v2531
  %v2564 = vunpack.c.l.b16 %v2532
  %v2565 = vunpack.c.l.b16 %v2533
  %v2566 = vunpack.c.l.b16 %v2534
  %v2567 = vunpack.c.l.b16 %v2535
  %v2568 = vunpack.c.l.b16 %v2536
  %v2569 = vunpack.c.l.b16 %v2537
  %v2570 = vpack.c.b16 %v2555, %v2554
  %v2571 = vpack.c.b16 %v2557, %v2556
  %v2572 = vpack.c.b16 %v2559, %v2558
  %v2573 = vpack.c.b16 %v2561, %v2560
  %v2574 = vpack.c.b16 %v2563, %v2562
  %v2575 = vpack.c.b16 %v2565, %v2564
  %v2576 = vpack.c.b16 %v2567, %v2566
  %v2577 = vpack.c.b16 %v2569, %v2568
  %2586 = vmatpush.bf16.msra.mxu0 %v2577
  %2587 = vmatpush.bf16.msra.mxu0 %v2576
  %2588 = vmatpush.bf16.msra.mxu0 %v2575
  %2589 = vmatpush.bf16.msra.mxu0 %v2574
  %2590 = vmatpush.bf16.msra.mxu0 %v2573
  %2591 = vmatpush.bf16.msra.mxu0 %v2572
  %2592 = vmatpush.bf16.msra.mxu0 %v2571
  %2593 = vmatpush.bf16.msra.mxu0 %v2570
  %2594 = vmatmul.bf16.gmra.mxu0 %v2521
  %v2595 = vpop.f32.mrf.mxu0
  %v2596 = vadd.f32 %v407, %v2595
  %v2597 = vpop.f32.mrf.mxu0
  %v2598 = vadd.f32 %v407, %v2597
  %2599 = vdwg.mxu0
  %s2600 = scalar_lea.vmem %s7, 80
  %2601 = vst [vmem:[%s2600] sm:$0xff] %v2596
  %2602 = vst [vmem:[%s2600 + $0x8] sm:$0xff] %v2598
  %s2603 = scalar_lea.vmem %s0, 48
  %v2604 = vld [vmem:[%s2603] sm:$0xf]
  %v2605 = vld [vmem:[%s2603 + $0x4] sm:$0xf]
  %v2606 = vld [vmem:[#allocation2] sm:$0xff]
  %v2607 = vld [vmem:[#allocation2 + $0x8] sm:$0xff]
  %v2608 = vld [vmem:[%s1] sm:$0xf]
  %v2609 = vld [vmem:[%s1 + $0x4] sm:$0xf]
  %v2610 = vld [vmem:[%s1 + $0x8] sm:$0xf]
  %v2611 = vld [vmem:[%s1 + $0xc] sm:$0xf]
  %v2612 = vld [vmem:[%s1 + $0x10] sm:$0xf]
  %v2613 = vld [vmem:[%s1 + $0x14] sm:$0xf]
  %v2614 = vld [vmem:[%s1 + $0x18] sm:$0xf]
  %v2615 = vld [vmem:[%s1 + $0x1c] sm:$0xf]
  %v2616 = vld [vmem:[%s1 + $0x20] sm:$0xf]
  %v2617 = vld [vmem:[%s1 + $0x24] sm:$0xf]
  %v2618 = vld [vmem:[%s1 + $0x28] sm:$0xf]
  %v2619 = vld [vmem:[%s1 + $0x2c] sm:$0xf]
  %v2620 = vld [vmem:[%s1 + $0x30] sm:$0xf]
  %v2621 = vld [vmem:[%s1 + $0x34] sm:$0xf]
  %v2622 = vld [vmem:[%s1 + $0x38] sm:$0xf]
  %v2623 = vld [vmem:[%s1 + $0x3c] sm:$0xf]
  %v2624 = vpack.c.bf16 %v2607, %v2606
  %v2625 = vld [vmem:[%s2] sm:$0xf]
  %v2626 = vld [vmem:[%s2 + $0x4] sm:$0xf]
  %v2627 = vld [vmem:[%s2 + $0x8] sm:$0xf]
  %v2628 = vld [vmem:[%s2 + $0xc] sm:$0xf]
  %v2629 = vld [vmem:[%s2 + $0x10] sm:$0xf]
  %v2630 = vld [vmem:[%s2 + $0x14] sm:$0xf]
  %v2631 = vld [vmem:[%s2 + $0x18] sm:$0xf]
  %v2632 = vld [vmem:[%s2 + $0x1c] sm:$0xf]
  %v2633 = vld [vmem:[%s2 + $0x20] sm:$0xf]
  %v2634 = vld [vmem:[%s2 + $0x24] sm:$0xf]
  %v2635 = vld [vmem:[%s2 + $0x28] sm:$0xf]
  %v2636 = vld [vmem:[%s2 + $0x2c] sm:$0xf]
  %v2637 = vld [vmem:[%s2 + $0x30] sm:$0xf]
  %v2638 = vld [vmem:[%s2 + $0x34] sm:$0xf]
  %v2639 = vld [vmem:[%s2 + $0x38] sm:$0xf]
  %v2640 = vld [vmem:[%s2 + $0x3c] sm:$0xf]
  %v2657 = vunpack.c.l.b16 %v2625
  %v2658 = vunpack.c.l.b16 %v2626
  %v2659 = vunpack.c.l.b16 %v2627
  %v2660 = vunpack.c.l.b16 %v2628
  %v2661 = vunpack.c.l.b16 %v2629
  %v2662 = vunpack.c.l.b16 %v2630
  %v2663 = vunpack.c.l.b16 %v2631
  %v2664 = vunpack.c.l.b16 %v2632
  %v2665 = vunpack.c.l.b16 %v2633
  %v2666 = vunpack.c.l.b16 %v2634
  %v2667 = vunpack.c.l.b16 %v2635
  %v2668 = vunpack.c.l.b16 %v2636
  %v2669 = vunpack.c.l.b16 %v2637
  %v2670 = vunpack.c.l.b16 %v2638
  %v2671 = vunpack.c.l.b16 %v2639
  %v2672 = vunpack.c.l.b16 %v2640
  %v2673 = vpack.c.b16 %v2658, %v2657
  %v2674 = vpack.c.b16 %v2660, %v2659
  %v2675 = vpack.c.b16 %v2662, %v2661
  %v2676 = vpack.c.b16 %v2664, %v2663
  %v2677 = vpack.c.b16 %v2666, %v2665
  %v2678 = vpack.c.b16 %v2668, %v2667
  %v2679 = vpack.c.b16 %v2670, %v2669
  %v2680 = vpack.c.b16 %v2672, %v2671
  %2689 = vmatpush.bf16.msra.mxu0 %v2680
  %2690 = vmatpush.bf16.msra.mxu0 %v2679
  %2691 = vmatpush.bf16.msra.mxu0 %v2678
  %2692 = vmatpush.bf16.msra.mxu0 %v2677
  %2693 = vmatpush.bf16.msra.mxu0 %v2676
  %2694 = vmatpush.bf16.msra.mxu0 %v2675
  %2695 = vmatpush.bf16.msra.mxu0 %v2674
  %2696 = vmatpush.bf16.msra.mxu0 %v2673
  %2697 = vmatmul.bf16.gmra.mxu0 %v2624
  %v2698 = vpop.f32.mrf.mxu0
  %v2699 = vadd.f32 0.0, %v2698
  %v2700 = vpop.f32.mrf.mxu0
  %v2701 = vadd.f32 0.0, %v2700
  %2702 = vdwg.mxu0
  %v2705 = vunpack.c.l.b16 %v2604
  %v2706 = vunpack.c.l.b16 %v2605
  %v2707 = vpack.c.b16 %v2706, %v2705
  %v2725 = vunpack.c.l.b16 %v2608
  %v2726 = vunpack.c.l.b16 %v2609
  %v2727 = vunpack.c.l.b16 %v2610
  %v2728 = vunpack.c.l.b16 %v2611
  %v2729 = vunpack.c.l.b16 %v2612
  %v2730 = vunpack.c.l.b16 %v2613
  %v2731 = vunpack.c.l.b16 %v2614
  %v2732 = vunpack.c.l.b16 %v2615
  %v2733 = vunpack.c.l.b16 %v2616
  %v2734 = vunpack.c.l.b16 %v2617
  %v2735 = vunpack.c.l.b16 %v2618
  %v2736 = vunpack.c.l.b16 %v2619
  %v2737 = vunpack.c.l.b16 %v2620
  %v2738 = vunpack.c.l.b16 %v2621
  %v2739 = vunpack.c.l.b16 %v2622
  %v2740 = vunpack.c.l.b16 %v2623
  %v2741 = vpack.c.b16 %v2726, %v2725
  %v2742 = vpack.c.b16 %v2728, %v2727
  %v2743 = vpack.c.b16 %v2730, %v2729
  %v2744 = vpack.c.b16 %v2732, %v2731
  %v2745 = vpack.c.b16 %v2734, %v2733
  %v2746 = vpack.c.b16 %v2736, %v2735
  %v2747 = vpack.c.b16 %v2738, %v2737
  %v2748 = vpack.c.b16 %v2740, %v2739
  %2757 = vmatpush.bf16.msra.mxu0 %v2748
  %2758 = vmatpush.bf16.msra.mxu0 %v2747
  %2759 = vmatpush.bf16.msra.mxu0 %v2746
  %2760 = vmatpush.bf16.msra.mxu0 %v2745
  %2761 = vmatpush.bf16.msra.mxu0 %v2744
  %2762 = vmatpush.bf16.msra.mxu0 %v2743
  %2763 = vmatpush.bf16.msra.mxu0 %v2742
  %2764 = vmatpush.bf16.msra.mxu0 %v2741
  %2765 = vmatmul.bf16.gmra.mxu0 %v2707
  %v2766 = vpop.f32.mrf.mxu0
  %v2767 = vadd.f32 %v2699, %v2766
  %v2768 = vpop.f32.mrf.mxu0
  %v2769 = vadd.f32 %v2701, %v2768
  %2770 = vdwg.mxu0
  %v2771 = vadd.f32 %v2767, %v206
  %v2772 = vadd.f32 %v2769, %v206
  %v2773 = vtanh.pop %v2771
  %v2774 = vtanh.pop %v2772
  %2775 = vst [vmem:[#allocation2] sm:$0xff] %v2773
  %2776 = vst [vmem:[#allocation2 + $0x8] sm:$0xff] %v2774
  %v2777 = vmax.f32 %v2773, 0.0
  %v2778 = vmax.f32 %v2774, 0.0
  %v2779 = vld [vmem:[%s216] sm:$0xff]
  %v2780 = vld [vmem:[%s216 + $0x8] sm:$0xff]
  %v2781 = vpack.c.bf16 %v2778, %v2777
  %v2782 = vld [vmem:[%s3] sm:$0xf]
  %v2783 = vld [vmem:[%s3 + $0x4] sm:$0xf]
  %v2784 = vld [vmem:[%s3 + $0x8] sm:$0xf]
  %v2785 = vld [vmem:[%s3 + $0xc] sm:$0xf]
  %v2786 = vld [vmem:[%s3 + $0x10] sm:$0xf]
  %v2787 = vld [vmem:[%s3 + $0x14] sm:$0xf]
  %v2788 = vld [vmem:[%s3 + $0x18] sm:$0xf]
  %v2789 = vld [vmem:[%s3 + $0x1c] sm:$0xf]
  %v2790 = vld [vmem:[%s3 + $0x20] sm:$0xf]
  %v2791 = vld [vmem:[%s3 + $0x24] sm:$0xf]
  %v2792 = vld [vmem:[%s3 + $0x28] sm:$0xf]
  %v2793 = vld [vmem:[%s3 + $0x2c] sm:$0xf]
  %v2794 = vld [vmem:[%s3 + $0x30] sm:$0xf]
  %v2795 = vld [vmem:[%s3 + $0x34] sm:$0xf]
  %v2796 = vld [vmem:[%s3 + $0x38] sm:$0xf]
  %v2797 = vld [vmem:[%s3 + $0x3c] sm:$0xf]
  %v2798 = vpack.c.bf16 %v2780, %v2779
  %v2799 = vld [vmem:[%s237] sm:$0xf]
  %v2800 = vld [vmem:[%s237 + $0x4] sm:$0xf]
  %v2801 = vld [vmem:[%s237 + $0x8] sm:$0xf]
  %v2802 = vld [vmem:[%s237 + $0xc] sm:$0xf]
  %v2803 = vld [vmem:[%s237 + $0x10] sm:$0xf]
  %v2804 = vld [vmem:[%s237 + $0x14] sm:$0xf]
  %v2805 = vld [vmem:[%s237 + $0x18] sm:$0xf]
  %v2806 = vld [vmem:[%s237 + $0x1c] sm:$0xf]
  %v2807 = vld [vmem:[%s237 + $0x20] sm:$0xf]
  %v2808 = vld [vmem:[%s237 + $0x24] sm:$0xf]
  %v2809 = vld [vmem:[%s237 + $0x28] sm:$0xf]
  %v2810 = vld [vmem:[%s237 + $0x2c] sm:$0xf]
  %v2811 = vld [vmem:[%s237 + $0x30] sm:$0xf]
  %v2812 = vld [vmem:[%s237 + $0x34] sm:$0xf]
  %v2813 = vld [vmem:[%s237 + $0x38] sm:$0xf]
  %v2814 = vld [vmem:[%s237 + $0x3c] sm:$0xf]
  %v2831 = vunpack.c.l.b16 %v2799
  %v2832 = vunpack.c.l.b16 %v2800
  %v2833 = vunpack.c.l.b16 %v2801
  %v2834 = vunpack.c.l.b16 %v2802
  %v2835 = vunpack.c.l.b16 %v2803
  %v2836 = vunpack.c.l.b16 %v2804
  %v2837 = vunpack.c.l.b16 %v2805
  %v2838 = vunpack.c.l.b16 %v2806
  %v2839 = vunpack.c.l.b16 %v2807
  %v2840 = vunpack.c.l.b16 %v2808
  %v2841 = vunpack.c.l.b16 %v2809
  %v2842 = vunpack.c.l.b16 %v2810
  %v2843 = vunpack.c.l.b16 %v2811
  %v2844 = vunpack.c.l.b16 %v2812
  %v2845 = vunpack.c.l.b16 %v2813
  %v2846 = vunpack.c.l.b16 %v2814
  %v2847 = vpack.c.b16 %v2832, %v2831
  %v2848 = vpack.c.b16 %v2834, %v2833
  %v2849 = vpack.c.b16 %v2836, %v2835
  %v2850 = vpack.c.b16 %v2838, %v2837
  %v2851 = vpack.c.b16 %v2840, %v2839
  %v2852 = vpack.c.b16 %v2842, %v2841
  %v2853 = vpack.c.b16 %v2844, %v2843
  %v2854 = vpack.c.b16 %v2846, %v2845
  %2863 = vmatpush.bf16.msra.mxu0 %v2854
  %2864 = vmatpush.bf16.msra.mxu0 %v2853
  %2865 = vmatpush.bf16.msra.mxu0 %v2852
  %2866 = vmatpush.bf16.msra.mxu0 %v2851
  %2867 = vmatpush.bf16.msra.mxu0 %v2850
  %2868 = vmatpush.bf16.msra.mxu0 %v2849
  %2869 = vmatpush.bf16.msra.mxu0 %v2848
  %2870 = vmatpush.bf16.msra.mxu0 %v2847
  %2871 = vmatmul.bf16.gmra.mxu0 %v2798
  %v2872 = vpop.f32.mrf.mxu0
  %v2873 = vadd.f32 0.0, %v2872
  %v2874 = vpop.f32.mrf.mxu0
  %v2875 = vadd.f32 0.0, %v2874
  %2876 = vdwg.mxu0
  %v2893 = vunpack.c.l.b16 %v2782
  %v2894 = vunpack.c.l.b16 %v2783
  %v2895 = vunpack.c.l.b16 %v2784
  %v2896 = vunpack.c.l.b16 %v2785
  %v2897 = vunpack.c.l.b16 %v2786
  %v2898 = vunpack.c.l.b16 %v2787
  %v2899 = vunpack.c.l.b16 %v2788
  %v2900 = vunpack.c.l.b16 %v2789
  %v2901 = vunpack.c.l.b16 %v2790
  %v2902 = vunpack.c.l.b16 %v2791
  %v2903 = vunpack.c.l.b16 %v2792
  %v2904 = vunpack.c.l.b16 %v2793
  %v2905 = vunpack.c.l.b16 %v2794
  %v2906 = vunpack.c.l.b16 %v2795
  %v2907 = vunpack.c.l.b16 %v2796
  %v2908 = vunpack.c.l.b16 %v2797
  %v2909 = vpack.c.b16 %v2894, %v2893
  %v2910 = vpack.c.b16 %v2896, %v2895
  %v2911 = vpack.c.b16 %v2898, %v2897
  %v2912 = vpack.c.b16 %v2900, %v2899
  %v2913 = vpack.c.b16 %v2902, %v2901
  %v2914 = vpack.c.b16 %v2904, %v2903
  %v2915 = vpack.c.b16 %v2906, %v2905
  %v2916 = vpack.c.b16 %v2908, %v2907
  %2925 = vmatpush.bf16.msra.mxu0 %v2916
  %2926 = vmatpush.bf16.msra.mxu0 %v2915
  %2927 = vmatpush.bf16.msra.mxu0 %v2914
  %2928 = vmatpush.bf16.msra.mxu0 %v2913
  %2929 = vmatpush.bf16.msra.mxu0 %v2912
  %2930 = vmatpush.bf16.msra.mxu0 %v2911
  %2931 = vmatpush.bf16.msra.mxu0 %v2910
  %2932 = vmatpush.bf16.msra.mxu0 %v2909
  %2933 = vmatmul.bf16.gmra.mxu0 %v2781
  %v2934 = vpop.f32.mrf.mxu0
  %v2935 = vadd.f32 %v2873, %v2934
  %v2936 = vpop.f32.mrf.mxu0
  %v2937 = vadd.f32 %v2875, %v2936
  %2938 = vdwg.mxu0
  %v2939 = vadd.f32 %v2935, %v379
  %v2940 = vadd.f32 %v2937, %v379
  %v2941 = vtanh.pop %v2939
  %v2942 = vtanh.pop %v2940
  %2943 = vst [vmem:[%s216] sm:$0xff] %v2941
  %2944 = vst [vmem:[%s216 + $0x8] sm:$0xff] %v2942
  %v2945 = vmax.f32 %v2941, 0.0
  %v2946 = vmax.f32 %v2942, 0.0
  %v2947 = vpack.c.bf16 %v2946, %v2945
  %v2948 = vld [vmem:[%s5] sm:$0xf]
  %v2949 = vld [vmem:[%s5 + $0x4] sm:$0xf]
  %v2950 = vld [vmem:[%s5 + $0x8] sm:$0xf]
  %v2951 = vld [vmem:[%s5 + $0xc] sm:$0xf]
  %v2952 = vld [vmem:[%s5 + $0x10] sm:$0xf]
  %v2953 = vld [vmem:[%s5 + $0x14] sm:$0xf]
  %v2954 = vld [vmem:[%s5 + $0x18] sm:$0xf]
  %v2955 = vld [vmem:[%s5 + $0x1c] sm:$0xf]
  %v2956 = vld [vmem:[%s5 + $0x20] sm:$0xf]
  %v2957 = vld [vmem:[%s5 + $0x24] sm:$0xf]
  %v2958 = vld [vmem:[%s5 + $0x28] sm:$0xf]
  %v2959 = vld [vmem:[%s5 + $0x2c] sm:$0xf]
  %v2960 = vld [vmem:[%s5 + $0x30] sm:$0xf]
  %v2961 = vld [vmem:[%s5 + $0x34] sm:$0xf]
  %v2962 = vld [vmem:[%s5 + $0x38] sm:$0xf]
  %v2963 = vld [vmem:[%s5 + $0x3c] sm:$0xf]
  %v2980 = vunpack.c.l.b16 %v2948
  %v2981 = vunpack.c.l.b16 %v2949
  %v2982 = vunpack.c.l.b16 %v2950
  %v2983 = vunpack.c.l.b16 %v2951
  %v2984 = vunpack.c.l.b16 %v2952
  %v2985 = vunpack.c.l.b16 %v2953
  %v2986 = vunpack.c.l.b16 %v2954
  %v2987 = vunpack.c.l.b16 %v2955
  %v2988 = vunpack.c.l.b16 %v2956
  %v2989 = vunpack.c.l.b16 %v2957
  %v2990 = vunpack.c.l.b16 %v2958
  %v2991 = vunpack.c.l.b16 %v2959
  %v2992 = vunpack.c.l.b16 %v2960
  %v2993 = vunpack.c.l.b16 %v2961
  %v2994 = vunpack.c.l.b16 %v2962
  %v2995 = vunpack.c.l.b16 %v2963
  %v2996 = vpack.c.b16 %v2981, %v2980
  %v2997 = vpack.c.b16 %v2983, %v2982
  %v2998 = vpack.c.b16 %v2985, %v2984
  %v2999 = vpack.c.b16 %v2987, %v2986
  %v3000 = vpack.c.b16 %v2989, %v2988
  %v3001 = vpack.c.b16 %v2991, %v2990
  %v3002 = vpack.c.b16 %v2993, %v2992
  %v3003 = vpack.c.b16 %v2995, %v2994
  %3012 = vmatpush.bf16.msra.mxu0 %v3003
  %3013 = vmatpush.bf16.msra.mxu0 %v3002
  %3014 = vmatpush.bf16.msra.mxu0 %v3001
  %3015 = vmatpush.bf16.msra.mxu0 %v3000
  %3016 = vmatpush.bf16.msra.mxu0 %v2999
  %3017 = vmatpush.bf16.msra.mxu0 %v2998
  %3018 = vmatpush.bf16.msra.mxu0 %v2997
  %3019 = vmatpush.bf16.msra.mxu0 %v2996
  %3020 = vmatmul.bf16.gmra.mxu0 %v2947
  %v3021 = vpop.f32.mrf.mxu0
  %v3022 = vadd.f32 %v407, %v3021
  %v3023 = vpop.f32.mrf.mxu0
  %v3024 = vadd.f32 %v407, %v3023
  %3025 = vdwg.mxu0
  %s3026 = scalar_lea.vmem %s7, 96
  %3027 = vst [vmem:[%s3026] sm:$0xff] %v3022
  %3028 = vst [vmem:[%s3026 + $0x8] sm:$0xff] %v3024
  %s3029 = scalar_lea.vmem %s0, 56
  %v3030 = vld [vmem:[%s3029] sm:$0xf]
  %v3031 = vld [vmem:[%s3029 + $0x4] sm:$0xf]
  %v3032 = vld [vmem:[#allocation2] sm:$0xff]
  %v3033 = vld [vmem:[#allocation2 + $0x8] sm:$0xff]
  %v3034 = vld [vmem:[%s1] sm:$0xf]
  %v3035 = vld [vmem:[%s1 + $0x4] sm:$0xf]
  %v3036 = vld [vmem:[%s1 + $0x8] sm:$0xf]
  %v3037 = vld [vmem:[%s1 + $0xc] sm:$0xf]
  %v3038 = vld [vmem:[%s1 + $0x10] sm:$0xf]
  %v3039 = vld [vmem:[%s1 + $0x14] sm:$0xf]
  %v3040 = vld [vmem:[%s1 + $0x18] sm:$0xf]
  %v3041 = vld [vmem:[%s1 + $0x1c] sm:$0xf]
  %v3042 = vld [vmem:[%s1 + $0x20] sm:$0xf]
  %v3043 = vld [vmem:[%s1 + $0x24] sm:$0xf]
  %v3044 = vld [vmem:[%s1 + $0x28] sm:$0xf]
  %v3045 = vld [vmem:[%s1 + $0x2c] sm:$0xf]
  %v3046 = vld [vmem:[%s1 + $0x30] sm:$0xf]
  %v3047 = vld [vmem:[%s1 + $0x34] sm:$0xf]
  %v3048 = vld [vmem:[%s1 + $0x38] sm:$0xf]
  %v3049 = vld [vmem:[%s1 + $0x3c] sm:$0xf]
  %v3050 = vpack.c.bf16 %v3033, %v3032
  %v3051 = vld [vmem:[%s2] sm:$0xf]
  %v3052 = vld [vmem:[%s2 + $0x4] sm:$0xf]
  %v3053 = vld [vmem:[%s2 + $0x8] sm:$0xf]
  %v3054 = vld [vmem:[%s2 + $0xc] sm:$0xf]
  %v3055 = vld [vmem:[%s2 + $0x10] sm:$0xf]
  %v3056 = vld [vmem:[%s2 + $0x14] sm:$0xf]
  %v3057 = vld [vmem:[%s2 + $0x18] sm:$0xf]
  %v3058 = vld [vmem:[%s2 + $0x1c] sm:$0xf]
  %v3059 = vld [vmem:[%s2 + $0x20] sm:$0xf]
  %v3060 = vld [vmem:[%s2 + $0x24] sm:$0xf]
  %v3061 = vld [vmem:[%s2 + $0x28] sm:$0xf]
  %v3062 = vld [vmem:[%s2 + $0x2c] sm:$0xf]
  %v3063 = vld [vmem:[%s2 + $0x30] sm:$0xf]
  %v3064 = vld [vmem:[%s2 + $0x34] sm:$0xf]
  %v3065 = vld [vmem:[%s2 + $0x38] sm:$0xf]
  %v3066 = vld [vmem:[%s2 + $0x3c] sm:$0xf]
  %v3083 = vunpack.c.l.b16 %v3051
  %v3084 = vunpack.c.l.b16 %v3052
  %v3085 = vunpack.c.l.b16 %v3053
  %v3086 = vunpack.c.l.b16 %v3054
  %v3087 = vunpack.c.l.b16 %v3055
  %v3088 = vunpack.c.l.b16 %v3056
  %v3089 = vunpack.c.l.b16 %v3057
  %v3090 = vunpack.c.l.b16 %v3058
  %v3091 = vunpack.c.l.b16 %v3059
  %v3092 = vunpack.c.l.b16 %v3060
  %v3093 = vunpack.c.l.b16 %v3061
  %v3094 = vunpack.c.l.b16 %v3062
  %v3095 = vunpack.c.l.b16 %v3063
  %v3096 = vunpack.c.l.b16 %v3064
  %v3097 = vunpack.c.l.b16 %v3065
  %v3098 = vunpack.c.l.b16 %v3066
  %v3099 = vpack.c.b16 %v3084, %v3083
  %v3100 = vpack.c.b16 %v3086, %v3085
  %v3101 = vpack.c.b16 %v3088, %v3087
  %v3102 = vpack.c.b16 %v3090, %v3089
  %v3103 = vpack.c.b16 %v3092, %v3091
  %v3104 = vpack.c.b16 %v3094, %v3093
  %v3105 = vpack.c.b16 %v3096, %v3095
  %v3106 = vpack.c.b16 %v3098, %v3097
  %3115 = vmatpush.bf16.msra.mxu0 %v3106
  %3116 = vmatpush.bf16.msra.mxu0 %v3105
  %3117 = vmatpush.bf16.msra.mxu0 %v3104
  %3118 = vmatpush.bf16.msra.mxu0 %v3103
  %3119 = vmatpush.bf16.msra.mxu0 %v3102
  %3120 = vmatpush.bf16.msra.mxu0 %v3101
  %3121 = vmatpush.bf16.msra.mxu0 %v3100
  %3122 = vmatpush.bf16.msra.mxu0 %v3099
  %3123 = vmatmul.bf16.gmra.mxu0 %v3050
  %v3124 = vpop.f32.mrf.mxu0
  %v3125 = vadd.f32 0.0, %v3124
  %v3126 = vpop.f32.mrf.mxu0
  %v3127 = vadd.f32 0.0, %v3126
  %3128 = vdwg.mxu0
  %v3131 = vunpack.c.l.b16 %v3030
  %v3132 = vunpack.c.l.b16 %v3031
  %v3133 = vpack.c.b16 %v3132, %v3131
  %v3151 = vunpack.c.l.b16 %v3034
  %v3152 = vunpack.c.l.b16 %v3035
  %v3153 = vunpack.c.l.b16 %v3036
  %v3154 = vunpack.c.l.b16 %v3037
  %v3155 = vunpack.c.l.b16 %v3038
  %v3156 = vunpack.c.l.b16 %v3039
  %v3157 = vunpack.c.l.b16 %v3040
  %v3158 = vunpack.c.l.b16 %v3041
  %v3159 = vunpack.c.l.b16 %v3042
  %v3160 = vunpack.c.l.b16 %v3043
  %v3161 = vunpack.c.l.b16 %v3044
  %v3162 = vunpack.c.l.b16 %v3045
  %v3163 = vunpack.c.l.b16 %v3046
  %v3164 = vunpack.c.l.b16 %v3047
  %v3165 = vunpack.c.l.b16 %v3048
  %v3166 = vunpack.c.l.b16 %v3049
  %v3167 = vpack.c.b16 %v3152, %v3151
  %v3168 = vpack.c.b16 %v3154, %v3153
  %v3169 = vpack.c.b16 %v3156, %v3155
  %v3170 = vpack.c.b16 %v3158, %v3157
  %v3171 = vpack.c.b16 %v3160, %v3159
  %v3172 = vpack.c.b16 %v3162, %v3161
  %v3173 = vpack.c.b16 %v3164, %v3163
  %v3174 = vpack.c.b16 %v3166, %v3165
  %3183 = vmatpush.bf16.msra.mxu0 %v3174
  %3184 = vmatpush.bf16.msra.mxu0 %v3173
  %3185 = vmatpush.bf16.msra.mxu0 %v3172
  %3186 = vmatpush.bf16.msra.mxu0 %v3171
  %3187 = vmatpush.bf16.msra.mxu0 %v3170
  %3188 = vmatpush.bf16.msra.mxu0 %v3169
  %3189 = vmatpush.bf16.msra.mxu0 %v3168
  %3190 = vmatpush.bf16.msra.mxu0 %v3167
  %3191 = vmatmul.bf16.gmra.mxu0 %v3133
  %v3192 = vpop.f32.mrf.mxu0
  %v3193 = vadd.f32 %v3125, %v3192
  %v3194 = vpop.f32.mrf.mxu0
  %v3195 = vadd.f32 %v3127, %v3194
  %3196 = vdwg.mxu0
  %v3197 = vadd.f32 %v3193, %v206
  %v3198 = vadd.f32 %v3195, %v206
  %v3199 = vtanh.pop %v3197
  %v3200 = vtanh.pop %v3198
  %3201 = vst [vmem:[#allocation2] sm:$0xff] %v3199
  %3202 = vst [vmem:[#allocation2 + $0x8] sm:$0xff] %v3200
  %v3203 = vmax.f32 %v3199, 0.0
  %v3204 = vmax.f32 %v3200, 0.0
  %v3205 = vld [vmem:[%s216] sm:$0xff]
  %v3206 = vld [vmem:[%s216 + $0x8] sm:$0xff]
  %v3207 = vpack.c.bf16 %v3204, %v3203
  %v3208 = vld [vmem:[%s3] sm:$0xf]
  %v3209 = vld [vmem:[%s3 + $0x4] sm:$0xf]
  %v3210 = vld [vmem:[%s3 + $0x8] sm:$0xf]
  %v3211 = vld [vmem:[%s3 + $0xc] sm:$0xf]
  %v3212 = vld [vmem:[%s3 + $0x10] sm:$0xf]
  %v3213 = vld [vmem:[%s3 + $0x14] sm:$0xf]
  %v3214 = vld [vmem:[%s3 + $0x18] sm:$0xf]
  %v3215 = vld [vmem:[%s3 + $0x1c] sm:$0xf]
  %v3216 = vld [vmem:[%s3 + $0x20] sm:$0xf]
  %v3217 = vld [vmem:[%s3 + $0x24] sm:$0xf]
  %v3218 = vld [vmem:[%s3 + $0x28] sm:$0xf]
  %v3219 = vld [vmem:[%s3 + $0x2c] sm:$0xf]
  %v3220 = vld [vmem:[%s3 + $0x30] sm:$0xf]
  %v3221 = vld [vmem:[%s3 + $0x34] sm:$0xf]
  %v3222 = vld [vmem:[%s3 + $0x38] sm:$0xf]
  %v3223 = vld [vmem:[%s3 + $0x3c] sm:$0xf]
  %v3224 = vpack.c.bf16 %v3206, %v3205
  %v3225 = vld [vmem:[%s237] sm:$0xf]
  %v3226 = vld [vmem:[%s237 + $0x4] sm:$0xf]
  %v3227 = vld [vmem:[%s237 + $0x8] sm:$0xf]
  %v3228 = vld [vmem:[%s237 + $0xc] sm:$0xf]
  %v3229 = vld [vmem:[%s237 + $0x10] sm:$0xf]
  %v3230 = vld [vmem:[%s237 + $0x14] sm:$0xf]
  %v3231 = vld [vmem:[%s237 + $0x18] sm:$0xf]
  %v3232 = vld [vmem:[%s237 + $0x1c] sm:$0xf]
  %v3233 = vld [vmem:[%s237 + $0x20] sm:$0xf]
  %v3234 = vld [vmem:[%s237 + $0x24] sm:$0xf]
  %v3235 = vld [vmem:[%s237 + $0x28] sm:$0xf]
  %v3236 = vld [vmem:[%s237 + $0x2c] sm:$0xf]
  %v3237 = vld [vmem:[%s237 + $0x30] sm:$0xf]
  %v3238 = vld [vmem:[%s237 + $0x34] sm:$0xf]
  %v3239 = vld [vmem:[%s237 + $0x38] sm:$0xf]
  %v3240 = vld [vmem:[%s237 + $0x3c] sm:$0xf]
  %v3257 = vunpack.c.l.b16 %v3225
  %v3258 = vunpack.c.l.b16 %v3226
  %v3259 = vunpack.c.l.b16 %v3227
  %v3260 = vunpack.c.l.b16 %v3228
  %v3261 = vunpack.c.l.b16 %v3229
  %v3262 = vunpack.c.l.b16 %v3230
  %v3263 = vunpack.c.l.b16 %v3231
  %v3264 = vunpack.c.l.b16 %v3232
  %v3265 = vunpack.c.l.b16 %v3233
  %v3266 = vunpack.c.l.b16 %v3234
  %v3267 = vunpack.c.l.b16 %v3235
  %v3268 = vunpack.c.l.b16 %v3236
  %v3269 = vunpack.c.l.b16 %v3237
  %v3270 = vunpack.c.l.b16 %v3238
  %v3271 = vunpack.c.l.b16 %v3239
  %v3272 = vunpack.c.l.b16 %v3240
  %v3273 = vpack.c.b16 %v3258, %v3257
  %v3274 = vpack.c.b16 %v3260, %v3259
  %v3275 = vpack.c.b16 %v3262, %v3261
  %v3276 = vpack.c.b16 %v3264, %v3263
  %v3277 = vpack.c.b16 %v3266, %v3265
  %v3278 = vpack.c.b16 %v3268, %v3267
  %v3279 = vpack.c.b16 %v3270, %v3269
  %v3280 = vpack.c.b16 %v3272, %v3271
  %3289 = vmatpush.bf16.msra.mxu0 %v3280
  %3290 = vmatpush.bf16.msra.mxu0 %v3279
  %3291 = vmatpush.bf16.msra.mxu0 %v3278
  %3292 = vmatpush.bf16.msra.mxu0 %v3277
  %3293 = vmatpush.bf16.msra.mxu0 %v3276
  %3294 = vmatpush.bf16.msra.mxu0 %v3275
  %3295 = vmatpush.bf16.msra.mxu0 %v3274
  %3296 = vmatpush.bf16.msra.mxu0 %v3273
  %3297 = vmatmul.bf16.gmra.mxu0 %v3224
  %v3298 = vpop.f32.mrf.mxu0
  %v3299 = vadd.f32 0.0, %v3298
  %v3300 = vpop.f32.mrf.mxu0
  %v3301 = vadd.f32 0.0, %v3300
  %3302 = vdwg.mxu0
  %v3319 = vunpack.c.l.b16 %v3208
  %v3320 = vunpack.c.l.b16 %v3209
  %v3321 = vunpack.c.l.b16 %v3210
  %v3322 = vunpack.c.l.b16 %v3211
  %v3323 = vunpack.c.l.b16 %v3212
  %v3324 = vunpack.c.l.b16 %v3213
  %v3325 = vunpack.c.l.b16 %v3214
  %v3326 = vunpack.c.l.b16 %v3215
  %v3327 = vunpack.c.l.b16 %v3216
  %v3328 = vunpack.c.l.b16 %v3217
  %v3329 = vunpack.c.l.b16 %v3218
  %v3330 = vunpack.c.l.b16 %v3219
  %v3331 = vunpack.c.l.b16 %v3220
  %v3332 = vunpack.c.l.b16 %v3221
  %v3333 = vunpack.c.l.b16 %v3222
  %v3334 = vunpack.c.l.b16 %v3223
  %v3335 = vpack.c.b16 %v3320, %v3319
  %v3336 = vpack.c.b16 %v3322, %v3321
  %v3337 = vpack.c.b16 %v3324, %v3323
  %v3338 = vpack.c.b16 %v3326, %v3325
  %v3339 = vpack.c.b16 %v3328, %v3327
  %v3340 = vpack.c.b16 %v3330, %v3329
  %v3341 = vpack.c.b16 %v3332, %v3331
  %v3342 = vpack.c.b16 %v3334, %v3333
  %3351 = vmatpush.bf16.msra.mxu0 %v3342
  %3352 = vmatpush.bf16.msra.mxu0 %v3341
  %3353 = vmatpush.bf16.msra.mxu0 %v3340
  %3354 = vmatpush.bf16.msra.mxu0 %v3339
  %3355 = vmatpush.bf16.msra.mxu0 %v3338
  %3356 = vmatpush.bf16.msra.mxu0 %v3337
  %3357 = vmatpush.bf16.msra.mxu0 %v3336
  %3358 = vmatpush.bf16.msra.mxu0 %v3335
  %3359 = vmatmul.bf16.gmra.mxu0 %v3207
  %v3360 = vpop.f32.mrf.mxu0
  %v3361 = vadd.f32 %v3299, %v3360
  %v3362 = vpop.f32.mrf.mxu0
  %v3363 = vadd.f32 %v3301, %v3362
  %3364 = vdwg.mxu0
  %v3365 = vadd.f32 %v3361, %v379
  %v3366 = vadd.f32 %v3363, %v379
  %v3367 = vtanh.pop %v3365
  %v3368 = vtanh.pop %v3366
  %3369 = vst [vmem:[%s216] sm:$0xff] %v3367
  %3370 = vst [vmem:[%s216 + $0x8] sm:$0xff] %v3368
  %v3371 = vmax.f32 %v3367, 0.0
  %v3372 = vmax.f32 %v3368, 0.0
  %v3373 = vpack.c.bf16 %v3372, %v3371
  %v3374 = vld [vmem:[%s5] sm:$0xf]
  %v3375 = vld [vmem:[%s5 + $0x4] sm:$0xf]
  %v3376 = vld [vmem:[%s5 + $0x8] sm:$0xf]
  %v3377 = vld [vmem:[%s5 + $0xc] sm:$0xf]
  %v3378 = vld [vmem:[%s5 + $0x10] sm:$0xf]
  %v3379 = vld [vmem:[%s5 + $0x14] sm:$0xf]
  %v3380 = vld [vmem:[%s5 + $0x18] sm:$0xf]
  %v3381 = vld [vmem:[%s5 + $0x1c] sm:$0xf]
  %v3382 = vld [vmem:[%s5 + $0x20] sm:$0xf]
  %v3383 = vld [vmem:[%s5 + $0x24] sm:$0xf]
  %v3384 = vld [vmem:[%s5 + $0x28] sm:$0xf]
  %v3385 = vld [vmem:[%s5 + $0x2c] sm:$0xf]
  %v3386 = vld [vmem:[%s5 + $0x30] sm:$0xf]
  %v3387 = vld [vmem:[%s5 + $0x34] sm:$0xf]
  %v3388 = vld [vmem:[%s5 + $0x38] sm:$0xf]
  %v3389 = vld [vmem:[%s5 + $0x3c] sm:$0xf]
  %v3406 = vunpack.c.l.b16 %v3374
  %v3407 = vunpack.c.l.b16 %v3375
  %v3408 = vunpack.c.l.b16 %v3376
  %v3409 = vunpack.c.l.b16 %v3377
  %v3410 = vunpack.c.l.b16 %v3378
  %v3411 = vunpack.c.l.b16 %v3379
  %v3412 = vunpack.c.l.b16 %v3380
  %v3413 = vunpack.c.l.b16 %v3381
  %v3414 = vunpack.c.l.b16 %v3382
  %v3415 = vunpack.c.l.b16 %v3383
  %v3416 = vunpack.c.l.b16 %v3384
  %v3417 = vunpack.c.l.b16 %v3385
  %v3418 = vunpack.c.l.b16 %v3386
  %v3419 = vunpack.c.l.b16 %v3387
  %v3420 = vunpack.c.l.b16 %v3388
  %v3421 = vunpack.c.l.b16 %v3389
  %v3422 = vpack.c.b16 %v3407, %v3406
  %v3423 = vpack.c.b16 %v3409, %v3408
  %v3424 = vpack.c.b16 %v3411, %v3410
  %v3425 = vpack.c.b16 %v3413, %v3412
  %v3426 = vpack.c.b16 %v3415, %v3414
  %v3427 = vpack.c.b16 %v3417, %v3416
  %v3428 = vpack.c.b16 %v3419, %v3418
  %v3429 = vpack.c.b16 %v3421, %v3420
  %3438 = vmatpush.bf16.msra.mxu0 %v3429
  %3439 = vmatpush.bf16.msra.mxu0 %v3428
  %3440 = vmatpush.bf16.msra.mxu0 %v3427
  %3441 = vmatpush.bf16.msra.mxu0 %v3426
  %3442 = vmatpush.bf16.msra.mxu0 %v3425
  %3443 = vmatpush.bf16.msra.mxu0 %v3424
  %3444 = vmatpush.bf16.msra.mxu0 %v3423
  %3445 = vmatpush.bf16.msra.mxu0 %v3422
  %3446 = vmatmul.bf16.gmra.mxu0 %v3373
  %v3447 = vpop.f32.mrf.mxu0
  %v3448 = vadd.f32 %v407, %v3447
  %v3449 = vpop.f32.mrf.mxu0
  %v3450 = vadd.f32 %v407, %v3449
  %3451 = vdwg.mxu0
  %s3452 = scalar_lea.vmem %s7, 112
  %3453 = vst [vmem:[%s3452] sm:$0xff] %v3448
  %3454 = vst [vmem:[%s3452 + $0x8] sm:$0xff] %v3450
  // Predicated region
  $region34: #{deep_rnn_forward.1} parent=0 // pred_check
    _
  $region35: #{deep_rnn_forward.1} parent=0 // pred_check_branch
    %3456 = sbr.rel (0) target = $region37
  $region36: #{deep_rnn_forward.1} parent=0 // pred_region
    _
  $region37: #{deep_rnn_forward.1} parent=0 // pred_fallthru
    _
  // Predicated region
  $region38: #{deep_rnn_forward.1} parent=0 // pred_check
    _
  $region39: #{deep_rnn_forward.1} parent=0 // pred_check_branch
    %3458 = sbr.rel (0) target = $region41
  $region40: #{deep_rnn_forward.1} parent=0 // pred_region
    _
  $region41: #{deep_rnn_forward.1} parent=0 // pred_fallthru
    _

</llo_original>
